<compile_context>
chip_gen: v7x
topology: tpu7x:2x2x1
jax: 0.10.0
libtpu: 0.0.40
codegen_flags: <defaults>
</compile_context>

<pallas_src>
import functools

import jax
import jax.numpy as jnp
from jax.experimental import pallas as pl
from jax.experimental.pallas import tpu as pltpu


def _round_up(x, m):
    return ((x + m - 1) // m) * m


def _pick_k_tile(K):
    Kp = _round_up(K, 128)
    for t in (512, 384, 256, 128):     # prefer large K tiles that divide Kp
        if Kp % t == 0:
            return t, Kp
    return 128, Kp


# ---------------------------------------------------------------------------
# Pallas kernel 1: lane-dense, K-tiled matmul + bias + PReLU (conv hot path)
#   out(Co, S) = prelu(W(Co, K) @ X(K, S) + b),   S = N*H*W on lanes
# ---------------------------------------------------------------------------
def _mm_bias_prelu_kernel(w_ref, x_ref, b_ref, alpha_ref, o_ref, acc_ref):
    @pl.when(pl.program_id(1) == 0)
    def _init():
        acc_ref[...] = jnp.zeros_like(acc_ref)

    acc_ref[...] += jnp.dot(w_ref[...], x_ref[...],
                            preferred_element_type=jnp.float32)

    @pl.when(pl.program_id(1) == pl.num_programs(1) - 1)
    def _finalize():
        y = acc_ref[...] + b_ref[...]          # (Co, ts) + (Co, 1)
        a = alpha_ref[0]                       # learnable PReLU slope
        o_ref[...] = jnp.where(y >= 0.0, y, a * y)


def mm_bias_prelu(wm, xmat, bias, alpha):
    """prelu(wm @ xmat + bias[:, None]).  wm:(O,K), xmat:(K,S), bias:(O,)."""
    O, K = wm.shape
    K2, S = xmat.shape
    assert K == K2
    Op = _round_up(O, 8)
    tk, Kp = _pick_k_tile(K)
    ts = min(512, _round_up(S, 128))
    Sp = _round_up(S, ts)

    # bf16 MXU operands (v6e/v7x 918/996 TF/s path), f32 accumulate + epilogue.
    wm = jnp.pad(wm.astype(jnp.bfloat16), ((0, Op - O), (0, Kp - K)))
    xmat = jnp.pad(xmat.astype(jnp.bfloat16), ((0, Kp - K), (0, Sp - S)))
    b = jnp.pad(bias.astype(jnp.float32).reshape(O, 1), ((0, Op - O), (0, 0)))
    a = jnp.asarray(alpha, jnp.float32).reshape(1)

    out = pl.pallas_call(
        _mm_bias_prelu_kernel,
        out_shape=jax.ShapeDtypeStruct((Op, Sp), jnp.float32),
        grid=(Sp // ts, Kp // tk),             # spatial tiles, then K (reduction last)
        in_specs=[
            pl.BlockSpec((Op, tk), lambda i, k: (0, k)),
            pl.BlockSpec((tk, ts), lambda i, k: (k, i)),
            pl.BlockSpec((Op, 1), lambda i, k: (0, 0)),
            pl.BlockSpec(memory_space=pltpu.MemorySpace.SMEM),   # alpha
        ],
        out_specs=pl.BlockSpec((Op, ts), lambda i, k: (0, i)),
        scratch_shapes=[pltpu.VMEM((Op, ts), jnp.float32)],
        compiler_params=pltpu.CompilerParams(
            dimension_semantics=("parallel", "arbitrary")),
    )(wm, xmat, b, a)
    return out[:O, :S]


# ---------------------------------------------------------------------------
# Pallas kernel 2: fused ChannelAttention + SpatialAttention + compress_in
# (per image, grid over N, "parallel" so v7x uses both cores).
# Reset path: last_hidden == attention output, so cat(x, x) @ W_cin is folded
# to x @ (W_cin[:, :C] + W_cin[:, C:])  (passed in pre-transposed).
# ---------------------------------------------------------------------------
def _attn_compress_kernel(x_ref, caw1_ref, caw2_ref, saw_ref, cinw_ref,
                          cinb_ref, alpha_ref, o_ref, pad_avg, pad_max, *, H, W):
    x = x_ref[0]                                    # (H, W, C)
    C = x.shape[-1]
    xf = x.reshape(H * W, C)

    # --- ChannelAttention: sigmoid(fc2(relu(fc1(avg))) + fc2(relu(fc1(max))))
    avg = jnp.mean(xf, axis=0, keepdims=True)       # AdaptiveAvgPool2d(1)
    mx = jnp.max(xf, axis=0, keepdims=True)         # AdaptiveMaxPool2d(1)
    v = jnp.concatenate([avg, mx], axis=0)          # (2, C)
    h = jnp.maximum(
        jnp.dot(v, caw1_ref[...], preferred_element_type=jnp.float32), 0.0)
    y = jnp.dot(h, caw2_ref[...], preferred_element_type=jnp.float32)  # (2, C)
    att_c = 1.0 / (1.0 + jnp.exp(-(y[0:1, :] + y[1:2, :])))            # (1, C)
    xc = x * att_c.reshape(1, 1, C)

    # --- SpatialAttention: sigmoid(conv7x7(cat(mean_c, max_c), pad=3))
    am = jnp.mean(xc, axis=-1)                      # (H, W)
    mm = jnp.max(xc, axis=-1)                       # (H, W)
    # Full memset kept (cheap); border-only init via pl.when(program_id==0)
    # would be wrong when the grid is split across two cores on v7x.
    pad_avg[...] = jnp.zeros_like(pad_avg)
    pad_max[...] = jnp.zeros_like(pad_max)
    pad_avg[3:3 + H, 3:3 + W] = am
    pad_max[3:3 + H, 3:3 + W] = mm
    acc = jnp.zeros((H, W), jnp.float32)
    for kh in range(7):
        for kw in range(7):
            base = (kh * 7 + kw) * 2
            acc = acc + pad_avg[kh:kh + H, kw:kw + W] * saw_ref[base + 0]
            acc = acc + pad_max[kh:kh + H, kw:kw + W] * saw_ref[base + 1]
    att_s = 1.0 / (1.0 + jnp.exp(-acc))             # (H, W)
    xs = xc * att_s[:, :, None]

    # --- compress_in (1x1 conv, reset concat folded) + PReLU
    z = jnp.dot(xs.reshape(H * W, C), cinw_ref[...],
                preferred_element_type=jnp.float32) + cinb_ref[...]
    a = alpha_ref[0]
    z = jnp.where(z >= 0.0, z, a * z)
    o_ref[0] = z.reshape(H, W, C)


def attention_compress_in(x_nhwc, ca_w1, ca_w2, sa_w, cin_w_eff_t, cin_b, alpha):
    N, H, W, C = x_nhwc.shape
    Cr = ca_w1.shape[1]
    return pl.pallas_call(
        functools.partial(_attn_compress_kernel, H=H, W=W),
        out_shape=jax.ShapeDtypeStruct((N, H, W, C), jnp.float32),
        grid=(N,),
        in_specs=[
            pl.BlockSpec((1, H, W, C), lambda n: (n, 0, 0, 0)),
            pl.BlockSpec((C, Cr), lambda n: (0, 0)),
            pl.BlockSpec((Cr, C), lambda n: (0, 0)),
            pl.BlockSpec(memory_space=pltpu.MemorySpace.SMEM),   # sa_w (98,)
            pl.BlockSpec((C, C), lambda n: (0, 0)),
            pl.BlockSpec((1, C), lambda n: (0, 0)),
            pl.BlockSpec(memory_space=pltpu.MemorySpace.SMEM),   # alpha (1,)
        ],
        out_specs=pl.BlockSpec((1, H, W, C), lambda n: (n, 0, 0, 0)),
        scratch_shapes=[pltpu.VMEM((H + 6, W + 6), jnp.float32),
                        pltpu.VMEM((H + 6, W + 6), jnp.float32)],
        compiler_params=pltpu.CompilerParams(dimension_semantics=("parallel",)),
    )(x_nhwc, ca_w1, ca_w2, sa_w, cin_w_eff_t, cin_b, alpha)


# ---------------------------------------------------------------------------
# Conv / Deconv glue.  Feature maps are (C, N, H, W); patches are bf16.
# ---------------------------------------------------------------------------
def conv1x1_prelu(x, w_oc, bias, alpha):
    """x: (Ci, N, H, W); w: (O, Ci) (PyTorch 1x1 conv weight squeezed)."""
    Ci, N, H, W = x.shape
    y = mm_bias_prelu(w_oc, x.reshape(Ci, N * H * W), bias, alpha)
    return y.reshape(-1, N, H, W)


def conv2d_prelu(x, w_oihw, bias, alpha, stride, padding):
    """x: (C, N, H, W); w: (O, Ci, KH, KW) (PyTorch Conv2d layout)."""
    C, N, H, W = x.shape
    O, Ci, KH, KW = w_oihw.shape
    s, p = stride, padding
    OH = (H + 2 * p - KH) // s + 1
    OW = (W + 2 * p - KW) // s + 1
    xp = jnp.pad(x.astype(jnp.bfloat16), ((0, 0), (0, 0), (p, p), (p, p)))
    rows = []
    for kh in range(KH):
        for kw in range(KW):
            sl = xp[:, :, kh:kh + (OH - 1) * s + 1:s, kw:kw + (OW - 1) * s + 1:s]
            rows.append(sl.reshape(C, N * OH * OW))
    patches = jnp.concatenate(rows, axis=0)                     # (KH*KW*C, S)
    wm = jnp.transpose(w_oihw, (0, 2, 3, 1)).reshape(O, KH * KW * Ci)
    y = mm_bias_prelu(wm, patches, bias, alpha)
    return y.reshape(O, N, OH, OW)


def deconv2d_prelu(x, w_iohw, bias, alpha, stride, padding):
    """ConvTranspose2d via sub-pixel phase decomposition (no zero-stuffing).
    x: (Ci, N, H, W); w: (Ci, O, KH, KW) (PyTorch ConvTranspose2d layout)."""
    C, N, H, W = x.shape
    Ci, O, KH, KW = w_iohw.shape
    s, p = stride, padding

    def phase_info(k):
        infos = []
        for r in range(s):
            q = len(range(r, k, s))          # taps in this phase
            m_lo = -((r - p) // s)           # ceil((p - r) / s)
            infos.append((r, q, m_lo))
        return infos

    infos_h, infos_w = phase_info(KH), phase_info(KW)
    Lh = max(0, max(q - 1 - m for _, q, m in infos_h))
    Rh = max(0, max(m for _, q, m in infos_h))
    Lw = max(0, max(q - 1 - m for _, q, m in infos_w))
    Rw = max(0, max(m for _, q, m in infos_w))
    xp = jnp.pad(x.astype(jnp.bfloat16), ((0, 0), (0, 0), (Lh, Rh), (Lw, Rw)))

    S = N * H * W
    phase_out = [[None] * s for _ in range(s)]
    for (rh, qh, mlh) in infos_h:
        off_h = mlh - qh + 1 + Lh
        oh_off = s * mlh + rh - p            # output row offset of this phase
        for (rw, qw, mlw) in infos_w:
            off_w = mlw - qw + 1 + Lw
            ow_off = s * mlw + rw - p
            rows, wcols = [], []
            for th in range(qh):
                for tw in range(qw):
                    sl = xp[:, :, off_h + th:off_h + th + H,
                            off_w + tw:off_w + tw + W]
                    rows.append(sl.reshape(C, S))
                    kh = (qh - 1 - th) * s + rh      # reversed sub-kernel tap
                    kw = (qw - 1 - tw) * s + rw
                    wcols.append(w_iohw[:, :, kh, kw].T)         # (O, Ci)
            patches = jnp.concatenate(rows, axis=0)              # (qh*qw*C, S)
            wm = jnp.concatenate(wcols, axis=1)                  # (O, qh*qw*C)
            # bias/PReLU per phase == global (disjoint output pixels).
            yph = mm_bias_prelu(wm, patches, bias, alpha).reshape(O, N, H, W)
            phase_out[oh_off][ow_off] = yph

    rows = [jnp.stack(phase_out[i], axis=-1) for i in range(s)]  # (O,N,H,W,s)
    out = jnp.stack(rows, axis=3)                                # (O,N,H,s,W,s)
    return out.reshape(O, N, s * H, s * W)


# ---------------------------------------------------------------------------
# FeedbackBlock parameters + forward
# ---------------------------------------------------------------------------
def init_feedback_params(key, num_features, num_groups, kernel_size):
    C = num_features
    Cr = max(C // 16, 1)
    keys = iter(jax.random.split(key, 256))

    def rnd(shape, scale=0.05):
        return (scale * jax.random.normal(next(keys), shape)).astype(jnp.float32)

    def prelu_alpha():                      # PyTorch PReLU init (learnable)
        return jnp.full((1,), 0.25, jnp.float32)

    p = {
        "ca_w1": rnd((C, Cr)),              # fc1.weight.T  (C -> C//16), bias=False
        "ca_w2": rnd((Cr, C)),              # fc2.weight.T  (C//16 -> C), bias=False
        "sa_w": rnd((7, 7, 2)).reshape(-1),  # SA conv weight as (kh, kw, [avg,max])
        "cin_w": rnd((C, 2 * C)), "cin_b": rnd((C,), 0.01), "cin_a": prelu_alpha(),
        "cout_w": rnd((C, num_groups * C)), "cout_b": rnd((C,), 0.01),
        "cout_a": prelu_alpha(),
        "up": [], "down": [], "uptran": [], "downtran": [],
    }
    for idx in range(num_groups):
        p["up"].append((rnd((C, C, kernel_size, kernel_size)),      # (Ci,O,k,k)
                        rnd((C,), 0.01), prelu_alpha()))
        p["down"].append((rnd((C, C, kernel_size, kernel_size)),    # (O,Ci,k,k)
                          rnd((C,), 0.01), prelu_alpha()))
        if idx > 0:
            p["uptran"].append((rnd((C, C * (idx + 1))), rnd((C,), 0.01),
                                prelu_alpha()))
            p["downtran"].append((rnd((C, C * (idx + 1))), rnd((C,), 0.01),
                                  prelu_alpha()))
    return p


def feedback_block_forward(params, x_nchw, *, num_groups, stride, padding):
    """First-call semantics of FeedbackBlock.forward (should_reset=True)."""
    # TODO(synk): recurrent state (self.last_hidden across calls) is host-side
    # module state; only the first-call (reset) forward is reproduced here.
    N, C, H, W = x_nchw.shape
    x_nhwc = jnp.transpose(x_nchw, (0, 2, 3, 1)).astype(jnp.float32)

    # Fused CA + SA + compress_in (reset concat folded: cat(x,x)@W == x@(W1+W2)).
    w_eff_t = (params["cin_w"][:, :C] + params["cin_w"][:, C:]).T       # (C, C)
    x0_nhwc = attention_compress_in(
        x_nhwc, params["ca_w1"], params["ca_w2"], params["sa_w"],
        w_eff_t, params["cin_b"].reshape(1, C), params["cin_a"])
    x0 = jnp.transpose(x0_nhwc, (3, 0, 1, 2))                           # (C, N, H, W)

    # TODO(synk): the growing lr/hr concats could write into a preallocated
    # (groups*C, N, H, W) buffer read by channel-sliced K tiles.
    lr, hr = [x0], []
    for idx in range(num_groups):
        if idx == 0:
            LD_L = lr[0]
        else:
            wt, bt, at = params["uptran"][idx - 1]
            LD_L = conv1x1_prelu(jnp.concatenate(lr, axis=0), wt, bt, at)
        wu, bu, au = params["up"][idx]
        LD_H = deconv2d_prelu(LD_L, wu, bu, au, stride, padding)
        hr.append(LD_H)

        if idx == 0:
            LD_Hc = hr[0]
        else:
            wt, bt, at = params["downtran"][idx - 1]
            LD_Hc = conv1x1_prelu(jnp.concatenate(hr, axis=0), wt, bt, at)
        wd, bd, ad = params["down"][idx]
        LD_L2 = conv2d_prelu(LD_Hc, wd, bd, ad, stride, padding)
        lr.append(LD_L2)

    y = conv1x1_prelu(jnp.concatenate(lr[1:], axis=0),
                      params["cout_w"], params["cout_b"], params["cout_a"])
    return jnp.transpose(y, (1, 0, 2, 3))                               # -> NCHW


if __name__ == "__main__":
    # Small but valid config: num_features must be >= 16 (CA uses C // 16).
    num_features = 32
    num_groups = 2
    # upscale_factor = 2  ->  stride=2, padding=2, kernel_size=6
    stride, padding, kernel_size = 2, 2, 6
    batch, H, W = 2, 8, 8

    key = jax.random.PRNGKey(0)
    k_in, k_par = jax.random.split(key)
    x = jax.random.normal(k_in, (batch, num_features, H, W), dtype=jnp.float32)
    params = init_feedback_params(k_par, num_features, num_groups, kernel_size)

    fwd = functools.partial(feedback_block_forward,
                            num_groups=num_groups, stride=stride, padding=padding)
    out = jax.jit(fwd)(params, x)
    out = jax.block_until_ready(out)

    assert out.shape == (batch, num_features, H, W), out.shape
    assert bool(jnp.all(jnp.isfinite(out)))
    print("KERNEL_OK")
</pallas_src>

<mosaic_0001>
module attributes {stable_mosaic.version = 11 : i64} {
  func.func @_attn_compress_kernel(%arg0: i32, %arg1: memref<1x8x8x32xf32, #tpu.memory_space<vmem>>, %arg2: memref<32x2xf32, #tpu.memory_space<vmem>>, %arg3: memref<2x32xf32, #tpu.memory_space<vmem>>, %arg4: memref<98xf32, #tpu.memory_space<smem>>, %arg5: memref<32x32xf32, #tpu.memory_space<vmem>>, %arg6: memref<1x32xf32, #tpu.memory_space<vmem>>, %arg7: memref<1xf32, #tpu.memory_space<smem>>, %arg8: memref<1x8x8x32xf32, #tpu.memory_space<vmem>>, %arg9: memref<14x14xf32, #tpu.memory_space<vmem>>, %arg10: memref<14x14xf32, #tpu.memory_space<vmem>>) attributes {dimension_semantics = [#tpu.dimension_semantics<parallel>], iteration_bounds = array<i64: 2>, scalar_prefetch = 0 : i64, scratch_operands = 2 : i64, tpu.core_type = #tpu.core_type<tc>, window_params = [{transform_indices = @transform_0, window_bounds = array<i64: 1, 8, 8, 32>}, {pipeline_mode = #tpu.pipeline_mode<synchronous>, transform_indices = @transform_1, window_bounds = array<i64: 32, 2>}, {pipeline_mode = #tpu.pipeline_mode<synchronous>, transform_indices = @transform_2, window_bounds = array<i64: 2, 32>}, {transform_indices = @transform_3, window_bounds = array<i64: 98>}, {pipeline_mode = #tpu.pipeline_mode<synchronous>, transform_indices = @transform_4, window_bounds = array<i64: 32, 32>}, {pipeline_mode = #tpu.pipeline_mode<synchronous>, transform_indices = @transform_5, window_bounds = array<i64: 1, 32>}, {transform_indices = @transform_6, window_bounds = array<i64: 1>}, {transform_indices = @transform_7, window_bounds = array<i64: 1, 8, 8, 32>}]} {
    %c0 = arith.constant 0 : index
    %c0_0 = arith.constant 0 : index
    %c0_1 = arith.constant 0 : index
    %c0_2 = arith.constant 0 : index
    %0 = vector.load %arg1[%c0, %c0_0, %c0_1, %c0_2] : memref<1x8x8x32xf32, #tpu.memory_space<vmem>>, vector<1x8x8x32xf32>
    %1 = vector.shape_cast %0 : vector<1x8x8x32xf32> to vector<8x8x32xf32>
    %2 = vector.shape_cast %1 : vector<8x8x32xf32> to vector<64x32xf32>
    %cst = arith.constant dense<0.000000e+00> : vector<32xf32>
    %3 = vector.multi_reduction <add>, %2, %cst [0] : vector<64x32xf32> to vector<32xf32>
    %4 = vector.shape_cast %3 : vector<32xf32> to vector<1x32xf32>
    %cst_3 = arith.constant 6.400000e+01 : f32
    %5 = vector.broadcast %cst_3 : f32 to vector<1x32xf32>
    %6 = arith.divf %4, %5 : vector<1x32xf32>
    %cst_4 = arith.constant dense<0xFF800000> : vector<32xf32>
    %7 = vector.multi_reduction <maximumf>, %2, %cst_4 [0] : vector<64x32xf32> to vector<32xf32>
    %8 = vector.shape_cast %7 : vector<32xf32> to vector<1x32xf32>
    %9 = tpu.concatenate %6, %8 in 0 : vector<1x32xf32>, vector<1x32xf32> -> vector<2x32xf32>
    %c0_5 = arith.constant 0 : index
    %c0_6 = arith.constant 0 : index
    %10 = vector.load %arg2[%c0_5, %c0_6] : memref<32x2xf32, #tpu.memory_space<vmem>>, vector<32x2xf32>
    %cst_7 = arith.constant dense<0.000000e+00> : vector<2x2xf32>
    %11 = tpu.matmul %9, %10, %cst_7 {dimension_numbers = #tpu.dot_dimension_numbers<[1], [0], [0], [1], [0, 0, 1, 1], [], []>} : vector<2x32xf32>, vector<32x2xf32>, vector<2x2xf32> -> vector<2x2xf32>
    %cst_8 = arith.constant 0.000000e+00 : f32
    %12 = vector.broadcast %cst_8 : f32 to vector<2x2xf32>
    %13 = arith.maximumf %11, %12 : vector<2x2xf32>
    %c0_9 = arith.constant 0 : index
    %c0_10 = arith.constant 0 : index
    %14 = vector.load %arg3[%c0_9, %c0_10] : memref<2x32xf32, #tpu.memory_space<vmem>>, vector<2x32xf32>
    %cst_11 = arith.constant dense<0.000000e+00> : vector<2x32xf32>
    %15 = tpu.matmul %13, %14, %cst_11 {dimension_numbers = #tpu.dot_dimension_numbers<[1], [0], [0], [1], [0, 0, 1, 1], [], []>} : vector<2x2xf32>, vector<2x32xf32>, vector<2x32xf32> -> vector<2x32xf32>
    %16 = vector.extract_strided_slice %15 {offsets = [0, 0], sizes = [1, 32], strides = [1, 1]} : vector<2x32xf32> to vector<1x32xf32>
    %17 = vector.extract_strided_slice %15 {offsets = [1, 0], sizes = [1, 32], strides = [1, 1]} : vector<2x32xf32> to vector<1x32xf32>
    %18 = arith.addf %16, %17 : vector<1x32xf32>
    %cst_12 = arith.constant 0.000000e+00 : f32
    %19 = vector.broadcast %cst_12 : f32 to vector<1x32xf32>
    %20 = arith.subf %19, %18 : vector<1x32xf32>
    %21 = math.exp %20 : vector<1x32xf32>
    %cst_13 = arith.constant 1.000000e+00 : f32
    %22 = vector.broadcast %cst_13 : f32 to vector<1x32xf32>
    %23 = arith.addf %22, %21 : vector<1x32xf32>
    %cst_14 = arith.constant 1.000000e+00 : f32
    %24 = vector.broadcast %cst_14 : f32 to vector<1x32xf32>
    %25 = arith.divf %24, %23 : vector<1x32xf32>
    %26 = vector.shape_cast %25 : vector<1x32xf32> to vector<1x1x32xf32>
    %27 = vector.broadcast %26 : vector<1x1x32xf32> to vector<8x8x32xf32>
    %28 = arith.mulf %1, %27 : vector<8x8x32xf32>
    %cst_15 = arith.constant dense<0.000000e+00> : vector<8x8xf32>
    %29 = vector.multi_reduction <add>, %28, %cst_15 [2] : vector<8x8x32xf32> to vector<8x8xf32>
    %cst_16 = arith.constant 3.200000e+01 : f32
    %30 = vector.broadcast %cst_16 : f32 to vector<8x8xf32>
    %31 = arith.divf %29, %30 : vector<8x8xf32>
    %cst_17 = arith.constant dense<0xFF800000> : vector<8x8xf32>
    %32 = vector.multi_reduction <maximumf>, %28, %cst_17 [2] : vector<8x8x32xf32> to vector<8x8xf32>
    %cst_18 = arith.constant 0.000000e+00 : f32
    %33 = vector.broadcast %cst_18 : f32 to vector<14x14xf32>
    %c0_19 = arith.constant 0 : index
    %c0_20 = arith.constant 0 : index
    %34 = vector.load %arg9[%c0_19, %c0_20] : memref<14x14xf32, #tpu.memory_space<vmem>>, vector<14x14xf32>
    tpu.vector_store %arg9[%c0_19, %c0_20], %33 {strides = array<i32>} : memref<14x14xf32, #tpu.memory_space<vmem>>, vector<14x14xf32>,
    %cst_21 = arith.constant 0.000000e+00 : f32
    %35 = vector.broadcast %cst_21 : f32 to vector<14x14xf32>
    %c0_22 = arith.constant 0 : index
    %c0_23 = arith.constant 0 : index
    %36 = vector.load %arg10[%c0_22, %c0_23] : memref<14x14xf32, #tpu.memory_space<vmem>>, vector<14x14xf32>
    tpu.vector_store %arg10[%c0_22, %c0_23], %35 {strides = array<i32>} : memref<14x14xf32, #tpu.memory_space<vmem>>, vector<14x14xf32>,
    %c3 = arith.constant 3 : index
    %c3_24 = arith.constant 3 : index
    %37 = vector.load %arg9[%c3, %c3_24] : memref<14x14xf32, #tpu.memory_space<vmem>>, vector<8x8xf32>
    tpu.vector_store %arg9[%c3, %c3_24], %31 {strides = array<i32>} : memref<14x14xf32, #tpu.memory_space<vmem>>, vector<8x8xf32>,
    %c3_25 = arith.constant 3 : index
    %c3_26 = arith.constant 3 : index
    %38 = vector.load %arg10[%c3_25, %c3_26] : memref<14x14xf32, #tpu.memory_space<vmem>>, vector<8x8xf32>
    tpu.vector_store %arg10[%c3_25, %c3_26], %32 {strides = array<i32>} : memref<14x14xf32, #tpu.memory_space<vmem>>, vector<8x8xf32>,
    %cst_27 = arith.constant 0.000000e+00 : f32
    %39 = vector.broadcast %cst_27 : f32 to vector<8x8xf32>
    %c0_28 = arith.constant 0 : index
    %c0_29 = arith.constant 0 : index
    %40 = vector.load %arg9[%c0_28, %c0_29] : memref<14x14xf32, #tpu.memory_space<vmem>>, vector<8x8xf32>
    %c0_30 = arith.constant 0 : index
    %41 = memref.load %arg4[%c0_30] : memref<98xf32, #tpu.memory_space<smem>>
    %42 = vector.broadcast %41 : f32 to vector<8x8xf32>
    %43 = arith.mulf %40, %42 : vector<8x8xf32>
    %44 = arith.addf %39, %43 : vector<8x8xf32>
    %c0_31 = arith.constant 0 : index
    %c0_32 = arith.constant 0 : index
    %45 = vector.load %arg10[%c0_31, %c0_32] : memref<14x14xf32, #tpu.memory_space<vmem>>, vector<8x8xf32>
    %c1 = arith.constant 1 : index
    %46 = memref.load %arg4[%c1] : memref<98xf32, #tpu.memory_space<smem>>
    %47 = vector.broadcast %46 : f32 to vector<8x8xf32>
    %48 = arith.mulf %45, %47 : vector<8x8xf32>
    %49 = arith.addf %44, %48 : vector<8x8xf32>
    %c0_33 = arith.constant 0 : index
    %c1_34 = arith.constant 1 : index
    %50 = vector.load %arg9[%c0_33, %c1_34] : memref<14x14xf32, #tpu.memory_space<vmem>>, vector<8x8xf32>
    %c2 = arith.constant 2 : index
    %51 = memref.load %arg4[%c2] : memref<98xf32, #tpu.memory_space<smem>>
    %52 = vector.broadcast %51 : f32 to vector<8x8xf32>
    %53 = arith.mulf %50, %52 : vector<8x8xf32>
    %54 = arith.addf %49, %53 : vector<8x8xf32>
    %c0_35 = arith.constant 0 : index
    %c1_36 = arith.constant 1 : index
    %55 = vector.load %arg10[%c0_35, %c1_36] : memref<14x14xf32, #tpu.memory_space<vmem>>, vector<8x8xf32>
    %c3_37 = arith.constant 3 : index
    %56 = memref.load %arg4[%c3_37] : memref<98xf32, #tpu.memory_space<smem>>
    %57 = vector.broadcast %56 : f32 to vector<8x8xf32>
    %58 = arith.mulf %55, %57 : vector<8x8xf32>
    %59 = arith.addf %54, %58 : vector<8x8xf32>
    %c0_38 = arith.constant 0 : index
    %c2_39 = arith.constant 2 : index
    %60 = vector.load %arg9[%c0_38, %c2_39] : memref<14x14xf32, #tpu.memory_space<vmem>>, vector<8x8xf32>
    %c4 = arith.constant 4 : index
    %61 = memref.load %arg4[%c4] : memref<98xf32, #tpu.memory_space<smem>>
    %62 = vector.broadcast %61 : f32 to vector<8x8xf32>
    %63 = arith.mulf %60, %62 : vector<8x8xf32>
    %64 = arith.addf %59, %63 : vector<8x8xf32>
    %c0_40 = arith.constant 0 : index
    %c2_41 = arith.constant 2 : index
    %65 = vector.load %arg10[%c0_40, %c2_41] : memref<14x14xf32, #tpu.memory_space<vmem>>, vector<8x8xf32>
    %c5 = arith.constant 5 : index
    %66 = memref.load %arg4[%c5] : memref<98xf32, #tpu.memory_space<smem>>
    %67 = vector.broadcast %66 : f32 to vector<8x8xf32>
    %68 = arith.mulf %65, %67 : vector<8x8xf32>
    %69 = arith.addf %64, %68 : vector<8x8xf32>
    %c0_42 = arith.constant 0 : index
    %c3_43 = arith.constant 3 : index
    %70 = vector.load %arg9[%c0_42, %c3_43] : memref<14x14xf32, #tpu.memory_space<vmem>>, vector<8x8xf32>
    %c6 = arith.constant 6 : index
    %71 = memref.load %arg4[%c6] : memref<98xf32, #tpu.memory_space<smem>>
    %72 = vector.broadcast %71 : f32 to vector<8x8xf32>
    %73 = arith.mulf %70, %72 : vector<8x8xf32>
    %74 = arith.addf %69, %73 : vector<8x8xf32>
    %c0_44 = arith.constant 0 : index
    %c3_45 = arith.constant 3 : index
    %75 = vector.load %arg10[%c0_44, %c3_45] : memref<14x14xf32, #tpu.memory_space<vmem>>, vector<8x8xf32>
    %c7 = arith.constant 7 : index
    %76 = memref.load %arg4[%c7] : memref<98xf32, #tpu.memory_space<smem>>
    %77 = vector.broadcast %76 : f32 to vector<8x8xf32>
    %78 = arith.mulf %75, %77 : vector<8x8xf32>
    %79 = arith.addf %74, %78 : vector<8x8xf32>
    %c0_46 = arith.constant 0 : index
    %c4_47 = arith.constant 4 : index
    %80 = vector.load %arg9[%c0_46, %c4_47] : memref<14x14xf32, #tpu.memory_space<vmem>>, vector<8x8xf32>
    %c8 = arith.constant 8 : index
    %81 = memref.load %arg4[%c8] : memref<98xf32, #tpu.memory_space<smem>>
    %82 = vector.broadcast %81 : f32 to vector<8x8xf32>
    %83 = arith.mulf %80, %82 : vector<8x8xf32>
    %84 = arith.addf %79, %83 : vector<8x8xf32>
    %c0_48 = arith.constant 0 : index
    %c4_49 = arith.constant 4 : index
    %85 = vector.load %arg10[%c0_48, %c4_49] : memref<14x14xf32, #tpu.memory_space<vmem>>, vector<8x8xf32>
    %c9 = arith.constant 9 : index
    %86 = memref.load %arg4[%c9] : memref<98xf32, #tpu.memory_space<smem>>
    %87 = vector.broadcast %86 : f32 to vector<8x8xf32>
    %88 = arith.mulf %85, %87 : vector<8x8xf32>
    %89 = arith.addf %84, %88 : vector<8x8xf32>
    %c0_50 = arith.constant 0 : index
    %c5_51 = arith.constant 5 : index
    %90 = vector.load %arg9[%c0_50, %c5_51] : memref<14x14xf32, #tpu.memory_space<vmem>>, vector<8x8xf32>
    %c10 = arith.constant 10 : index
    %91 = memref.load %arg4[%c10] : memref<98xf32, #tpu.memory_space<smem>>
    %92 = vector.broadcast %91 : f32 to vector<8x8xf32>
    %93 = arith.mulf %90, %92 : vector<8x8xf32>
    %94 = arith.addf %89, %93 : vector<8x8xf32>
    %c0_52 = arith.constant 0 : index
    %c5_53 = arith.constant 5 : index
    %95 = vector.load %arg10[%c0_52, %c5_53] : memref<14x14xf32, #tpu.memory_space<vmem>>, vector<8x8xf32>
    %c11 = arith.constant 11 : index
    %96 = memref.load %arg4[%c11] : memref<98xf32, #tpu.memory_space<smem>>
    %97 = vector.broadcast %96 : f32 to vector<8x8xf32>
    %98 = arith.mulf %95, %97 : vector<8x8xf32>
    %99 = arith.addf %94, %98 : vector<8x8xf32>
    %c0_54 = arith.constant 0 : index
    %c6_55 = arith.constant 6 : index
    %100 = vector.load %arg9[%c0_54, %c6_55] : memref<14x14xf32, #tpu.memory_space<vmem>>, vector<8x8xf32>
    %c12 = arith.constant 12 : index
    %101 = memref.load %arg4[%c12] : memref<98xf32, #tpu.memory_space<smem>>
    %102 = vector.broadcast %101 : f32 to vector<8x8xf32>
    %103 = arith.mulf %100, %102 : vector<8x8xf32>
    %104 = arith.addf %99, %103 : vector<8x8xf32>
    %c0_56 = arith.constant 0 : index
    %c6_57 = arith.constant 6 : index
    %105 = vector.load %arg10[%c0_56, %c6_57] : memref<14x14xf32, #tpu.memory_space<vmem>>, vector<8x8xf32>
    %c13 = arith.constant 13 : index
    %106 = memref.load %arg4[%c13] : memref<98xf32, #tpu.memory_space<smem>>
    %107 = vector.broadcast %106 : f32 to vector<8x8xf32>
    %108 = arith.mulf %105, %107 : vector<8x8xf32>
    %109 = arith.addf %104, %108 : vector<8x8xf32>
    %c1_58 = arith.constant 1 : index
    %c0_59 = arith.constant 0 : index
    %110 = vector.load %arg9[%c1_58, %c0_59] : memref<14x14xf32, #tpu.memory_space<vmem>>, vector<8x8xf32>
    %c14 = arith.constant 14 : index
    %111 = memref.load %arg4[%c14] : memref<98xf32, #tpu.memory_space<smem>>
    %112 = vector.broadcast %111 : f32 to vector<8x8xf32>
    %113 = arith.mulf %110, %112 : vector<8x8xf32>
    %114 = arith.addf %109, %113 : vector<8x8xf32>
    %c1_60 = arith.constant 1 : index
    %c0_61 = arith.constant 0 : index
    %115 = vector.load %arg10[%c1_60, %c0_61] : memref<14x14xf32, #tpu.memory_space<vmem>>, vector<8x8xf32>
    %c15 = arith.constant 15 : index
    %116 = memref.load %arg4[%c15] : memref<98xf32, #tpu.memory_space<smem>>
    %117 = vector.broadcast %116 : f32 to vector<8x8xf32>
    %118 = arith.mulf %115, %117 : vector<8x8xf32>
    %119 = arith.addf %114, %118 : vector<8x8xf32>
    %c1_62 = arith.constant 1 : index
    %c1_63 = arith.constant 1 : index
    %120 = vector.load %arg9[%c1_62, %c1_63] : memref<14x14xf32, #tpu.memory_space<vmem>>, vector<8x8xf32>
    %c16 = arith.constant 16 : index
    %121 = memref.load %arg4[%c16] : memref<98xf32, #tpu.memory_space<smem>>
    %122 = vector.broadcast %121 : f32 to vector<8x8xf32>
    %123 = arith.mulf %120, %122 : vector<8x8xf32>
    %124 = arith.addf %119, %123 : vector<8x8xf32>
    %c1_64 = arith.constant 1 : index
    %c1_65 = arith.constant 1 : index
    %125 = vector.load %arg10[%c1_64, %c1_65] : memref<14x14xf32, #tpu.memory_space<vmem>>, vector<8x8xf32>
    %c17 = arith.constant 17 : index
    %126 = memref.load %arg4[%c17] : memref<98xf32, #tpu.memory_space<smem>>
    %127 = vector.broadcast %126 : f32 to vector<8x8xf32>
    %128 = arith.mulf %125, %127 : vector<8x8xf32>
    %129 = arith.addf %124, %128 : vector<8x8xf32>
    %c1_66 = arith.constant 1 : index
    %c2_67 = arith.constant 2 : index
    %130 = vector.load %arg9[%c1_66, %c2_67] : memref<14x14xf32, #tpu.memory_space<vmem>>, vector<8x8xf32>
    %c18 = arith.constant 18 : index
    %131 = memref.load %arg4[%c18] : memref<98xf32, #tpu.memory_space<smem>>
    %132 = vector.broadcast %131 : f32 to vector<8x8xf32>
    %133 = arith.mulf %130, %132 : vector<8x8xf32>
    %134 = arith.addf %129, %133 : vector<8x8xf32>
    %c1_68 = arith.constant 1 : index
    %c2_69 = arith.constant 2 : index
    %135 = vector.load %arg10[%c1_68, %c2_69] : memref<14x14xf32, #tpu.memory_space<vmem>>, vector<8x8xf32>
    %c19 = arith.constant 19 : index
    %136 = memref.load %arg4[%c19] : memref<98xf32, #tpu.memory_space<smem>>
    %137 = vector.broadcast %136 : f32 to vector<8x8xf32>
    %138 = arith.mulf %135, %137 : vector<8x8xf32>
    %139 = arith.addf %134, %138 : vector<8x8xf32>
    %c1_70 = arith.constant 1 : index
    %c3_71 = arith.constant 3 : index
    %140 = vector.load %arg9[%c1_70, %c3_71] : memref<14x14xf32, #tpu.memory_space<vmem>>, vector<8x8xf32>
    %c20 = arith.constant 20 : index
    %141 = memref.load %arg4[%c20] : memref<98xf32, #tpu.memory_space<smem>>
    %142 = vector.broadcast %141 : f32 to vector<8x8xf32>
    %143 = arith.mulf %140, %142 : vector<8x8xf32>
    %144 = arith.addf %139, %143 : vector<8x8xf32>
    %c1_72 = arith.constant 1 : index
    %c3_73 = arith.constant 3 : index
    %145 = vector.load %arg10[%c1_72, %c3_73] : memref<14x14xf32, #tpu.memory_space<vmem>>, vector<8x8xf32>
    %c21 = arith.constant 21 : index
    %146 = memref.load %arg4[%c21] : memref<98xf32, #tpu.memory_space<smem>>
    %147 = vector.broadcast %146 : f32 to vector<8x8xf32>
    %148 = arith.mulf %145, %147 : vector<8x8xf32>
    %149 = arith.addf %144, %148 : vector<8x8xf32>
    %c1_74 = arith.constant 1 : index
    %c4_75 = arith.constant 4 : index
    %150 = vector.load %arg9[%c1_74, %c4_75] : memref<14x14xf32, #tpu.memory_space<vmem>>, vector<8x8xf32>
    %c22 = arith.constant 22 : index
    %151 = memref.load %arg4[%c22] : memref<98xf32, #tpu.memory_space<smem>>
    %152 = vector.broadcast %151 : f32 to vector<8x8xf32>
    %153 = arith.mulf %150, %152 : vector<8x8xf32>
    %154 = arith.addf %149, %153 : vector<8x8xf32>
    %c1_76 = arith.constant 1 : index
    %c4_77 = arith.constant 4 : index
    %155 = vector.load %arg10[%c1_76, %c4_77] : memref<14x14xf32, #tpu.memory_space<vmem>>, vector<8x8xf32>
    %c23 = arith.constant 23 : index
    %156 = memref.load %arg4[%c23] : memref<98xf32, #tpu.memory_space<smem>>
    %157 = vector.broadcast %156 : f32 to vector<8x8xf32>
    %158 = arith.mulf %155, %157 : vector<8x8xf32>
    %159 = arith.addf %154, %158 : vector<8x8xf32>
    %c1_78 = arith.constant 1 : index
    %c5_79 = arith.constant 5 : index
    %160 = vector.load %arg9[%c1_78, %c5_79] : memref<14x14xf32, #tpu.memory_space<vmem>>, vector<8x8xf32>
    %c24 = arith.constant 24 : index
    %161 = memref.load %arg4[%c24] : memref<98xf32, #tpu.memory_space<smem>>
    %162 = vector.broadcast %161 : f32 to vector<8x8xf32>
    %163 = arith.mulf %160, %162 : vector<8x8xf32>
    %164 = arith.addf %159, %163 : vector<8x8xf32>
    %c1_80 = arith.constant 1 : index
    %c5_81 = arith.constant 5 : index
    %165 = vector.load %arg10[%c1_80, %c5_81] : memref<14x14xf32, #tpu.memory_space<vmem>>, vector<8x8xf32>
    %c25 = arith.constant 25 : index
    %166 = memref.load %arg4[%c25] : memref<98xf32, #tpu.memory_space<smem>>
    %167 = vector.broadcast %166 : f32 to vector<8x8xf32>
    %168 = arith.mulf %165, %167 : vector<8x8xf32>
    %169 = arith.addf %164, %168 : vector<8x8xf32>
    %c1_82 = arith.constant 1 : index
    %c6_83 = arith.constant 6 : index
    %170 = vector.load %arg9[%c1_82, %c6_83] : memref<14x14xf32, #tpu.memory_space<vmem>>, vector<8x8xf32>
    %c26 = arith.constant 26 : index
    %171 = memref.load %arg4[%c26] : memref<98xf32, #tpu.memory_space<smem>>
    %172 = vector.broadcast %171 : f32 to vector<8x8xf32>
    %173 = arith.mulf %170, %172 : vector<8x8xf32>
    %174 = arith.addf %169, %173 : vector<8x8xf32>
    %c1_84 = arith.constant 1 : index
    %c6_85 = arith.constant 6 : index
    %175 = vector.load %arg10[%c1_84, %c6_85] : memref<14x14xf32, #tpu.memory_space<vmem>>, vector<8x8xf32>
    %c27 = arith.constant 27 : index
    %176 = memref.load %arg4[%c27] : memref<98xf32, #tpu.memory_space<smem>>
    %177 = vector.broadcast %176 : f32 to vector<8x8xf32>
    %178 = arith.mulf %175, %177 : vector<8x8xf32>
    %179 = arith.addf %174, %178 : vector<8x8xf32>
    %c2_86 = arith.constant 2 : index
    %c0_87 = arith.constant 0 : index
    %180 = vector.load %arg9[%c2_86, %c0_87] : memref<14x14xf32, #tpu.memory_space<vmem>>, vector<8x8xf32>
    %c28 = arith.constant 28 : index
    %181 = memref.load %arg4[%c28] : memref<98xf32, #tpu.memory_space<smem>>
    %182 = vector.broadcast %181 : f32 to vector<8x8xf32>
    %183 = arith.mulf %180, %182 : vector<8x8xf32>
    %184 = arith.addf %179, %183 : vector<8x8xf32>
    %c2_88 = arith.constant 2 : index
    %c0_89 = arith.constant 0 : index
    %185 = vector.load %arg10[%c2_88, %c0_89] : memref<14x14xf32, #tpu.memory_space<vmem>>, vector<8x8xf32>
    %c29 = arith.constant 29 : index
    %186 = memref.load %arg4[%c29] : memref<98xf32, #tpu.memory_space<smem>>
    %187 = vector.broadcast %186 : f32 to vector<8x8xf32>
    %188 = arith.mulf %185, %187 : vector<8x8xf32>
    %189 = arith.addf %184, %188 : vector<8x8xf32>
    %c2_90 = arith.constant 2 : index
    %c1_91 = arith.constant 1 : index
    %190 = vector.load %arg9[%c2_90, %c1_91] : memref<14x14xf32, #tpu.memory_space<vmem>>, vector<8x8xf32>
    %c30 = arith.constant 30 : index
    %191 = memref.load %arg4[%c30] : memref<98xf32, #tpu.memory_space<smem>>
    %192 = vector.broadcast %191 : f32 to vector<8x8xf32>
    %193 = arith.mulf %190, %192 : vector<8x8xf32>
    %194 = arith.addf %189, %193 : vector<8x8xf32>
    %c2_92 = arith.constant 2 : index
    %c1_93 = arith.constant 1 : index
    %195 = vector.load %arg10[%c2_92, %c1_93] : memref<14x14xf32, #tpu.memory_space<vmem>>, vector<8x8xf32>
    %c31 = arith.constant 31 : index
    %196 = memref.load %arg4[%c31] : memref<98xf32, #tpu.memory_space<smem>>
    %197 = vector.broadcast %196 : f32 to vector<8x8xf32>
    %198 = arith.mulf %195, %197 : vector<8x8xf32>
    %199 = arith.addf %194, %198 : vector<8x8xf32>
    %c2_94 = arith.constant 2 : index
    %c2_95 = arith.constant 2 : index
    %200 = vector.load %arg9[%c2_94, %c2_95] : memref<14x14xf32, #tpu.memory_space<vmem>>, vector<8x8xf32>
    %c32 = arith.constant 32 : index
    %201 = memref.load %arg4[%c32] : memref<98xf32, #tpu.memory_space<smem>>
    %202 = vector.broadcast %201 : f32 to vector<8x8xf32>
    %203 = arith.mulf %200, %202 : vector<8x8xf32>
    %204 = arith.addf %199, %203 : vector<8x8xf32>
    %c2_96 = arith.constant 2 : index
    %c2_97 = arith.constant 2 : index
    %205 = vector.load %arg10[%c2_96, %c2_97] : memref<14x14xf32, #tpu.memory_space<vmem>>, vector<8x8xf32>
    %c33 = arith.constant 33 : index
    %206 = memref.load %arg4[%c33] : memref<98xf32, #tpu.memory_space<smem>>
    %207 = vector.broadcast %206 : f32 to vector<8x8xf32>
    %208 = arith.mulf %205, %207 : vector<8x8xf32>
    %209 = arith.addf %204, %208 : vector<8x8xf32>
    %c2_98 = arith.constant 2 : index
    %c3_99 = arith.constant 3 : index
    %210 = vector.load %arg9[%c2_98, %c3_99] : memref<14x14xf32, #tpu.memory_space<vmem>>, vector<8x8xf32>
    %c34 = arith.constant 34 : index
    %211 = memref.load %arg4[%c34] : memref<98xf32, #tpu.memory_space<smem>>
    %212 = vector.broadcast %211 : f32 to vector<8x8xf32>
    %213 = arith.mulf %210, %212 : vector<8x8xf32>
    %214 = arith.addf %209, %213 : vector<8x8xf32>
    %c2_100 = arith.constant 2 : index
    %c3_101 = arith.constant 3 : index
    %215 = vector.load %arg10[%c2_100, %c3_101] : memref<14x14xf32, #tpu.memory_space<vmem>>, vector<8x8xf32>
    %c35 = arith.constant 35 : index
    %216 = memref.load %arg4[%c35] : memref<98xf32, #tpu.memory_space<smem>>
    %217 = vector.broadcast %216 : f32 to vector<8x8xf32>
    %218 = arith.mulf %215, %217 : vector<8x8xf32>
    %219 = arith.addf %214, %218 : vector<8x8xf32>
    %c2_102 = arith.constant 2 : index
    %c4_103 = arith.constant 4 : index
    %220 = vector.load %arg9[%c2_102, %c4_103] : memref<14x14xf32, #tpu.memory_space<vmem>>, vector<8x8xf32>
    %c36 = arith.constant 36 : index
    %221 = memref.load %arg4[%c36] : memref<98xf32, #tpu.memory_space<smem>>
    %222 = vector.broadcast %221 : f32 to vector<8x8xf32>
    %223 = arith.mulf %220, %222 : vector<8x8xf32>
    %224 = arith.addf %219, %223 : vector<8x8xf32>
    %c2_104 = arith.constant 2 : index
    %c4_105 = arith.constant 4 : index
    %225 = vector.load %arg10[%c2_104, %c4_105] : memref<14x14xf32, #tpu.memory_space<vmem>>, vector<8x8xf32>
    %c37 = arith.constant 37 : index
    %226 = memref.load %arg4[%c37] : memref<98xf32, #tpu.memory_space<smem>>
    %227 = vector.broadcast %226 : f32 to vector<8x8xf32>
    %228 = arith.mulf %225, %227 : vector<8x8xf32>
    %229 = arith.addf %224, %228 : vector<8x8xf32>
    %c2_106 = arith.constant 2 : index
    %c5_107 = arith.constant 5 : index
    %230 = vector.load %arg9[%c2_106, %c5_107] : memref<14x14xf32, #tpu.memory_space<vmem>>, vector<8x8xf32>
    %c38 = arith.constant 38 : index
    %231 = memref.load %arg4[%c38] : memref<98xf32, #tpu.memory_space<smem>>
    %232 = vector.broadcast %231 : f32 to vector<8x8xf32>
    %233 = arith.mulf %230, %232 : vector<8x8xf32>
    %234 = arith.addf %229, %233 : vector<8x8xf32>
    %c2_108 = arith.constant 2 : index
    %c5_109 = arith.constant 5 : index
    %235 = vector.load %arg10[%c2_108, %c5_109] : memref<14x14xf32, #tpu.memory_space<vmem>>, vector<8x8xf32>
    %c39 = arith.constant 39 : index
    %236 = memref.load %arg4[%c39] : memref<98xf32, #tpu.memory_space<smem>>
    %237 = vector.broadcast %236 : f32 to vector<8x8xf32>
    %238 = arith.mulf %235, %237 : vector<8x8xf32>
    %239 = arith.addf %234, %238 : vector<8x8xf32>
    %c2_110 = arith.constant 2 : index
    %c6_111 = arith.constant 6 : index
    %240 = vector.load %arg9[%c2_110, %c6_111] : memref<14x14xf32, #tpu.memory_space<vmem>>, vector<8x8xf32>
    %c40 = arith.constant 40 : index
    %241 = memref.load %arg4[%c40] : memref<98xf32, #tpu.memory_space<smem>>
    %242 = vector.broadcast %241 : f32 to vector<8x8xf32>
    %243 = arith.mulf %240, %242 : vector<8x8xf32>
    %244 = arith.addf %239, %243 : vector<8x8xf32>
    %c2_112 = arith.constant 2 : index
    %c6_113 = arith.constant 6 : index
    %245 = vector.load %arg10[%c2_112, %c6_113] : memref<14x14xf32, #tpu.memory_space<vmem>>, vector<8x8xf32>
    %c41 = arith.constant 41 : index
    %246 = memref.load %arg4[%c41] : memref<98xf32, #tpu.memory_space<smem>>
    %247 = vector.broadcast %246 : f32 to vector<8x8xf32>
    %248 = arith.mulf %245, %247 : vector<8x8xf32>
    %249 = arith.addf %244, %248 : vector<8x8xf32>
    %c3_114 = arith.constant 3 : index
    %c0_115 = arith.constant 0 : index
    %250 = vector.load %arg9[%c3_114, %c0_115] : memref<14x14xf32, #tpu.memory_space<vmem>>, vector<8x8xf32>
    %c42 = arith.constant 42 : index
    %251 = memref.load %arg4[%c42] : memref<98xf32, #tpu.memory_space<smem>>
    %252 = vector.broadcast %251 : f32 to vector<8x8xf32>
    %253 = arith.mulf %250, %252 : vector<8x8xf32>
    %254 = arith.addf %249, %253 : vector<8x8xf32>
    %c3_116 = arith.constant 3 : index
    %c0_117 = arith.constant 0 : index
    %255 = vector.load %arg10[%c3_116, %c0_117] : memref<14x14xf32, #tpu.memory_space<vmem>>, vector<8x8xf32>
    %c43 = arith.constant 43 : index
    %256 = memref.load %arg4[%c43] : memref<98xf32, #tpu.memory_space<smem>>
    %257 = vector.broadcast %256 : f32 to vector<8x8xf32>
    %258 = arith.mulf %255, %257 : vector<8x8xf32>
    %259 = arith.addf %254, %258 : vector<8x8xf32>
    %c3_118 = arith.constant 3 : index
    %c1_119 = arith.constant 1 : index
    %260 = vector.load %arg9[%c3_118, %c1_119] : memref<14x14xf32, #tpu.memory_space<vmem>>, vector<8x8xf32>
    %c44 = arith.constant 44 : index
    %261 = memref.load %arg4[%c44] : memref<98xf32, #tpu.memory_space<smem>>
    %262 = vector.broadcast %261 : f32 to vector<8x8xf32>
    %263 = arith.mulf %260, %262 : vector<8x8xf32>
    %264 = arith.addf %259, %263 : vector<8x8xf32>
    %c3_120 = arith.constant 3 : index
    %c1_121 = arith.constant 1 : index
    %265 = vector.load %arg10[%c3_120, %c1_121] : memref<14x14xf32, #tpu.memory_space<vmem>>, vector<8x8xf32>
    %c45 = arith.constant 45 : index
    %266 = memref.load %arg4[%c45] : memref<98xf32, #tpu.memory_space<smem>>
    %267 = vector.broadcast %266 : f32 to vector<8x8xf32>
    %268 = arith.mulf %265, %267 : vector<8x8xf32>
    %269 = arith.addf %264, %268 : vector<8x8xf32>
    %c3_122 = arith.constant 3 : index
    %c2_123 = arith.constant 2 : index
    %270 = vector.load %arg9[%c3_122, %c2_123] : memref<14x14xf32, #tpu.memory_space<vmem>>, vector<8x8xf32>
    %c46 = arith.constant 46 : index
    %271 = memref.load %arg4[%c46] : memref<98xf32, #tpu.memory_space<smem>>
    %272 = vector.broadcast %271 : f32 to vector<8x8xf32>
    %273 = arith.mulf %270, %272 : vector<8x8xf32>
    %274 = arith.addf %269, %273 : vector<8x8xf32>
    %c3_124 = arith.constant 3 : index
    %c2_125 = arith.constant 2 : index
    %275 = vector.load %arg10[%c3_124, %c2_125] : memref<14x14xf32, #tpu.memory_space<vmem>>, vector<8x8xf32>
    %c47 = arith.constant 47 : index
    %276 = memref.load %arg4[%c47] : memref<98xf32, #tpu.memory_space<smem>>
    %277 = vector.broadcast %276 : f32 to vector<8x8xf32>
    %278 = arith.mulf %275, %277 : vector<8x8xf32>
    %279 = arith.addf %274, %278 : vector<8x8xf32>
    %c3_126 = arith.constant 3 : index
    %c3_127 = arith.constant 3 : index
    %280 = vector.load %arg9[%c3_126, %c3_127] : memref<14x14xf32, #tpu.memory_space<vmem>>, vector<8x8xf32>
    %c48 = arith.constant 48 : index
    %281 = memref.load %arg4[%c48] : memref<98xf32, #tpu.memory_space<smem>>
    %282 = vector.broadcast %281 : f32 to vector<8x8xf32>
    %283 = arith.mulf %280, %282 : vector<8x8xf32>
    %284 = arith.addf %279, %283 : vector<8x8xf32>
    %c3_128 = arith.constant 3 : index
    %c3_129 = arith.constant 3 : index
    %285 = vector.load %arg10[%c3_128, %c3_129] : memref<14x14xf32, #tpu.memory_space<vmem>>, vector<8x8xf32>
    %c49 = arith.constant 49 : index
    %286 = memref.load %arg4[%c49] : memref<98xf32, #tpu.memory_space<smem>>
    %287 = vector.broadcast %286 : f32 to vector<8x8xf32>
    %288 = arith.mulf %285, %287 : vector<8x8xf32>
    %289 = arith.addf %284, %288 : vector<8x8xf32>
    %c3_130 = arith.constant 3 : index
    %c4_131 = arith.constant 4 : index
    %290 = vector.load %arg9[%c3_130, %c4_131] : memref<14x14xf32, #tpu.memory_space<vmem>>, vector<8x8xf32>
    %c50 = arith.constant 50 : index
    %291 = memref.load %arg4[%c50] : memref<98xf32, #tpu.memory_space<smem>>
    %292 = vector.broadcast %291 : f32 to vector<8x8xf32>
    %293 = arith.mulf %290, %292 : vector<8x8xf32>
    %294 = arith.addf %289, %293 : vector<8x8xf32>
    %c3_132 = arith.constant 3 : index
    %c4_133 = arith.constant 4 : index
    %295 = vector.load %arg10[%c3_132, %c4_133] : memref<14x14xf32, #tpu.memory_space<vmem>>, vector<8x8xf32>
    %c51 = arith.constant 51 : index
    %296 = memref.load %arg4[%c51] : memref<98xf32, #tpu.memory_space<smem>>
    %297 = vector.broadcast %296 : f32 to vector<8x8xf32>
    %298 = arith.mulf %295, %297 : vector<8x8xf32>
    %299 = arith.addf %294, %298 : vector<8x8xf32>
    %c3_134 = arith.constant 3 : index
    %c5_135 = arith.constant 5 : index
    %300 = vector.load %arg9[%c3_134, %c5_135] : memref<14x14xf32, #tpu.memory_space<vmem>>, vector<8x8xf32>
    %c52 = arith.constant 52 : index
    %301 = memref.load %arg4[%c52] : memref<98xf32, #tpu.memory_space<smem>>
    %302 = vector.broadcast %301 : f32 to vector<8x8xf32>
    %303 = arith.mulf %300, %302 : vector<8x8xf32>
    %304 = arith.addf %299, %303 : vector<8x8xf32>
    %c3_136 = arith.constant 3 : index
    %c5_137 = arith.constant 5 : index
    %305 = vector.load %arg10[%c3_136, %c5_137] : memref<14x14xf32, #tpu.memory_space<vmem>>, vector<8x8xf32>
    %c53 = arith.constant 53 : index
    %306 = memref.load %arg4[%c53] : memref<98xf32, #tpu.memory_space<smem>>
    %307 = vector.broadcast %306 : f32 to vector<8x8xf32>
    %308 = arith.mulf %305, %307 : vector<8x8xf32>
    %309 = arith.addf %304, %308 : vector<8x8xf32>
    %c3_138 = arith.constant 3 : index
    %c6_139 = arith.constant 6 : index
    %310 = vector.load %arg9[%c3_138, %c6_139] : memref<14x14xf32, #tpu.memory_space<vmem>>, vector<8x8xf32>
    %c54 = arith.constant 54 : index
    %311 = memref.load %arg4[%c54] : memref<98xf32, #tpu.memory_space<smem>>
    %312 = vector.broadcast %311 : f32 to vector<8x8xf32>
    %313 = arith.mulf %310, %312 : vector<8x8xf32>
    %314 = arith.addf %309, %313 : vector<8x8xf32>
    %c3_140 = arith.constant 3 : index
    %c6_141 = arith.constant 6 : index
    %315 = vector.load %arg10[%c3_140, %c6_141] : memref<14x14xf32, #tpu.memory_space<vmem>>, vector<8x8xf32>
    %c55 = arith.constant 55 : index
    %316 = memref.load %arg4[%c55] : memref<98xf32, #tpu.memory_space<smem>>
    %317 = vector.broadcast %316 : f32 to vector<8x8xf32>
    %318 = arith.mulf %315, %317 : vector<8x8xf32>
    %319 = arith.addf %314, %318 : vector<8x8xf32>
    %c4_142 = arith.constant 4 : index
    %c0_143 = arith.constant 0 : index
    %320 = vector.load %arg9[%c4_142, %c0_143] : memref<14x14xf32, #tpu.memory_space<vmem>>, vector<8x8xf32>
    %c56 = arith.constant 56 : index
    %321 = memref.load %arg4[%c56] : memref<98xf32, #tpu.memory_space<smem>>
    %322 = vector.broadcast %321 : f32 to vector<8x8xf32>
    %323 = arith.mulf %320, %322 : vector<8x8xf32>
    %324 = arith.addf %319, %323 : vector<8x8xf32>
    %c4_144 = arith.constant 4 : index
    %c0_145 = arith.constant 0 : index
    %325 = vector.load %arg10[%c4_144, %c0_145] : memref<14x14xf32, #tpu.memory_space<vmem>>, vector<8x8xf32>
    %c57 = arith.constant 57 : index
    %326 = memref.load %arg4[%c57] : memref<98xf32, #tpu.memory_space<smem>>
    %327 = vector.broadcast %326 : f32 to vector<8x8xf32>
    %328 = arith.mulf %325, %327 : vector<8x8xf32>
    %329 = arith.addf %324, %328 : vector<8x8xf32>
    %c4_146 = arith.constant 4 : index
    %c1_147 = arith.constant 1 : index
    %330 = vector.load %arg9[%c4_146, %c1_147] : memref<14x14xf32, #tpu.memory_space<vmem>>, vector<8x8xf32>
    %c58 = arith.constant 58 : index
    %331 = memref.load %arg4[%c58] : memref<98xf32, #tpu.memory_space<smem>>
    %332 = vector.broadcast %331 : f32 to vector<8x8xf32>
    %333 = arith.mulf %330, %332 : vector<8x8xf32>
    %334 = arith.addf %329, %333 : vector<8x8xf32>
    %c4_148 = arith.constant 4 : index
    %c1_149 = arith.constant 1 : index
    %335 = vector.load %arg10[%c4_148, %c1_149] : memref<14x14xf32, #tpu.memory_space<vmem>>, vector<8x8xf32>
    %c59 = arith.constant 59 : index
    %336 = memref.load %arg4[%c59] : memref<98xf32, #tpu.memory_space<smem>>
    %337 = vector.broadcast %336 : f32 to vector<8x8xf32>
    %338 = arith.mulf %335, %337 : vector<8x8xf32>
    %339 = arith.addf %334, %338 : vector<8x8xf32>
    %c4_150 = arith.constant 4 : index
    %c2_151 = arith.constant 2 : index
    %340 = vector.load %arg9[%c4_150, %c2_151] : memref<14x14xf32, #tpu.memory_space<vmem>>, vector<8x8xf32>
    %c60 = arith.constant 60 : index
    %341 = memref.load %arg4[%c60] : memref<98xf32, #tpu.memory_space<smem>>
    %342 = vector.broadcast %341 : f32 to vector<8x8xf32>
    %343 = arith.mulf %340, %342 : vector<8x8xf32>
    %344 = arith.addf %339, %343 : vector<8x8xf32>
    %c4_152 = arith.constant 4 : index
    %c2_153 = arith.constant 2 : index
    %345 = vector.load %arg10[%c4_152, %c2_153] : memref<14x14xf32, #tpu.memory_space<vmem>>, vector<8x8xf32>
    %c61 = arith.constant 61 : index
    %346 = memref.load %arg4[%c61] : memref<98xf32, #tpu.memory_space<smem>>
    %347 = vector.broadcast %346 : f32 to vector<8x8xf32>
    %348 = arith.mulf %345, %347 : vector<8x8xf32>
    %349 = arith.addf %344, %348 : vector<8x8xf32>
    %c4_154 = arith.constant 4 : index
    %c3_155 = arith.constant 3 : index
    %350 = vector.load %arg9[%c4_154, %c3_155] : memref<14x14xf32, #tpu.memory_space<vmem>>, vector<8x8xf32>
    %c62 = arith.constant 62 : index
    %351 = memref.load %arg4[%c62] : memref<98xf32, #tpu.memory_space<smem>>
    %352 = vector.broadcast %351 : f32 to vector<8x8xf32>
    %353 = arith.mulf %350, %352 : vector<8x8xf32>
    %354 = arith.addf %349, %353 : vector<8x8xf32>
    %c4_156 = arith.constant 4 : index
    %c3_157 = arith.constant 3 : index
    %355 = vector.load %arg10[%c4_156, %c3_157] : memref<14x14xf32, #tpu.memory_space<vmem>>, vector<8x8xf32>
    %c63 = arith.constant 63 : index
    %356 = memref.load %arg4[%c63] : memref<98xf32, #tpu.memory_space<smem>>
    %357 = vector.broadcast %356 : f32 to vector<8x8xf32>
    %358 = arith.mulf %355, %357 : vector<8x8xf32>
    %359 = arith.addf %354, %358 : vector<8x8xf32>
    %c4_158 = arith.constant 4 : index
    %c4_159 = arith.constant 4 : index
    %360 = vector.load %arg9[%c4_158, %c4_159] : memref<14x14xf32, #tpu.memory_space<vmem>>, vector<8x8xf32>
    %c64 = arith.constant 64 : index
    %361 = memref.load %arg4[%c64] : memref<98xf32, #tpu.memory_space<smem>>
    %362 = vector.broadcast %361 : f32 to vector<8x8xf32>
    %363 = arith.mulf %360, %362 : vector<8x8xf32>
    %364 = arith.addf %359, %363 : vector<8x8xf32>
    %c4_160 = arith.constant 4 : index
    %c4_161 = arith.constant 4 : index
    %365 = vector.load %arg10[%c4_160, %c4_161] : memref<14x14xf32, #tpu.memory_space<vmem>>, vector<8x8xf32>
    %c65 = arith.constant 65 : index
    %366 = memref.load %arg4[%c65] : memref<98xf32, #tpu.memory_space<smem>>
    %367 = vector.broadcast %366 : f32 to vector<8x8xf32>
    %368 = arith.mulf %365, %367 : vector<8x8xf32>
    %369 = arith.addf %364, %368 : vector<8x8xf32>
    %c4_162 = arith.constant 4 : index
    %c5_163 = arith.constant 5 : index
    %370 = vector.load %arg9[%c4_162, %c5_163] : memref<14x14xf32, #tpu.memory_space<vmem>>, vector<8x8xf32>
    %c66 = arith.constant 66 : index
    %371 = memref.load %arg4[%c66] : memref<98xf32, #tpu.memory_space<smem>>
    %372 = vector.broadcast %371 : f32 to vector<8x8xf32>
    %373 = arith.mulf %370, %372 : vector<8x8xf32>
    %374 = arith.addf %369, %373 : vector<8x8xf32>
    %c4_164 = arith.constant 4 : index
    %c5_165 = arith.constant 5 : index
    %375 = vector.load %arg10[%c4_164, %c5_165] : memref<14x14xf32, #tpu.memory_space<vmem>>, vector<8x8xf32>
    %c67 = arith.constant 67 : index
    %376 = memref.load %arg4[%c67] : memref<98xf32, #tpu.memory_space<smem>>
    %377 = vector.broadcast %376 : f32 to vector<8x8xf32>
    %378 = arith.mulf %375, %377 : vector<8x8xf32>
    %379 = arith.addf %374, %378 : vector<8x8xf32>
    %c4_166 = arith.constant 4 : index
    %c6_167 = arith.constant 6 : index
    %380 = vector.load %arg9[%c4_166, %c6_167] : memref<14x14xf32, #tpu.memory_space<vmem>>, vector<8x8xf32>
    %c68 = arith.constant 68 : index
    %381 = memref.load %arg4[%c68] : memref<98xf32, #tpu.memory_space<smem>>
    %382 = vector.broadcast %381 : f32 to vector<8x8xf32>
    %383 = arith.mulf %380, %382 : vector<8x8xf32>
    %384 = arith.addf %379, %383 : vector<8x8xf32>
    %c4_168 = arith.constant 4 : index
    %c6_169 = arith.constant 6 : index
    %385 = vector.load %arg10[%c4_168, %c6_169] : memref<14x14xf32, #tpu.memory_space<vmem>>, vector<8x8xf32>
    %c69 = arith.constant 69 : index
    %386 = memref.load %arg4[%c69] : memref<98xf32, #tpu.memory_space<smem>>
    %387 = vector.broadcast %386 : f32 to vector<8x8xf32>
    %388 = arith.mulf %385, %387 : vector<8x8xf32>
    %389 = arith.addf %384, %388 : vector<8x8xf32>
    %c5_170 = arith.constant 5 : index
    %c0_171 = arith.constant 0 : index
    %390 = vector.load %arg9[%c5_170, %c0_171] : memref<14x14xf32, #tpu.memory_space<vmem>>, vector<8x8xf32>
    %c70 = arith.constant 70 : index
    %391 = memref.load %arg4[%c70] : memref<98xf32, #tpu.memory_space<smem>>
    %392 = vector.broadcast %391 : f32 to vector<8x8xf32>
    %393 = arith.mulf %390, %392 : vector<8x8xf32>
    %394 = arith.addf %389, %393 : vector<8x8xf32>
    %c5_172 = arith.constant 5 : index
    %c0_173 = arith.constant 0 : index
    %395 = vector.load %arg10[%c5_172, %c0_173] : memref<14x14xf32, #tpu.memory_space<vmem>>, vector<8x8xf32>
    %c71 = arith.constant 71 : index
    %396 = memref.load %arg4[%c71] : memref<98xf32, #tpu.memory_space<smem>>
    %397 = vector.broadcast %396 : f32 to vector<8x8xf32>
    %398 = arith.mulf %395, %397 : vector<8x8xf32>
    %399 = arith.addf %394, %398 : vector<8x8xf32>
    %c5_174 = arith.constant 5 : index
    %c1_175 = arith.constant 1 : index
    %400 = vector.load %arg9[%c5_174, %c1_175] : memref<14x14xf32, #tpu.memory_space<vmem>>, vector<8x8xf32>
    %c72 = arith.constant 72 : index
    %401 = memref.load %arg4[%c72] : memref<98xf32, #tpu.memory_space<smem>>
    %402 = vector.broadcast %401 : f32 to vector<8x8xf32>
    %403 = arith.mulf %400, %402 : vector<8x8xf32>
    %404 = arith.addf %399, %403 : vector<8x8xf32>
    %c5_176 = arith.constant 5 : index
    %c1_177 = arith.constant 1 : index
    %405 = vector.load %arg10[%c5_176, %c1_177] : memref<14x14xf32, #tpu.memory_space<vmem>>, vector<8x8xf32>
    %c73 = arith.constant 73 : index
    %406 = memref.load %arg4[%c73] : memref<98xf32, #tpu.memory_space<smem>>
    %407 = vector.broadcast %406 : f32 to vector<8x8xf32>
    %408 = arith.mulf %405, %407 : vector<8x8xf32>
    %409 = arith.addf %404, %408 : vector<8x8xf32>
    %c5_178 = arith.constant 5 : index
    %c2_179 = arith.constant 2 : index
    %410 = vector.load %arg9[%c5_178, %c2_179] : memref<14x14xf32, #tpu.memory_space<vmem>>, vector<8x8xf32>
    %c74 = arith.constant 74 : index
    %411 = memref.load %arg4[%c74] : memref<98xf32, #tpu.memory_space<smem>>
    %412 = vector.broadcast %411 : f32 to vector<8x8xf32>
    %413 = arith.mulf %410, %412 : vector<8x8xf32>
    %414 = arith.addf %409, %413 : vector<8x8xf32>
    %c5_180 = arith.constant 5 : index
    %c2_181 = arith.constant 2 : index
    %415 = vector.load %arg10[%c5_180, %c2_181] : memref<14x14xf32, #tpu.memory_space<vmem>>, vector<8x8xf32>
    %c75 = arith.constant 75 : index
    %416 = memref.load %arg4[%c75] : memref<98xf32, #tpu.memory_space<smem>>
    %417 = vector.broadcast %416 : f32 to vector<8x8xf32>
    %418 = arith.mulf %415, %417 : vector<8x8xf32>
    %419 = arith.addf %414, %418 : vector<8x8xf32>
    %c5_182 = arith.constant 5 : index
    %c3_183 = arith.constant 3 : index
    %420 = vector.load %arg9[%c5_182, %c3_183] : memref<14x14xf32, #tpu.memory_space<vmem>>, vector<8x8xf32>
    %c76 = arith.constant 76 : index
    %421 = memref.load %arg4[%c76] : memref<98xf32, #tpu.memory_space<smem>>
    %422 = vector.broadcast %421 : f32 to vector<8x8xf32>
    %423 = arith.mulf %420, %422 : vector<8x8xf32>
    %424 = arith.addf %419, %423 : vector<8x8xf32>
    %c5_184 = arith.constant 5 : index
    %c3_185 = arith.constant 3 : index
    %425 = vector.load %arg10[%c5_184, %c3_185] : memref<14x14xf32, #tpu.memory_space<vmem>>, vector<8x8xf32>
    %c77 = arith.constant 77 : index
    %426 = memref.load %arg4[%c77] : memref<98xf32, #tpu.memory_space<smem>>
    %427 = vector.broadcast %426 : f32 to vector<8x8xf32>
    %428 = arith.mulf %425, %427 : vector<8x8xf32>
    %429 = arith.addf %424, %428 : vector<8x8xf32>
    %c5_186 = arith.constant 5 : index
    %c4_187 = arith.constant 4 : index
    %430 = vector.load %arg9[%c5_186, %c4_187] : memref<14x14xf32, #tpu.memory_space<vmem>>, vector<8x8xf32>
    %c78 = arith.constant 78 : index
    %431 = memref.load %arg4[%c78] : memref<98xf32, #tpu.memory_space<smem>>
    %432 = vector.broadcast %431 : f32 to vector<8x8xf32>
    %433 = arith.mulf %430, %432 : vector<8x8xf32>
    %434 = arith.addf %429, %433 : vector<8x8xf32>
    %c5_188 = arith.constant 5 : index
    %c4_189 = arith.constant 4 : index
    %435 = vector.load %arg10[%c5_188, %c4_189] : memref<14x14xf32, #tpu.memory_space<vmem>>, vector<8x8xf32>
    %c79 = arith.constant 79 : index
    %436 = memref.load %arg4[%c79] : memref<98xf32, #tpu.memory_space<smem>>
    %437 = vector.broadcast %436 : f32 to vector<8x8xf32>
    %438 = arith.mulf %435, %437 : vector<8x8xf32>
    %439 = arith.addf %434, %438 : vector<8x8xf32>
    %c5_190 = arith.constant 5 : index
    %c5_191 = arith.constant 5 : index
    %440 = vector.load %arg9[%c5_190, %c5_191] : memref<14x14xf32, #tpu.memory_space<vmem>>, vector<8x8xf32>
    %c80 = arith.constant 80 : index
    %441 = memref.load %arg4[%c80] : memref<98xf32, #tpu.memory_space<smem>>
    %442 = vector.broadcast %441 : f32 to vector<8x8xf32>
    %443 = arith.mulf %440, %442 : vector<8x8xf32>
    %444 = arith.addf %439, %443 : vector<8x8xf32>
    %c5_192 = arith.constant 5 : index
    %c5_193 = arith.constant 5 : index
    %445 = vector.load %arg10[%c5_192, %c5_193] : memref<14x14xf32, #tpu.memory_space<vmem>>, vector<8x8xf32>
    %c81 = arith.constant 81 : index
    %446 = memref.load %arg4[%c81] : memref<98xf32, #tpu.memory_space<smem>>
    %447 = vector.broadcast %446 : f32 to vector<8x8xf32>
    %448 = arith.mulf %445, %447 : vector<8x8xf32>
    %449 = arith.addf %444, %448 : vector<8x8xf32>
    %c5_194 = arith.constant 5 : index
    %c6_195 = arith.constant 6 : index
    %450 = vector.load %arg9[%c5_194, %c6_195] : memref<14x14xf32, #tpu.memory_space<vmem>>, vector<8x8xf32>
    %c82 = arith.constant 82 : index
    %451 = memref.load %arg4[%c82] : memref<98xf32, #tpu.memory_space<smem>>
    %452 = vector.broadcast %451 : f32 to vector<8x8xf32>
    %453 = arith.mulf %450, %452 : vector<8x8xf32>
    %454 = arith.addf %449, %453 : vector<8x8xf32>
    %c5_196 = arith.constant 5 : index
    %c6_197 = arith.constant 6 : index
    %455 = vector.load %arg10[%c5_196, %c6_197] : memref<14x14xf32, #tpu.memory_space<vmem>>, vector<8x8xf32>
    %c83 = arith.constant 83 : index
    %456 = memref.load %arg4[%c83] : memref<98xf32, #tpu.memory_space<smem>>
    %457 = vector.broadcast %456 : f32 to vector<8x8xf32>
    %458 = arith.mulf %455, %457 : vector<8x8xf32>
    %459 = arith.addf %454, %458 : vector<8x8xf32>
    %c6_198 = arith.constant 6 : index
    %c0_199 = arith.constant 0 : index
    %460 = vector.load %arg9[%c6_198, %c0_199] : memref<14x14xf32, #tpu.memory_space<vmem>>, vector<8x8xf32>
    %c84 = arith.constant 84 : index
    %461 = memref.load %arg4[%c84] : memref<98xf32, #tpu.memory_space<smem>>
    %462 = vector.broadcast %461 : f32 to vector<8x8xf32>
    %463 = arith.mulf %460, %462 : vector<8x8xf32>
    %464 = arith.addf %459, %463 : vector<8x8xf32>
    %c6_200 = arith.constant 6 : index
    %c0_201 = arith.constant 0 : index
    %465 = vector.load %arg10[%c6_200, %c0_201] : memref<14x14xf32, #tpu.memory_space<vmem>>, vector<8x8xf32>
    %c85 = arith.constant 85 : index
    %466 = memref.load %arg4[%c85] : memref<98xf32, #tpu.memory_space<smem>>
    %467 = vector.broadcast %466 : f32 to vector<8x8xf32>
    %468 = arith.mulf %465, %467 : vector<8x8xf32>
    %469 = arith.addf %464, %468 : vector<8x8xf32>
    %c6_202 = arith.constant 6 : index
    %c1_203 = arith.constant 1 : index
    %470 = vector.load %arg9[%c6_202, %c1_203] : memref<14x14xf32, #tpu.memory_space<vmem>>, vector<8x8xf32>
    %c86 = arith.constant 86 : index
    %471 = memref.load %arg4[%c86] : memref<98xf32, #tpu.memory_space<smem>>
    %472 = vector.broadcast %471 : f32 to vector<8x8xf32>
    %473 = arith.mulf %470, %472 : vector<8x8xf32>
    %474 = arith.addf %469, %473 : vector<8x8xf32>
    %c6_204 = arith.constant 6 : index
    %c1_205 = arith.constant 1 : index
    %475 = vector.load %arg10[%c6_204, %c1_205] : memref<14x14xf32, #tpu.memory_space<vmem>>, vector<8x8xf32>
    %c87 = arith.constant 87 : index
    %476 = memref.load %arg4[%c87] : memref<98xf32, #tpu.memory_space<smem>>
    %477 = vector.broadcast %476 : f32 to vector<8x8xf32>
    %478 = arith.mulf %475, %477 : vector<8x8xf32>
    %479 = arith.addf %474, %478 : vector<8x8xf32>
    %c6_206 = arith.constant 6 : index
    %c2_207 = arith.constant 2 : index
    %480 = vector.load %arg9[%c6_206, %c2_207] : memref<14x14xf32, #tpu.memory_space<vmem>>, vector<8x8xf32>
    %c88 = arith.constant 88 : index
    %481 = memref.load %arg4[%c88] : memref<98xf32, #tpu.memory_space<smem>>
    %482 = vector.broadcast %481 : f32 to vector<8x8xf32>
    %483 = arith.mulf %480, %482 : vector<8x8xf32>
    %484 = arith.addf %479, %483 : vector<8x8xf32>
    %c6_208 = arith.constant 6 : index
    %c2_209 = arith.constant 2 : index
    %485 = vector.load %arg10[%c6_208, %c2_209] : memref<14x14xf32, #tpu.memory_space<vmem>>, vector<8x8xf32>
    %c89 = arith.constant 89 : index
    %486 = memref.load %arg4[%c89] : memref<98xf32, #tpu.memory_space<smem>>
    %487 = vector.broadcast %486 : f32 to vector<8x8xf32>
    %488 = arith.mulf %485, %487 : vector<8x8xf32>
    %489 = arith.addf %484, %488 : vector<8x8xf32>
    %c6_210 = arith.constant 6 : index
    %c3_211 = arith.constant 3 : index
    %490 = vector.load %arg9[%c6_210, %c3_211] : memref<14x14xf32, #tpu.memory_space<vmem>>, vector<8x8xf32>
    %c90 = arith.constant 90 : index
    %491 = memref.load %arg4[%c90] : memref<98xf32, #tpu.memory_space<smem>>
    %492 = vector.broadcast %491 : f32 to vector<8x8xf32>
    %493 = arith.mulf %490, %492 : vector<8x8xf32>
    %494 = arith.addf %489, %493 : vector<8x8xf32>
    %c6_212 = arith.constant 6 : index
    %c3_213 = arith.constant 3 : index
    %495 = vector.load %arg10[%c6_212, %c3_213] : memref<14x14xf32, #tpu.memory_space<vmem>>, vector<8x8xf32>
    %c91 = arith.constant 91 : index
    %496 = memref.load %arg4[%c91] : memref<98xf32, #tpu.memory_space<smem>>
    %497 = vector.broadcast %496 : f32 to vector<8x8xf32>
    %498 = arith.mulf %495, %497 : vector<8x8xf32>
    %499 = arith.addf %494, %498 : vector<8x8xf32>
    %c6_214 = arith.constant 6 : index
    %c4_215 = arith.constant 4 : index
    %500 = vector.load %arg9[%c6_214, %c4_215] : memref<14x14xf32, #tpu.memory_space<vmem>>, vector<8x8xf32>
    %c92 = arith.constant 92 : index
    %501 = memref.load %arg4[%c92] : memref<98xf32, #tpu.memory_space<smem>>
    %502 = vector.broadcast %501 : f32 to vector<8x8xf32>
    %503 = arith.mulf %500, %502 : vector<8x8xf32>
    %504 = arith.addf %499, %503 : vector<8x8xf32>
    %c6_216 = arith.constant 6 : index
    %c4_217 = arith.constant 4 : index
    %505 = vector.load %arg10[%c6_216, %c4_217] : memref<14x14xf32, #tpu.memory_space<vmem>>, vector<8x8xf32>
    %c93 = arith.constant 93 : index
    %506 = memref.load %arg4[%c93] : memref<98xf32, #tpu.memory_space<smem>>
    %507 = vector.broadcast %506 : f32 to vector<8x8xf32>
    %508 = arith.mulf %505, %507 : vector<8x8xf32>
    %509 = arith.addf %504, %508 : vector<8x8xf32>
    %c6_218 = arith.constant 6 : index
    %c5_219 = arith.constant 5 : index
    %510 = vector.load %arg9[%c6_218, %c5_219] : memref<14x14xf32, #tpu.memory_space<vmem>>, vector<8x8xf32>
    %c94 = arith.constant 94 : index
    %511 = memref.load %arg4[%c94] : memref<98xf32, #tpu.memory_space<smem>>
    %512 = vector.broadcast %511 : f32 to vector<8x8xf32>
    %513 = arith.mulf %510, %512 : vector<8x8xf32>
    %514 = arith.addf %509, %513 : vector<8x8xf32>
    %c6_220 = arith.constant 6 : index
    %c5_221 = arith.constant 5 : index
    %515 = vector.load %arg10[%c6_220, %c5_221] : memref<14x14xf32, #tpu.memory_space<vmem>>, vector<8x8xf32>
    %c95 = arith.constant 95 : index
    %516 = memref.load %arg4[%c95] : memref<98xf32, #tpu.memory_space<smem>>
    %517 = vector.broadcast %516 : f32 to vector<8x8xf32>
    %518 = arith.mulf %515, %517 : vector<8x8xf32>
    %519 = arith.addf %514, %518 : vector<8x8xf32>
    %c6_222 = arith.constant 6 : index
    %c6_223 = arith.constant 6 : index
    %520 = vector.load %arg9[%c6_222, %c6_223] : memref<14x14xf32, #tpu.memory_space<vmem>>, vector<8x8xf32>
    %c96 = arith.constant 96 : index
    %521 = memref.load %arg4[%c96] : memref<98xf32, #tpu.memory_space<smem>>
    %522 = vector.broadcast %521 : f32 to vector<8x8xf32>
    %523 = arith.mulf %520, %522 : vector<8x8xf32>
    %524 = arith.addf %519, %523 : vector<8x8xf32>
    %c6_224 = arith.constant 6 : index
    %c6_225 = arith.constant 6 : index
    %525 = vector.load %arg10[%c6_224, %c6_225] : memref<14x14xf32, #tpu.memory_space<vmem>>, vector<8x8xf32>
    %c97 = arith.constant 97 : index
    %526 = memref.load %arg4[%c97] : memref<98xf32, #tpu.memory_space<smem>>
    %527 = vector.broadcast %526 : f32 to vector<8x8xf32>
    %528 = arith.mulf %525, %527 : vector<8x8xf32>
    %529 = arith.addf %524, %528 : vector<8x8xf32>
    %cst_226 = arith.constant 0.000000e+00 : f32
    %530 = vector.broadcast %cst_226 : f32 to vector<8x8xf32>
    %531 = arith.subf %530, %529 : vector<8x8xf32>
    %532 = math.exp %531 : vector<8x8xf32>
    %cst_227 = arith.constant 1.000000e+00 : f32
    %533 = vector.broadcast %cst_227 : f32 to vector<8x8xf32>
    %534 = arith.addf %533, %532 : vector<8x8xf32>
    %cst_228 = arith.constant 1.000000e+00 : f32
    %535 = vector.broadcast %cst_228 : f32 to vector<8x8xf32>
    %536 = arith.divf %535, %534 : vector<8x8xf32>
    %537 = vector.shape_cast %536 : vector<8x8xf32> to vector<8x8x1xf32>
    %538 = vector.broadcast %537 : vector<8x8x1xf32> to vector<8x8x32xf32>
    %539 = arith.mulf %28, %538 : vector<8x8x32xf32>
    %540 = vector.shape_cast %539 : vector<8x8x32xf32> to vector<64x32xf32>
    %c0_229 = arith.constant 0 : index
    %c0_230 = arith.constant 0 : index
    %541 = vector.load %arg5[%c0_229, %c0_230] : memref<32x32xf32, #tpu.memory_space<vmem>>, vector<32x32xf32>
    %cst_231 = arith.constant dense<0.000000e+00> : vector<64x32xf32>
    %542 = tpu.matmul %540, %541, %cst_231 {dimension_numbers = #tpu.dot_dimension_numbers<[1], [0], [0], [1], [0, 0, 1, 1], [], []>} : vector<64x32xf32>, vector<32x32xf32>, vector<64x32xf32> -> vector<64x32xf32>
    %c0_232 = arith.constant 0 : index
    %c0_233 = arith.constant 0 : index
    %543 = vector.load %arg6[%c0_232, %c0_233] : memref<1x32xf32, #tpu.memory_space<vmem>>, vector<1x32xf32>
    %544 = vector.broadcast %543 : vector<1x32xf32> to vector<64x32xf32>
    %545 = arith.addf %542, %544 : vector<64x32xf32>
    %c0_234 = arith.constant 0 : index
    %546 = memref.load %arg7[%c0_234] : memref<1xf32, #tpu.memory_space<smem>>
    %cst_235 = arith.constant 0.000000e+00 : f32
    %547 = vector.broadcast %cst_235 : f32 to vector<64x32xf32>
    %548 = arith.cmpf oge, %545, %547 : vector<64x32xf32>
    %549 = vector.broadcast %546 : f32 to vector<64x32xf32>
    %550 = arith.mulf %549, %545 : vector<64x32xf32>
    %551 = arith.select %548, %545, %550 : vector<64x32xi1>, vector<64x32xf32>
    %552 = vector.shape_cast %551 : vector<64x32xf32> to vector<8x8x32xf32>
    %c0_236 = arith.constant 0 : index
    %c0_237 = arith.constant 0 : index
    %c0_238 = arith.constant 0 : index
    %c0_239 = arith.constant 0 : index
    %553 = vector.load %arg8[%c0_236, %c0_237, %c0_238, %c0_239] : memref<1x8x8x32xf32, #tpu.memory_space<vmem>>, vector<1x8x8x32xf32>
    %554 = vector.shape_cast %553 : vector<1x8x8x32xf32> to vector<8x8x32xf32>
    %555 = vector.shape_cast %552 : vector<8x8x32xf32> to vector<1x8x8x32xf32>
    tpu.vector_store %arg8[%c0_236, %c0_237, %c0_238, %c0_239], %555 {strides = array<i32>} : memref<1x8x8x32xf32, #tpu.memory_space<vmem>>, vector<1x8x8x32xf32>,
    return
  }
  func.func @transform_0(%arg0: i32) -> (i32, i32, i32, i32) {
    %c0_i32 = arith.constant 0 : i32
    %c0_i32_0 = arith.constant 0 : i32
    %c0_i32_1 = arith.constant 0 : i32
    %c0_i32_2 = arith.constant 0 : i32
    return %arg0, %c0_i32, %c0_i32_0, %c0_i32_1 : i32, i32, i32, i32
  }
  func.func @transform_1(%arg0: i32) -> (i32, i32) {
    %c0_i32 = arith.constant 0 : i32
    %c0_i32_0 = arith.constant 0 : i32
    %c0_i32_1 = arith.constant 0 : i32
    return %c0_i32, %c0_i32_0 : i32, i32
  }
  func.func @transform_2(%arg0: i32) -> (i32, i32) {
    %c0_i32 = arith.constant 0 : i32
    %c0_i32_0 = arith.constant 0 : i32
    %c0_i32_1 = arith.constant 0 : i32
    return %c0_i32, %c0_i32_0 : i32, i32
  }
  func.func @transform_3(%arg0: i32) -> i32 {
    %c0_i32 = arith.constant 0 : i32
    %c0_i32_0 = arith.constant 0 : i32
    return %c0_i32 : i32
  }
  func.func @transform_4(%arg0: i32) -> (i32, i32) {
    %c0_i32 = arith.constant 0 : i32
    %c0_i32_0 = arith.constant 0 : i32
    %c0_i32_1 = arith.constant 0 : i32
    return %c0_i32, %c0_i32_0 : i32, i32
  }
  func.func @transform_5(%arg0: i32) -> (i32, i32) {
    %c0_i32 = arith.constant 0 : i32
    %c0_i32_0 = arith.constant 0 : i32
    %c0_i32_1 = arith.constant 0 : i32
    return %c0_i32, %c0_i32_0 : i32, i32
  }
  func.func @transform_6(%arg0: i32) -> i32 {
    %c0_i32 = arith.constant 0 : i32
    %c0_i32_0 = arith.constant 0 : i32
    return %c0_i32 : i32
  }
  func.func @transform_7(%arg0: i32) -> (i32, i32, i32, i32) {
    %c0_i32 = arith.constant 0 : i32
    %c0_i32_0 = arith.constant 0 : i32
    %c0_i32_1 = arith.constant 0 : i32
    %c0_i32_2 = arith.constant 0 : i32
    return %arg0, %c0_i32, %c0_i32_0, %c0_i32_1 : i32, i32, i32, i32
  }
}

module attributes {stable_mosaic.version = 11 : i64} {
  func.func @_mm_bias_prelu_kernel(%arg0: i32, %arg1: i32, %arg2: memref<32x384xbf16, #tpu.memory_space<vmem>>, %arg3: memref<384x128xbf16, #tpu.memory_space<vmem>>, %arg4: memref<32x1xf32, #tpu.memory_space<vmem>>, %arg5: memref<1xf32, #tpu.memory_space<smem>>, %arg6: memref<32x128xf32, #tpu.memory_space<vmem>>, %arg7: memref<32x128xf32, #tpu.memory_space<vmem>>) attributes {dimension_semantics = [#tpu.dimension_semantics<parallel>, #tpu.dimension_semantics<arbitrary>], iteration_bounds = array<i64: 1, 1>, scalar_prefetch = 0 : i64, scratch_operands = 1 : i64, tpu.core_type = #tpu.core_type<tc>, window_params = [{transform_indices = @transform_0, window_bounds = array<i64: 32, 384>}, {transform_indices = @transform_1, window_bounds = array<i64: 384, 128>}, {pipeline_mode = #tpu.pipeline_mode<synchronous>, transform_indices = @transform_2, window_bounds = array<i64: 32, 1>}, {transform_indices = @transform_3, window_bounds = array<i64: 1>}, {transform_indices = @transform_4, window_bounds = array<i64: 32, 128>}]} {
    %c0_i32 = arith.constant 0 : i32
    %0 = arith.cmpi eq, %arg1, %c0_i32 : i32
    %1 = arith.extui %0 : i1 to i32
    %c0_i32_0 = arith.constant 0 : i32
    %2 = arith.cmpi ne, %1, %c0_i32_0 : i32
    scf.if %2 {
      %cst_10 = arith.constant 0.000000e+00 : f32
      %12 = vector.broadcast %cst_10 : f32 to vector<32x128xf32>
      %c0_11 = arith.constant 0 : index
      %c0_12 = arith.constant 0 : index
      %13 = vector.load %arg7[%c0_11, %c0_12] : memref<32x128xf32, #tpu.memory_space<vmem>>, vector<32x128xf32>
      tpu.vector_store %arg7[%c0_11, %c0_12], %12 {strides = array<i32>} : memref<32x128xf32, #tpu.memory_space<vmem>>, vector<32x128xf32>,
    } else {
    }
    %c0 = arith.constant 0 : index
    %c0_1 = arith.constant 0 : index
    %3 = vector.load %arg7[%c0, %c0_1] : memref<32x128xf32, #tpu.memory_space<vmem>>, vector<32x128xf32>
    %c0_2 = arith.constant 0 : index
    %c0_3 = arith.constant 0 : index
    %4 = vector.load %arg2[%c0_2, %c0_3] : memref<32x384xbf16, #tpu.memory_space<vmem>>, vector<32x384xbf16>
    %c0_4 = arith.constant 0 : index
    %c0_5 = arith.constant 0 : index
    %5 = vector.load %arg3[%c0_4, %c0_5] : memref<384x128xbf16, #tpu.memory_space<vmem>>, vector<384x128xbf16>
    %cst = arith.constant dense<0.000000e+00> : vector<32x128xf32>
    %6 = tpu.matmul %4, %5, %cst {dimension_numbers = #tpu.dot_dimension_numbers<[1], [0], [0], [1], [0, 0, 1, 1], [], []>} : vector<32x384xbf16>, vector<384x128xbf16>, vector<32x128xf32> -> vector<32x128xf32>
    %7 = arith.addf %3, %6 : vector<32x128xf32>
    %c0_6 = arith.constant 0 : index
    %c0_7 = arith.constant 0 : index
    %8 = vector.load %arg7[%c0_6, %c0_7] : memref<32x128xf32, #tpu.memory_space<vmem>>, vector<32x128xf32>
    tpu.vector_store %arg7[%c0_6, %c0_7], %7 {strides = array<i32>} : memref<32x128xf32, #tpu.memory_space<vmem>>, vector<32x128xf32>,
    %c0_i32_8 = arith.constant 0 : i32
    %9 = arith.cmpi eq, %arg1, %c0_i32_8 : i32
    %10 = arith.extui %9 : i1 to i32
    %c0_i32_9 = arith.constant 0 : i32
    %11 = arith.cmpi ne, %10, %c0_i32_9 : i32
    scf.if %11 {
      %c0_10 = arith.constant 0 : index
      %c0_11 = arith.constant 0 : index
      %12 = vector.load %arg7[%c0_10, %c0_11] : memref<32x128xf32, #tpu.memory_space<vmem>>, vector<32x128xf32>
      %c0_12 = arith.constant 0 : index
      %c0_13 = arith.constant 0 : index
      %13 = vector.load %arg4[%c0_12, %c0_13] : memref<32x1xf32, #tpu.memory_space<vmem>>, vector<32x1xf32>
      %14 = vector.broadcast %13 : vector<32x1xf32> to vector<32x128xf32>
      %15 = arith.addf %12, %14 : vector<32x128xf32>
      %c0_14 = arith.constant 0 : index
      %16 = memref.load %arg5[%c0_14] : memref<1xf32, #tpu.memory_space<smem>>
      %cst_15 = arith.constant 0.000000e+00 : f32
      %17 = vector.broadcast %cst_15 : f32 to vector<32x128xf32>
      %18 = arith.cmpf oge, %15, %17 : vector<32x128xf32>
      %19 = vector.broadcast %16 : f32 to vector<32x128xf32>
      %20 = arith.mulf %19, %15 : vector<32x128xf32>
      %21 = arith.select %18, %15, %20 : vector<32x128xi1>, vector<32x128xf32>
      %c0_16 = arith.constant 0 : index
      %c0_17 = arith.constant 0 : index
      %22 = vector.load %arg6[%c0_16, %c0_17] : memref<32x128xf32, #tpu.memory_space<vmem>>, vector<32x128xf32>
      tpu.vector_store %arg6[%c0_16, %c0_17], %21 {strides = array<i32>} : memref<32x128xf32, #tpu.memory_space<vmem>>, vector<32x128xf32>,
    } else {
    }
    return
  }
  func.func @transform_0(%arg0: i32, %arg1: i32) -> (i32, i32) {
    %c0_i32 = arith.constant 0 : i32
    %c0_i32_0 = arith.constant 0 : i32
    return %c0_i32, %arg1 : i32, i32
  }
  func.func @transform_1(%arg0: i32, %arg1: i32) -> (i32, i32) {
    %c0_i32 = arith.constant 0 : i32
    return %arg1, %arg0 : i32, i32
  }
  func.func @transform_2(%arg0: i32, %arg1: i32) -> (i32, i32) {
    %c0_i32 = arith.constant 0 : i32
    %c0_i32_0 = arith.constant 0 : i32
    %c0_i32_1 = arith.constant 0 : i32
    return %c0_i32, %c0_i32_0 : i32, i32
  }
  func.func @transform_3(%arg0: i32, %arg1: i32) -> i32 {
    %c0_i32 = arith.constant 0 : i32
    %c0_i32_0 = arith.constant 0 : i32
    return %c0_i32 : i32
  }
  func.func @transform_4(%arg0: i32, %arg1: i32) -> (i32, i32) {
    %c0_i32 = arith.constant 0 : i32
    %c0_i32_0 = arith.constant 0 : i32
    return %c0_i32, %arg0 : i32, i32
  }
}

module attributes {stable_mosaic.version = 11 : i64} {
  func.func @_mm_bias_prelu_kernel(%arg0: i32, %arg1: i32, %arg2: memref<32x384xbf16, #tpu.memory_space<vmem>>, %arg3: memref<384x128xbf16, #tpu.memory_space<vmem>>, %arg4: memref<32x1xf32, #tpu.memory_space<vmem>>, %arg5: memref<1xf32, #tpu.memory_space<smem>>, %arg6: memref<32x128xf32, #tpu.memory_space<vmem>>, %arg7: memref<32x128xf32, #tpu.memory_space<vmem>>) attributes {dimension_semantics = [#tpu.dimension_semantics<parallel>, #tpu.dimension_semantics<arbitrary>], iteration_bounds = array<i64: 1, 3>, scalar_prefetch = 0 : i64, scratch_operands = 1 : i64, tpu.core_type = #tpu.core_type<tc>, window_params = [{transform_indices = @transform_0, window_bounds = array<i64: 32, 384>}, {transform_indices = @transform_1, window_bounds = array<i64: 384, 128>}, {pipeline_mode = #tpu.pipeline_mode<synchronous>, transform_indices = @transform_2, window_bounds = array<i64: 32, 1>}, {transform_indices = @transform_3, window_bounds = array<i64: 1>}, {transform_indices = @transform_4, window_bounds = array<i64: 32, 128>}]} {
    %c0_i32 = arith.constant 0 : i32
    %0 = arith.cmpi eq, %arg1, %c0_i32 : i32
    %1 = arith.extui %0 : i1 to i32
    %c0_i32_0 = arith.constant 0 : i32
    %2 = arith.cmpi ne, %1, %c0_i32_0 : i32
    scf.if %2 {
      %cst_9 = arith.constant 0.000000e+00 : f32
      %12 = vector.broadcast %cst_9 : f32 to vector<32x128xf32>
      %c0_10 = arith.constant 0 : index
      %c0_11 = arith.constant 0 : index
      %13 = vector.load %arg7[%c0_10, %c0_11] : memref<32x128xf32, #tpu.memory_space<vmem>>, vector<32x128xf32>
      tpu.vector_store %arg7[%c0_10, %c0_11], %12 {strides = array<i32>} : memref<32x128xf32, #tpu.memory_space<vmem>>, vector<32x128xf32>,
    } else {
    }
    %c0 = arith.constant 0 : index
    %c0_1 = arith.constant 0 : index
    %3 = vector.load %arg7[%c0, %c0_1] : memref<32x128xf32, #tpu.memory_space<vmem>>, vector<32x128xf32>
    %c0_2 = arith.constant 0 : index
    %c0_3 = arith.constant 0 : index
    %4 = vector.load %arg2[%c0_2, %c0_3] : memref<32x384xbf16, #tpu.memory_space<vmem>>, vector<32x384xbf16>
    %c0_4 = arith.constant 0 : index
    %c0_5 = arith.constant 0 : index
    %5 = vector.load %arg3[%c0_4, %c0_5] : memref<384x128xbf16, #tpu.memory_space<vmem>>, vector<384x128xbf16>
    %cst = arith.constant dense<0.000000e+00> : vector<32x128xf32>
    %6 = tpu.matmul %4, %5, %cst {dimension_numbers = #tpu.dot_dimension_numbers<[1], [0], [0], [1], [0, 0, 1, 1], [], []>} : vector<32x384xbf16>, vector<384x128xbf16>, vector<32x128xf32> -> vector<32x128xf32>
    %7 = arith.addf %3, %6 : vector<32x128xf32>
    %c0_6 = arith.constant 0 : index
    %c0_7 = arith.constant 0 : index
    %8 = vector.load %arg7[%c0_6, %c0_7] : memref<32x128xf32, #tpu.memory_space<vmem>>, vector<32x128xf32>
    tpu.vector_store %arg7[%c0_6, %c0_7], %7 {strides = array<i32>} : memref<32x128xf32, #tpu.memory_space<vmem>>, vector<32x128xf32>,
    %c2_i32 = arith.constant 2 : i32
    %9 = arith.cmpi eq, %arg1, %c2_i32 : i32
    %10 = arith.extui %9 : i1 to i32
    %c0_i32_8 = arith.constant 0 : i32
    %11 = arith.cmpi ne, %10, %c0_i32_8 : i32
    scf.if %11 {
      %c0_9 = arith.constant 0 : index
      %c0_10 = arith.constant 0 : index
      %12 = vector.load %arg7[%c0_9, %c0_10] : memref<32x128xf32, #tpu.memory_space<vmem>>, vector<32x128xf32>
      %c0_11 = arith.constant 0 : index
      %c0_12 = arith.constant 0 : index
      %13 = vector.load %arg4[%c0_11, %c0_12] : memref<32x1xf32, #tpu.memory_space<vmem>>, vector<32x1xf32>
      %14 = vector.broadcast %13 : vector<32x1xf32> to vector<32x128xf32>
      %15 = arith.addf %12, %14 : vector<32x128xf32>
      %c0_13 = arith.constant 0 : index
      %16 = memref.load %arg5[%c0_13] : memref<1xf32, #tpu.memory_space<smem>>
      %cst_14 = arith.constant 0.000000e+00 : f32
      %17 = vector.broadcast %cst_14 : f32 to vector<32x128xf32>
      %18 = arith.cmpf oge, %15, %17 : vector<32x128xf32>
      %19 = vector.broadcast %16 : f32 to vector<32x128xf32>
      %20 = arith.mulf %19, %15 : vector<32x128xf32>
      %21 = arith.select %18, %15, %20 : vector<32x128xi1>, vector<32x128xf32>
      %c0_15 = arith.constant 0 : index
      %c0_16 = arith.constant 0 : index
      %22 = vector.load %arg6[%c0_15, %c0_16] : memref<32x128xf32, #tpu.memory_space<vmem>>, vector<32x128xf32>
      tpu.vector_store %arg6[%c0_15, %c0_16], %21 {strides = array<i32>} : memref<32x128xf32, #tpu.memory_space<vmem>>, vector<32x128xf32>,
    } else {
    }
    return
  }
  func.func @transform_0(%arg0: i32, %arg1: i32) -> (i32, i32) {
    %c0_i32 = arith.constant 0 : i32
    %c0_i32_0 = arith.constant 0 : i32
    return %c0_i32, %arg1 : i32, i32
  }
  func.func @transform_1(%arg0: i32, %arg1: i32) -> (i32, i32) {
    %c0_i32 = arith.constant 0 : i32
    return %arg1, %arg0 : i32, i32
  }
  func.func @transform_2(%arg0: i32, %arg1: i32) -> (i32, i32) {
    %c0_i32 = arith.constant 0 : i32
    %c0_i32_0 = arith.constant 0 : i32
    %c0_i32_1 = arith.constant 0 : i32
    return %c0_i32, %c0_i32_0 : i32, i32
  }
  func.func @transform_3(%arg0: i32, %arg1: i32) -> i32 {
    %c0_i32 = arith.constant 0 : i32
    %c0_i32_0 = arith.constant 0 : i32
    return %c0_i32 : i32
  }
  func.func @transform_4(%arg0: i32, %arg1: i32) -> (i32, i32) {
    %c0_i32 = arith.constant 0 : i32
    %c0_i32_0 = arith.constant 0 : i32
    return %c0_i32, %arg0 : i32, i32
  }
}

module attributes {stable_mosaic.version = 11 : i64} {
  func.func @_mm_bias_prelu_kernel(%arg0: i32, %arg1: i32, %arg2: memref<32x128xbf16, #tpu.memory_space<vmem>>, %arg3: memref<128x128xbf16, #tpu.memory_space<vmem>>, %arg4: memref<32x1xf32, #tpu.memory_space<vmem>>, %arg5: memref<1xf32, #tpu.memory_space<smem>>, %arg6: memref<32x128xf32, #tpu.memory_space<vmem>>, %arg7: memref<32x128xf32, #tpu.memory_space<vmem>>) attributes {dimension_semantics = [#tpu.dimension_semantics<parallel>, #tpu.dimension_semantics<arbitrary>], iteration_bounds = array<i64: 1, 1>, scalar_prefetch = 0 : i64, scratch_operands = 1 : i64, tpu.core_type = #tpu.core_type<tc>, window_params = [{transform_indices = @transform_0, window_bounds = array<i64: 32, 128>}, {transform_indices = @transform_1, window_bounds = array<i64: 128, 128>}, {pipeline_mode = #tpu.pipeline_mode<synchronous>, transform_indices = @transform_2, window_bounds = array<i64: 32, 1>}, {transform_indices = @transform_3, window_bounds = array<i64: 1>}, {transform_indices = @transform_4, window_bounds = array<i64: 32, 128>}]} {
    %c0_i32 = arith.constant 0 : i32
    %0 = arith.cmpi eq, %arg1, %c0_i32 : i32
    %1 = arith.extui %0 : i1 to i32
    %c0_i32_0 = arith.constant 0 : i32
    %2 = arith.cmpi ne, %1, %c0_i32_0 : i32
    scf.if %2 {
      %cst_10 = arith.constant 0.000000e+00 : f32
      %12 = vector.broadcast %cst_10 : f32 to vector<32x128xf32>
      %c0_11 = arith.constant 0 : index
      %c0_12 = arith.constant 0 : index
      %13 = vector.load %arg7[%c0_11, %c0_12] : memref<32x128xf32, #tpu.memory_space<vmem>>, vector<32x128xf32>
      tpu.vector_store %arg7[%c0_11, %c0_12], %12 {strides = array<i32>} : memref<32x128xf32, #tpu.memory_space<vmem>>, vector<32x128xf32>,
    } else {
    }
    %c0 = arith.constant 0 : index
    %c0_1 = arith.constant 0 : index
    %3 = vector.load %arg7[%c0, %c0_1] : memref<32x128xf32, #tpu.memory_space<vmem>>, vector<32x128xf32>
    %c0_2 = arith.constant 0 : index
    %c0_3 = arith.constant 0 : index
    %4 = vector.load %arg2[%c0_2, %c0_3] : memref<32x128xbf16, #tpu.memory_space<vmem>>, vector<32x128xbf16>
    %c0_4 = arith.constant 0 : index
    %c0_5 = arith.constant 0 : index
    %5 = vector.load %arg3[%c0_4, %c0_5] : memref<128x128xbf16, #tpu.memory_space<vmem>>, vector<128x128xbf16>
    %cst = arith.constant dense<0.000000e+00> : vector<32x128xf32>
    %6 = tpu.matmul %4, %5, %cst {dimension_numbers = #tpu.dot_dimension_numbers<[1], [0], [0], [1], [0, 0, 1, 1], [], []>} : vector<32x128xbf16>, vector<128x128xbf16>, vector<32x128xf32> -> vector<32x128xf32>
    %7 = arith.addf %3, %6 : vector<32x128xf32>
    %c0_6 = arith.constant 0 : index
    %c0_7 = arith.constant 0 : index
    %8 = vector.load %arg7[%c0_6, %c0_7] : memref<32x128xf32, #tpu.memory_space<vmem>>, vector<32x128xf32>
    tpu.vector_store %arg7[%c0_6, %c0_7], %7 {strides = array<i32>} : memref<32x128xf32, #tpu.memory_space<vmem>>, vector<32x128xf32>,
    %c0_i32_8 = arith.constant 0 : i32
    %9 = arith.cmpi eq, %arg1, %c0_i32_8 : i32
    %10 = arith.extui %9 : i1 to i32
    %c0_i32_9 = arith.constant 0 : i32
    %11 = arith.cmpi ne, %10, %c0_i32_9 : i32
    scf.if %11 {
      %c0_10 = arith.constant 0 : index
      %c0_11 = arith.constant 0 : index
      %12 = vector.load %arg7[%c0_10, %c0_11] : memref<32x128xf32, #tpu.memory_space<vmem>>, vector<32x128xf32>
      %c0_12 = arith.constant 0 : index
      %c0_13 = arith.constant 0 : index
      %13 = vector.load %arg4[%c0_12, %c0_13] : memref<32x1xf32, #tpu.memory_space<vmem>>, vector<32x1xf32>
      %14 = vector.broadcast %13 : vector<32x1xf32> to vector<32x128xf32>
      %15 = arith.addf %12, %14 : vector<32x128xf32>
      %c0_14 = arith.constant 0 : index
      %16 = memref.load %arg5[%c0_14] : memref<1xf32, #tpu.memory_space<smem>>
      %cst_15 = arith.constant 0.000000e+00 : f32
      %17 = vector.broadcast %cst_15 : f32 to vector<32x128xf32>
      %18 = arith.cmpf oge, %15, %17 : vector<32x128xf32>
      %19 = vector.broadcast %16 : f32 to vector<32x128xf32>
      %20 = arith.mulf %19, %15 : vector<32x128xf32>
      %21 = arith.select %18, %15, %20 : vector<32x128xi1>, vector<32x128xf32>
      %c0_16 = arith.constant 0 : index
      %c0_17 = arith.constant 0 : index
      %22 = vector.load %arg6[%c0_16, %c0_17] : memref<32x128xf32, #tpu.memory_space<vmem>>, vector<32x128xf32>
      tpu.vector_store %arg6[%c0_16, %c0_17], %21 {strides = array<i32>} : memref<32x128xf32, #tpu.memory_space<vmem>>, vector<32x128xf32>,
    } else {
    }
    return
  }
  func.func @transform_0(%arg0: i32, %arg1: i32) -> (i32, i32) {
    %c0_i32 = arith.constant 0 : i32
    %c0_i32_0 = arith.constant 0 : i32
    return %c0_i32, %arg1 : i32, i32
  }
  func.func @transform_1(%arg0: i32, %arg1: i32) -> (i32, i32) {
    %c0_i32 = arith.constant 0 : i32
    return %arg1, %arg0 : i32, i32
  }
  func.func @transform_2(%arg0: i32, %arg1: i32) -> (i32, i32) {
    %c0_i32 = arith.constant 0 : i32
    %c0_i32_0 = arith.constant 0 : i32
    %c0_i32_1 = arith.constant 0 : i32
    return %c0_i32, %c0_i32_0 : i32, i32
  }
  func.func @transform_3(%arg0: i32, %arg1: i32) -> i32 {
    %c0_i32 = arith.constant 0 : i32
    %c0_i32_0 = arith.constant 0 : i32
    return %c0_i32 : i32
  }
  func.func @transform_4(%arg0: i32, %arg1: i32) -> (i32, i32) {
    %c0_i32 = arith.constant 0 : i32
    %c0_i32_0 = arith.constant 0 : i32
    return %c0_i32, %arg0 : i32, i32
  }
}

module attributes {stable_mosaic.version = 11 : i64} {
  func.func @_mm_bias_prelu_kernel(%arg0: i32, %arg1: i32, %arg2: memref<32x128xbf16, #tpu.memory_space<vmem>>, %arg3: memref<128x512xbf16, #tpu.memory_space<vmem>>, %arg4: memref<32x1xf32, #tpu.memory_space<vmem>>, %arg5: memref<1xf32, #tpu.memory_space<smem>>, %arg6: memref<32x512xf32, #tpu.memory_space<vmem>>, %arg7: memref<32x512xf32, #tpu.memory_space<vmem>>) attributes {dimension_semantics = [#tpu.dimension_semantics<parallel>, #tpu.dimension_semantics<arbitrary>], iteration_bounds = array<i64: 1, 1>, scalar_prefetch = 0 : i64, scratch_operands = 1 : i64, tpu.core_type = #tpu.core_type<tc>, window_params = [{transform_indices = @transform_0, window_bounds = array<i64: 32, 128>}, {transform_indices = @transform_1, window_bounds = array<i64: 128, 512>}, {pipeline_mode = #tpu.pipeline_mode<synchronous>, transform_indices = @transform_2, window_bounds = array<i64: 32, 1>}, {transform_indices = @transform_3, window_bounds = array<i64: 1>}, {transform_indices = @transform_4, window_bounds = array<i64: 32, 512>}]} {
    %c0_i32 = arith.constant 0 : i32
    %0 = arith.cmpi eq, %arg1, %c0_i32 : i32
    %1 = arith.extui %0 : i1 to i32
    %c0_i32_0 = arith.constant 0 : i32
    %2 = arith.cmpi ne, %1, %c0_i32_0 : i32
    scf.if %2 {
      %cst_10 = arith.constant 0.000000e+00 : f32
      %12 = vector.broadcast %cst_10 : f32 to vector<32x512xf32>
      %c0_11 = arith.constant 0 : index
      %c0_12 = arith.constant 0 : index
      %13 = vector.load %arg7[%c0_11, %c0_12] : memref<32x512xf32, #tpu.memory_space<vmem>>, vector<32x512xf32>
      tpu.vector_store %arg7[%c0_11, %c0_12], %12 {strides = array<i32>} : memref<32x512xf32, #tpu.memory_space<vmem>>, vector<32x512xf32>,
    } else {
    }
    %c0 = arith.constant 0 : index
    %c0_1 = arith.constant 0 : index
    %3 = vector.load %arg7[%c0, %c0_1] : memref<32x512xf32, #tpu.memory_space<vmem>>, vector<32x512xf32>
    %c0_2 = arith.constant 0 : index
    %c0_3 = arith.constant 0 : index
    %4 = vector.load %arg2[%c0_2, %c0_3] : memref<32x128xbf16, #tpu.memory_space<vmem>>, vector<32x128xbf16>
    %c0_4 = arith.constant 0 : index
    %c0_5 = arith.constant 0 : index
    %5 = vector.load %arg3[%c0_4, %c0_5] : memref<128x512xbf16, #tpu.memory_space<vmem>>, vector<128x512xbf16>
    %cst = arith.constant dense<0.000000e+00> : vector<32x512xf32>
    %6 = tpu.matmul %4, %5, %cst {dimension_numbers = #tpu.dot_dimension_numbers<[1], [0], [0], [1], [0, 0, 1, 1], [], []>} : vector<32x128xbf16>, vector<128x512xbf16>, vector<32x512xf32> -> vector<32x512xf32>
    %7 = arith.addf %3, %6 : vector<32x512xf32>
    %c0_6 = arith.constant 0 : index
    %c0_7 = arith.constant 0 : index
    %8 = vector.load %arg7[%c0_6, %c0_7] : memref<32x512xf32, #tpu.memory_space<vmem>>, vector<32x512xf32>
    tpu.vector_store %arg7[%c0_6, %c0_7], %7 {strides = array<i32>} : memref<32x512xf32, #tpu.memory_space<vmem>>, vector<32x512xf32>,
    %c0_i32_8 = arith.constant 0 : i32
    %9 = arith.cmpi eq, %arg1, %c0_i32_8 : i32
    %10 = arith.extui %9 : i1 to i32
    %c0_i32_9 = arith.constant 0 : i32
    %11 = arith.cmpi ne, %10, %c0_i32_9 : i32
    scf.if %11 {
      %c0_10 = arith.constant 0 : index
      %c0_11 = arith.constant 0 : index
      %12 = vector.load %arg7[%c0_10, %c0_11] : memref<32x512xf32, #tpu.memory_space<vmem>>, vector<32x512xf32>
      %c0_12 = arith.constant 0 : index
      %c0_13 = arith.constant 0 : index
      %13 = vector.load %arg4[%c0_12, %c0_13] : memref<32x1xf32, #tpu.memory_space<vmem>>, vector<32x1xf32>
      %14 = vector.broadcast %13 : vector<32x1xf32> to vector<32x512xf32>
      %15 = arith.addf %12, %14 : vector<32x512xf32>
      %c0_14 = arith.constant 0 : index
      %16 = memref.load %arg5[%c0_14] : memref<1xf32, #tpu.memory_space<smem>>
      %cst_15 = arith.constant 0.000000e+00 : f32
      %17 = vector.broadcast %cst_15 : f32 to vector<32x512xf32>
      %18 = arith.cmpf oge, %15, %17 : vector<32x512xf32>
      %19 = vector.broadcast %16 : f32 to vector<32x512xf32>
      %20 = arith.mulf %19, %15 : vector<32x512xf32>
      %21 = arith.select %18, %15, %20 : vector<32x512xi1>, vector<32x512xf32>
      %c0_16 = arith.constant 0 : index
      %c0_17 = arith.constant 0 : index
      %22 = vector.load %arg6[%c0_16, %c0_17] : memref<32x512xf32, #tpu.memory_space<vmem>>, vector<32x512xf32>
      tpu.vector_store %arg6[%c0_16, %c0_17], %21 {strides = array<i32>} : memref<32x512xf32, #tpu.memory_space<vmem>>, vector<32x512xf32>,
    } else {
    }
    return
  }
  func.func @transform_0(%arg0: i32, %arg1: i32) -> (i32, i32) {
    %c0_i32 = arith.constant 0 : i32
    %c0_i32_0 = arith.constant 0 : i32
    return %c0_i32, %arg1 : i32, i32
  }
  func.func @transform_1(%arg0: i32, %arg1: i32) -> (i32, i32) {
    %c0_i32 = arith.constant 0 : i32
    return %arg1, %arg0 : i32, i32
  }
  func.func @transform_2(%arg0: i32, %arg1: i32) -> (i32, i32) {
    %c0_i32 = arith.constant 0 : i32
    %c0_i32_0 = arith.constant 0 : i32
    %c0_i32_1 = arith.constant 0 : i32
    return %c0_i32, %c0_i32_0 : i32, i32
  }
  func.func @transform_3(%arg0: i32, %arg1: i32) -> i32 {
    %c0_i32 = arith.constant 0 : i32
    %c0_i32_0 = arith.constant 0 : i32
    return %c0_i32 : i32
  }
  func.func @transform_4(%arg0: i32, %arg1: i32) -> (i32, i32) {
    %c0_i32 = arith.constant 0 : i32
    %c0_i32_0 = arith.constant 0 : i32
    return %c0_i32, %arg0 : i32, i32
  }
}

</mosaic_0001>

<llo_original>
// kernel: feedback_block_forward.17
$region0: #{feedback_block_forward.17}
  #allocation0 [shape = 'u32[]', space=smem, size = 0x4, offset = 0x4, fixed_abs, tag = 'smem constant byte address 0x4 - core index']
  #allocation1 [shape = 'u32[144,128]{1,0:T(1,128)}', space=vmem, size = 0x12000, scoped, tag = 'internal scratch']
  #allocation2 [shape = 'f32[32,128]{1,0:T(8,128)}', space=vmem, size = 0x4000, scoped, tag = 'scratch operand']
  #allocation3 [shape = 'f32[1]{0:T(128)S(6)}', space=smem, size = 0x200, scoped, tag = 'scoped memory for feedback_block_forward.17']
  %s0 = inlined_call_operand.vmem [shape: bf16[32,384], index: 0, kind: input, shape index: {}]
  %s1 = inlined_call_operand.vmem [shape: bf16[384,128], index: 1, kind: input, shape index: {}]
  %s2 = inlined_call_operand.vmem [shape: f32[32,1], index: 2, kind: input, shape index: {}]
  %s3 = inlined_call_operand.<no memory space> [shape: f32[1], index: 3, kind: input, shape index: {}]
  %s4 = inlined_call_operand.vmem [shape: f32[32,128], index: 4, kind: output, shape index: {}]
  %s5 = sld [smem:[#allocation0]]
  $region34: #{feedback_block_forward.17} parent=0
    _
  %s7 = ssub.s32 1, %s5
  %s8 = scalar_select 0, %s7, %s5
  %9 = sst [smem:[#allocation3]] %s3
  // Predicated region
  $region2: #{feedback_block_forward.17} parent=0 // pred_check
    _
  $region3: #{feedback_block_forward.17} parent=0 // pred_check_branch
    %11 = sbr.rel (0) target = $region5
  $region4: #{feedback_block_forward.17} parent=0 // pred_region
    _
  $region5: #{feedback_block_forward.17} parent=0 // pred_fallthru
    _
  // Predicated region
  $region6: #{feedback_block_forward.17} parent=0 // pred_check
    _
  $region7: #{feedback_block_forward.17} parent=0 // pred_check_branch
    %13 = sbr.rel (0) target = $region9
  $region8: #{feedback_block_forward.17} parent=0 // pred_region
    _
  $region9: #{feedback_block_forward.17} parent=0 // pred_fallthru
    _
  // Predicated region
  $region10: #{feedback_block_forward.17} parent=0 // pred_check
    _
  $region11: #{feedback_block_forward.17} parent=0 // pred_check_branch
    %15 = sbr.rel (0) target = $region13
  $region12: #{feedback_block_forward.17} parent=0 // pred_region
    _
  $region13: #{feedback_block_forward.17} parent=0 // pred_fallthru
    _
  // Predicated region
  $region14: #{feedback_block_forward.17} parent=0 // pred_check
    _
  $region15: #{feedback_block_forward.17} parent=0 // pred_check_branch
    %17 = sbr.rel (0) target = $region17
  $region16: #{feedback_block_forward.17} parent=0 // pred_region
    _
  $region17: #{feedback_block_forward.17} parent=0 // pred_fallthru
    _
  %p19 = scmp.eq.s32.totalorder 0, 0
  // Predicated region
  $region18: #{feedback_block_forward.17} parent=0 // pred_check
    %p20 = pneg %p19
  $region19: #{feedback_block_forward.17} parent=0 // pred_check_branch
    %22 = sbr.rel (%p20) target = $region21
  $region20: #{feedback_block_forward.17} parent=0 // pred_region
    %23 = vst [vmem:[#allocation2] sm:$0xff] 0.0
    %24 = vst [vmem:[#allocation2 + $0x8] sm:$0xff] 0.0
    %25 = vst [vmem:[#allocation2 + $0x10] sm:$0xff] 0.0
    %26 = vst [vmem:[#allocation2 + $0x18] sm:$0xff] 0.0
  $region21: #{feedback_block_forward.17} parent=0 // pred_fallthru
    _
  %v27 = vld [vmem:[#allocation2] sm:$0xff]
  %v28 = vld [vmem:[#allocation2 + $0x8] sm:$0xff]
  %v29 = vld [vmem:[#allocation2 + $0x10] sm:$0xff]
  %v30 = vld [vmem:[#allocation2 + $0x18] sm:$0xff]
  %v31 = vld [vmem:[%s0] sm:$0xff]
  %v32 = vld [vmem:[%s0 + $0x8] sm:$0xf]
  %v33 = vld [vmem:[%s0 + $0xc] sm:$0xff]
  %v34 = vld [vmem:[%s0 + $0x14] sm:$0xf]
  %v35 = vld [vmem:[%s0 + $0x18] sm:$0xff]
  %v36 = vld [vmem:[%s0 + $0x20] sm:$0xf]
  %v37 = vld [vmem:[%s0 + $0x24] sm:$0xff]
  %v38 = vld [vmem:[%s0 + $0x2c] sm:$0xf]
  %v39 = vld [vmem:[%s1] sm:$0xf]
  %v40 = vld [vmem:[%s1 + $0x4] sm:$0xf]
  %v41 = vld [vmem:[%s1 + $0x8] sm:$0xf]
  %v42 = vld [vmem:[%s1 + $0xc] sm:$0xf]
  %v43 = vld [vmem:[%s1 + $0x10] sm:$0xf]
  %v44 = vld [vmem:[%s1 + $0x14] sm:$0xf]
  %v45 = vld [vmem:[%s1 + $0x18] sm:$0xf]
  %v46 = vld [vmem:[%s1 + $0x1c] sm:$0xf]
  %v47 = vld [vmem:[%s1 + $0x20] sm:$0xf]
  %v48 = vld [vmem:[%s1 + $0x24] sm:$0xf]
  %v49 = vld [vmem:[%s1 + $0x28] sm:$0xf]
  %v50 = vld [vmem:[%s1 + $0x2c] sm:$0xf]
  %v51 = vld [vmem:[%s1 + $0x30] sm:$0xf]
  %v52 = vld [vmem:[%s1 + $0x34] sm:$0xf]
  %v53 = vld [vmem:[%s1 + $0x38] sm:$0xf]
  %v54 = vld [vmem:[%s1 + $0x3c] sm:$0xf]
  %v55 = vld [vmem:[%s1 + $0x40] sm:$0xf]
  %v56 = vld [vmem:[%s1 + $0x44] sm:$0xf]
  %v57 = vld [vmem:[%s1 + $0x48] sm:$0xf]
  %v58 = vld [vmem:[%s1 + $0x4c] sm:$0xf]
  %v59 = vld [vmem:[%s1 + $0x50] sm:$0xf]
  %v60 = vld [vmem:[%s1 + $0x54] sm:$0xf]
  %v61 = vld [vmem:[%s1 + $0x58] sm:$0xf]
  %v62 = vld [vmem:[%s1 + $0x5c] sm:$0xf]
  %v63 = vld [vmem:[%s1 + $0x60] sm:$0xf]
  %v64 = vld [vmem:[%s1 + $0x64] sm:$0xf]
  %v65 = vld [vmem:[%s1 + $0x68] sm:$0xf]
  %v66 = vld [vmem:[%s1 + $0x6c] sm:$0xf]
  %v67 = vld [vmem:[%s1 + $0x70] sm:$0xf]
  %v68 = vld [vmem:[%s1 + $0x74] sm:$0xf]
  %v69 = vld [vmem:[%s1 + $0x78] sm:$0xf]
  %v70 = vld [vmem:[%s1 + $0x7c] sm:$0xf]
  %v71 = vld [vmem:[%s1 + $0x80] sm:$0xf]
  %v72 = vld [vmem:[%s1 + $0x84] sm:$0xf]
  %v73 = vld [vmem:[%s1 + $0x88] sm:$0xf]
  %v74 = vld [vmem:[%s1 + $0x8c] sm:$0xf]
  %v75 = vld [vmem:[%s1 + $0x90] sm:$0xf]
  %v76 = vld [vmem:[%s1 + $0x94] sm:$0xf]
  %v77 = vld [vmem:[%s1 + $0x98] sm:$0xf]
  %v78 = vld [vmem:[%s1 + $0x9c] sm:$0xf]
  %v79 = vld [vmem:[%s1 + $0xa0] sm:$0xf]
  %v80 = vld [vmem:[%s1 + $0xa4] sm:$0xf]
  %v81 = vld [vmem:[%s1 + $0xa8] sm:$0xf]
  %v82 = vld [vmem:[%s1 + $0xac] sm:$0xf]
  %v83 = vld [vmem:[%s1 + $0xb0] sm:$0xf]
  %v84 = vld [vmem:[%s1 + $0xb4] sm:$0xf]
  %v85 = vld [vmem:[%s1 + $0xb8] sm:$0xf]
  %v86 = vld [vmem:[%s1 + $0xbc] sm:$0xf]
  %v95 = vunpack.c.l.b16 %v31
  %v96 = vunpack.c.h.b16 %v31
  %v97 = vunpack.c.l.b16 %v32
  %v98 = vunpack.c.l.b16 %v33
  %v99 = vunpack.c.h.b16 %v33
  %v100 = vunpack.c.l.b16 %v34
  %v101 = vunpack.c.l.b16 %v35
  %v102 = vunpack.c.h.b16 %v35
  %v103 = vunpack.c.l.b16 %v36
  %v104 = vunpack.c.l.b16 %v37
  %v105 = vunpack.c.h.b16 %v37
  %v106 = vunpack.c.l.b16 %v38
  %v107 = vpack.c.b16 %v98, %v95
  %v108 = vpack.c.b16 %v99, %v96
  %v109 = vpack.c.b16 %v100, %v97
  %v110 = vpack.c.b16 %v104, %v101
  %v111 = vpack.c.b16 %v105, %v102
  %v112 = vpack.c.b16 %v106, %v103
  %v167 = vunpack.c.l.b16 %v39
  %v168 = vunpack.c.l.b16 %v40
  %v169 = vunpack.c.l.b16 %v41
  %v170 = vunpack.c.l.b16 %v42
  %v171 = vunpack.c.l.b16 %v43
  %v172 = vunpack.c.l.b16 %v44
  %v173 = vunpack.c.l.b16 %v45
  %v174 = vunpack.c.l.b16 %v46
  %v175 = vunpack.c.l.b16 %v47
  %v176 = vunpack.c.l.b16 %v48
  %v177 = vunpack.c.l.b16 %v49
  %v178 = vunpack.c.l.b16 %v50
  %v179 = vunpack.c.l.b16 %v51
  %v180 = vunpack.c.l.b16 %v52
  %v181 = vunpack.c.l.b16 %v53
  %v182 = vunpack.c.l.b16 %v54
  %v183 = vunpack.c.l.b16 %v55
  %v184 = vunpack.c.l.b16 %v56
  %v185 = vunpack.c.l.b16 %v57
  %v186 = vunpack.c.l.b16 %v58
  %v187 = vunpack.c.l.b16 %v59
  %v188 = vunpack.c.l.b16 %v60
  %v189 = vunpack.c.l.b16 %v61
  %v190 = vunpack.c.l.b16 %v62
  %v191 = vunpack.c.l.b16 %v63
  %v192 = vunpack.c.l.b16 %v64
  %v193 = vunpack.c.l.b16 %v65
  %v194 = vunpack.c.l.b16 %v66
  %v195 = vunpack.c.l.b16 %v67
  %v196 = vunpack.c.l.b16 %v68
  %v197 = vunpack.c.l.b16 %v69
  %v198 = vunpack.c.l.b16 %v70
  %v199 = vunpack.c.l.b16 %v71
  %v200 = vunpack.c.l.b16 %v72
  %v201 = vunpack.c.l.b16 %v73
  %v202 = vunpack.c.l.b16 %v74
  %v203 = vunpack.c.l.b16 %v75
  %v204 = vunpack.c.l.b16 %v76
  %v205 = vunpack.c.l.b16 %v77
  %v206 = vunpack.c.l.b16 %v78
  %v207 = vunpack.c.l.b16 %v79
  %v208 = vunpack.c.l.b16 %v80
  %v209 = vunpack.c.l.b16 %v81
  %v210 = vunpack.c.l.b16 %v82
  %v211 = vunpack.c.l.b16 %v83
  %v212 = vunpack.c.l.b16 %v84
  %v213 = vunpack.c.l.b16 %v85
  %v214 = vunpack.c.l.b16 %v86
  %v215 = vpack.c.b16 %v168, %v167
  %v216 = vpack.c.b16 %v170, %v169
  %v217 = vpack.c.b16 %v172, %v171
  %v218 = vpack.c.b16 %v174, %v173
  %v219 = vpack.c.b16 %v176, %v175
  %v220 = vpack.c.b16 %v178, %v177
  %v221 = vpack.c.b16 %v180, %v179
  %v222 = vpack.c.b16 %v182, %v181
  %v223 = vpack.c.b16 %v184, %v183
  %v224 = vpack.c.b16 %v186, %v185
  %v225 = vpack.c.b16 %v188, %v187
  %v226 = vpack.c.b16 %v190, %v189
  %v227 = vpack.c.b16 %v192, %v191
  %v228 = vpack.c.b16 %v194, %v193
  %v229 = vpack.c.b16 %v196, %v195
  %v230 = vpack.c.b16 %v198, %v197
  %v231 = vpack.c.b16 %v200, %v199
  %v232 = vpack.c.b16 %v202, %v201
  %v233 = vpack.c.b16 %v204, %v203
  %v234 = vpack.c.b16 %v206, %v205
  %v235 = vpack.c.b16 %v208, %v207
  %v236 = vpack.c.b16 %v210, %v209
  %v237 = vpack.c.b16 %v212, %v211
  %v238 = vpack.c.b16 %v214, %v213
  %263 = vmatprep.subr.bf16.mxu0 0
  %264 = vmatpush1.bf16.msra.mxu0 %v215
  %265 = vmatprep.subr.bf16.mxu0 0
  %266 = vmatpush1.bf16.msra.mxu0 %v216
  %267 = vmatprep.subr.bf16.mxu0 0
  %268 = vmatpush1.bf16.msra.mxu0 %v217
  %269 = vmatprep.subr.bf16.mxu0 0
  %270 = vmatpush1.bf16.msra.mxu0 %v218
  %271 = vmatprep.subr.bf16.mxu0 0
  %272 = vmatpush1.bf16.msra.mxu0 %v219
  %273 = vmatprep.subr.bf16.mxu0 0
  %274 = vmatpush1.bf16.msra.mxu0 %v220
  %275 = vmatprep.subr.bf16.mxu0 0
  %276 = vmatpush1.bf16.msra.mxu0 %v221
  %277 = vmatprep.subr.bf16.mxu0 0
  %278 = vmatpush1.bf16.msra.mxu0 %v222
  %279 = vmatprep.subr.bf16.mxu0 0
  %280 = vmatpush1.bf16.msra.mxu0 %v223
  %281 = vmatprep.subr.bf16.mxu0 0
  %282 = vmatpush1.bf16.msra.mxu0 %v224
  %283 = vmatprep.subr.bf16.mxu0 0
  %284 = vmatpush1.bf16.msra.mxu0 %v225
  %285 = vmatprep.subr.bf16.mxu0 0
  %286 = vmatpush1.bf16.msra.mxu0 %v226
  %287 = vmatprep.subr.bf16.mxu0 0
  %288 = vmatpush1.bf16.msra.mxu0 %v227
  %289 = vmatprep.subr.bf16.mxu0 0
  %290 = vmatpush1.bf16.msra.mxu0 %v228
  %291 = vmatprep.subr.bf16.mxu0 0
  %292 = vmatpush1.bf16.msra.mxu0 %v229
  %293 = vmatprep.subr.bf16.mxu0 0
  %294 = vmatpush1.bf16.msra.mxu0 %v230
  %295 = vmatprep.mubr.bf16.mxu0 %v108
  %296 = vmatmul.mubr.bf16.gmra.mrb[0].mxu0 %v107
  %v297 = vpop.f32.mrb[0].mxu0
  %v298 = vadd.f32 0.0, %v297
  %v299 = vpop.f32.mrb[0].mxu0
  %v300 = vpop.f32.mrb[0].mxu0
  %v301 = vadd.f32 0.0, %v300
  %v302 = vpop.f32.mrb[0].mxu0
  %303 = vmatprep.mubr.bf16.mxu0 %v111
  %304 = vmatmul.mubr.bf16.gmra.mrb[0].mxu0 %v110
  %v305 = vpop.f32.mrb[0].mxu0
  %v306 = vadd.f32 0.0, %v305
  %v307 = vpop.f32.mrb[0].mxu0
  %v308 = vpop.f32.mrb[0].mxu0
  %v309 = vadd.f32 0.0, %v308
  %v310 = vpop.f32.mrb[0].mxu0
  %311 = vdwg.mxu0
  %312 = vmatprep.subr.bf16.mxu0 0
  %313 = vmatpush1.bf16.msra.mxu0 %v231
  %314 = vmatprep.subr.bf16.mxu0 0
  %315 = vmatpush1.bf16.msra.mxu0 %v232
  %316 = vmatprep.subr.bf16.mxu0 0
  %317 = vmatpush1.bf16.msra.mxu0 %v233
  %318 = vmatprep.subr.bf16.mxu0 0
  %319 = vmatpush1.bf16.msra.mxu0 %v234
  %320 = vmatprep.subr.bf16.mxu0 0
  %321 = vmatpush1.bf16.msra.mxu0 %v235
  %322 = vmatprep.subr.bf16.mxu0 0
  %323 = vmatpush1.bf16.msra.mxu0 %v236
  %324 = vmatprep.subr.bf16.mxu0 0
  %325 = vmatpush1.bf16.msra.mxu0 %v237
  %326 = vmatprep.subr.bf16.mxu0 0
  %327 = vmatpush1.bf16.msra.mxu0 %v238
  %328 = vmatprep.subr.bf16.mxu0 0
  %329 = vmatpush1.bf16.msra.mxu0 0
  %330 = vmatprep.subr.bf16.mxu0 0
  %331 = vmatpush1.bf16.msra.mxu0 0
  %332 = vmatprep.subr.bf16.mxu0 0
  %333 = vmatpush1.bf16.msra.mxu0 0
  %334 = vmatprep.subr.bf16.mxu0 0
  %335 = vmatpush1.bf16.msra.mxu0 0
  %336 = vmatprep.subr.bf16.mxu0 0
  %337 = vmatpush1.bf16.msra.mxu0 0
  %338 = vmatprep.subr.bf16.mxu0 0
  %339 = vmatpush1.bf16.msra.mxu0 0
  %340 = vmatprep.subr.bf16.mxu0 0
  %341 = vmatpush1.bf16.msra.mxu0 0
  %342 = vmatprep.subr.bf16.mxu0 0
  %343 = vmatpush1.bf16.msra.mxu0 0
  %344 = vmatprep.mubr.bf16.mxu0 0
  %345 = vmatmul.mubr.bf16.gmra.mrb[0].mxu0 %v109
  %v346 = vpop.f32.mrb[0].mxu0
  %v347 = vadd.f32 %v298, %v346
  %v348 = vpop.f32.mrb[0].mxu0
  %v349 = vpop.f32.mrb[0].mxu0
  %v350 = vadd.f32 %v301, %v349
  %v351 = vpop.f32.mrb[0].mxu0
  %352 = vmatprep.mubr.bf16.mxu0 0
  %353 = vmatmul.mubr.bf16.gmra.mrb[0].mxu0 %v112
  %v354 = vpop.f32.mrb[0].mxu0
  %v355 = vadd.f32 %v306, %v354
  %v356 = vpop.f32.mrb[0].mxu0
  %v357 = vpop.f32.mrb[0].mxu0
  %v358 = vadd.f32 %v309, %v357
  %v359 = vpop.f32.mrb[0].mxu0
  %360 = vdwg.mxu0
  %v361 = vadd.f32 %v27, %v347
  %v362 = vadd.f32 %v28, %v350
  %v363 = vadd.f32 %v29, %v355
  %v364 = vadd.f32 %v30, %v358
  %365 = vst [vmem:[#allocation2] sm:$0xff] %v361
  %366 = vst [vmem:[#allocation2 + $0x8] sm:$0xff] %v362
  %367 = vst [vmem:[#allocation2 + $0x10] sm:$0xff] %v363
  %368 = vst [vmem:[#allocation2 + $0x18] sm:$0xff] %v364
  // Predicated region
  $region22: #{feedback_block_forward.17} parent=0 // pred_check
    %p369 = pneg %p19
  $region23: #{feedback_block_forward.17} parent=0 // pred_check_branch
    %371 = sbr.rel (%p369) target = $region25
  $region24: #{feedback_block_forward.17} parent=0 // pred_region
    %v372 = vld [vmem:[#allocation2] sm:$0xff]
    %v373 = vld [vmem:[#allocation2 + $0x8] sm:$0xff]
    %v374 = vld [vmem:[#allocation2 + $0x10] sm:$0xff]
    %v375 = vld [vmem:[#allocation2 + $0x18] sm:$0xff]
    %v376 = vld [vmem:[%s2] sm:$0xff]
    %v377 = vld [vmem:[%s2 + $0x8] sm:$0xff]
    %v378 = vld [vmem:[%s2 + $0x10] sm:$0xff]
    %v379 = vld [vmem:[%s2 + $0x18] sm:$0xff]
    %381 = vset.pattern.permute.xlu0 0
    %382 = vperm.xlu0 %381, %v376
    %v383 = vpop.permute.xlu0 %382
    %386 = vset.pattern.permute.xlu0 0
    %387 = vperm.xlu0 %386, %v377
    %v388 = vpop.permute.xlu0 %387
    %391 = vset.pattern.permute.xlu0 0
    %392 = vperm.xlu0 %391, %v378
    %v393 = vpop.permute.xlu0 %392
    %396 = vset.pattern.permute.xlu0 0
    %397 = vperm.xlu0 %396, %v379
    %v398 = vpop.permute.xlu0 %397
    %v400 = vadd.f32 %v372, %v383
    %v401 = vadd.f32 %v373, %v388
    %v402 = vadd.f32 %v374, %v393
    %v403 = vadd.f32 %v375, %v398
    %s404 = sld [smem:[#allocation3]]
    %vm405 = vcmp.ge.f32.partialorder %v400, 0.0
    %vm406 = vcmp.ge.f32.partialorder %v401, 0.0
    %vm407 = vcmp.ge.f32.partialorder %v402, 0.0
    %vm408 = vcmp.ge.f32.partialorder %v403, 0.0
    %v409 = vstv %s404
    %v410 = vmul.f32 %v409, %v400
    %v411 = vmul.f32 %v409, %v401
    %v412 = vmul.f32 %v409, %v402
    %v413 = vmul.f32 %v409, %v403
    %v414 = vsel %vm405, %v400, %v410
    %v415 = vsel %vm406, %v401, %v411
    %v416 = vsel %vm407, %v402, %v412
    %v417 = vsel %vm408, %v403, %v413
    %418 = vst [vmem:[%s4] sm:$0xff] %v414
    %419 = vst [vmem:[%s4 + $0x8] sm:$0xff] %v415
    %420 = vst [vmem:[%s4 + $0x10] sm:$0xff] %v416
    %421 = vst [vmem:[%s4 + $0x18] sm:$0xff] %v417
  $region25: #{feedback_block_forward.17} parent=0 // pred_fallthru
    _
  // Predicated region
  $region26: #{feedback_block_forward.17} parent=0 // pred_check
    _
  $region27: #{feedback_block_forward.17} parent=0 // pred_check_branch
    %423 = sbr.rel (0) target = $region29
  $region28: #{feedback_block_forward.17} parent=0 // pred_region
    _
  $region29: #{feedback_block_forward.17} parent=0 // pred_fallthru
    _
  // Predicated region
  $region30: #{feedback_block_forward.17} parent=0 // pred_check
    _
  $region31: #{feedback_block_forward.17} parent=0 // pred_check_branch
    %425 = sbr.rel (0) target = $region33
  $region32: #{feedback_block_forward.17} parent=0 // pred_region
    _
  $region33: #{feedback_block_forward.17} parent=0 // pred_fallthru
    _

// kernel: feedback_block_forward.14
$region0: #{feedback_block_forward.14}
  #allocation0 [shape = 'u32[]', space=smem, size = 0x4, offset = 0x4, fixed_abs, tag = 'smem constant byte address 0x4 - core index']
  #allocation1 [shape = 'u32[144,128]{1,0:T(1,128)}', space=vmem, size = 0x12000, scoped, tag = 'internal scratch']
  #allocation2 [shape = 'f32[14,14]{1,0:T(8,128)}', space=vmem, size = 0x2000, scoped, tag = 'scratch operand']
  #allocation3 [shape = 'f32[14,14]{1,0:T(8,128)}', space=vmem, size = 0x2000, scoped, tag = 'scratch operand']
  #allocation4 [shape = 'f32[1]{0:T(128)S(6)}', space=smem, size = 0x200, scoped, tag = 'scoped memory for feedback_block_forward.14']
  %s0 = inlined_call_operand.vmem [shape: f32[2,8,8,32], index: 0, kind: input, shape index: {}]
  %s1 = inlined_call_operand.vmem [shape: f32[32,2], index: 1, kind: input, shape index: {}]
  %s2 = inlined_call_operand.vmem [shape: f32[2,32], index: 2, kind: input, shape index: {}]
  %s3 = inlined_call_operand.vmem [shape: f32[98], index: 3, kind: input, shape index: {}]
  %s4 = inlined_call_operand.vmem [shape: f32[32,32], index: 4, kind: input, shape index: {}]
  %s5 = inlined_call_operand.vmem [shape: f32[1,32], index: 5, kind: input, shape index: {}]
  %s6 = inlined_call_operand.<no memory space> [shape: f32[1], index: 6, kind: input, shape index: {}]
  %s7 = inlined_call_operand.vmem [shape: f32[2,8,8,32], index: 7, kind: output, shape index: {}]
  %s8 = sld [smem:[#allocation0]]
  $region65: #{feedback_block_forward.14} parent=0
    _
  %s10 = ssub.s32 1, %s8
  %s11 = scalar_select 0, %s10, %s8
  %12 = sst [smem:[#allocation4]] %s6
  $region1: #{feedback_block_forward.14} parent=0
    #allocation5 [shape = 'u8[512]{0}', space=smem, size = 0x200, scoped, tag = 'input window, operand 3, single buffered']
    #allocation6 [shape = 's32[2]{0}', space=sflag, size = 0x8, scoped, tag = 'scoped memory for feedback_block_forward.14']
    %13 = vsyncpa [#allocation6], 0
    loop: start=0, step=1, limit=4
    $region2: #{feedback_block_forward.14} parent=1 // loop_pre_header
      _
    $region3: #{feedback_block_forward.14} parent=1 // loop_header
      %s15 = sphi 0, %s19
      %p16 = scmp.ge.s32.totalorder %s15, 4
      %s25 = sphi 0, %s27
      %s28 = sphi 0, %s25
      %s29 = sphi 0, %s28
      %s45 = sphi 0, %s29
      %s49 = sphi 0, %s49
      %s51 = sphi 0, %s49
      %s52 = sphi 0, %s51
      %s66 = sphi 0, %s52
      %s70 = sphi 0, %s70
      %s72 = sphi 0, %s70
      %s73 = sphi 0, %s72
      %s87 = sphi 0, %s73
      %s91 = sphi 0, %s91
      %s93 = sphi 0, %s91
      %s94 = sphi 0, %s93
      %s108 = sphi 0, %s94
      %s112 = sphi 0, %s112
      %s114 = sphi 0, %s112
      %s115 = sphi 0, %s114
      %s129 = sphi 0, %s115
      %s133 = sphi 0, %s133
      %s135 = sphi 0, %s133
      %s136 = sphi 0, %s135
      %s150 = sphi 0, %s136
      %s154 = sphi 0, %s154
      %s156 = sphi 0, %s154
      %s157 = sphi 0, %s156
      %s171 = sphi 0, %s157
      %s177 = sphi 0, %s179
      %s180 = sphi 0, %s177
      %s181 = sphi 0, %s180
      %s197 = sphi 0, %s181
    $region4: #{feedback_block_forward.14} parent=1 // loop_header_branch
      %18 = sbr.rel (%p16) target = $region8
    $region5: #{feedback_block_forward.14} parent=1 // loop_body
      %s20 = ssub.s32 %s15, 1
      %s21 = ssub.s32 %s15, 2
      %s22 = sadd.s32 %s15, 1
      %s23 = ssub.s32 %s15, %s22
      %p24 = scmp.eq.s32.totalorder %s23, 0
      %s26 = sadd.s32 %s25, 1
      %s27 = scalar_select %p24, %s25, %s26
      %p30 = pneg %p24
      %p31 = scmp.eq.s32.totalorder %s15, 1
      %p32 = por %p30, %p31
      %p33 = scmp.ne.s32.totalorder %s25, %s28
      %p34 = scmp.eq.s32.totalorder %s15, 0
      %p35 = por %p33, %p34
      %p36 = scmp.ne.s32.totalorder %s25, %s28
      %p37 = scmp.eq.s32.totalorder %s20, 1
      %p38 = por %p36, %p37
      %p39 = scmp.ne.s32.totalorder %s28, %s29
      %p40 = scmp.eq.s32.totalorder %s20, 0
      %p41 = por %p39, %p40
      %p42 = scmp.ne.s32.totalorder %s28, %s29
      %p43 = scmp.eq.s32.totalorder %s21, 1
      %p44 = por %p42, %p43
      %p46 = scmp.ne.s32.totalorder %s29, %s45
      %p47 = scmp.eq.s32.totalorder %s21, 0
      %p48 = por %p46, %p47
      %s50 = sadd.s32 %s49, 1
      %p53 = scmp.eq.s32.totalorder %s15, 1
      %p54 = scmp.ne.s32.totalorder %s49, %s51
      %p55 = scmp.eq.s32.totalorder %s15, 0
      %p56 = por %p54, %p55
      %p57 = scmp.ne.s32.totalorder %s49, %s51
      %p58 = scmp.eq.s32.totalorder %s20, 1
      %p59 = por %p57, %p58
      %p60 = scmp.ne.s32.totalorder %s51, %s52
      %p61 = scmp.eq.s32.totalorder %s20, 0
      %p62 = por %p60, %p61
      %p63 = scmp.ne.s32.totalorder %s51, %s52
      %p64 = scmp.eq.s32.totalorder %s21, 1
      %p65 = por %p63, %p64
      %p67 = scmp.ne.s32.totalorder %s52, %s66
      %p68 = scmp.eq.s32.totalorder %s21, 0
      %p69 = por %p67, %p68
      %s71 = sadd.s32 %s70, 1
      %p74 = scmp.eq.s32.totalorder %s15, 1
      %p75 = scmp.ne.s32.totalorder %s70, %s72
      %p76 = scmp.eq.s32.totalorder %s15, 0
      %p77 = por %p75, %p76
      %p78 = scmp.ne.s32.totalorder %s70, %s72
      %p79 = scmp.eq.s32.totalorder %s20, 1
      %p80 = por %p78, %p79
      %p81 = scmp.ne.s32.totalorder %s72, %s73
      %p82 = scmp.eq.s32.totalorder %s20, 0
      %p83 = por %p81, %p82
      %p84 = scmp.ne.s32.totalorder %s72, %s73
      %p85 = scmp.eq.s32.totalorder %s21, 1
      %p86 = por %p84, %p85
      %p88 = scmp.ne.s32.totalorder %s73, %s87
      %p89 = scmp.eq.s32.totalorder %s21, 0
      %p90 = por %p88, %p89
      %s92 = sadd.s32 %s91, 1
      %p95 = scmp.eq.s32.totalorder %s15, 1
      %p96 = scmp.ne.s32.totalorder %s91, %s93
      %p97 = scmp.eq.s32.totalorder %s15, 0
      %p98 = por %p96, %p97
      %p99 = scmp.ne.s32.totalorder %s91, %s93
      %p100 = scmp.eq.s32.totalorder %s20, 1
      %p101 = por %p99, %p100
      %p102 = scmp.ne.s32.totalorder %s93, %s94
      %p103 = scmp.eq.s32.totalorder %s20, 0
      %p104 = por %p102, %p103
      %p105 = scmp.ne.s32.totalorder %s93, %s94
      %p106 = scmp.eq.s32.totalorder %s21, 1
      %p107 = por %p105, %p106
      %p109 = scmp.ne.s32.totalorder %s94, %s108
      %p110 = scmp.eq.s32.totalorder %s21, 0
      %p111 = por %p109, %p110
      %s113 = sadd.s32 %s112, 1
      %p116 = scmp.eq.s32.totalorder %s15, 1
      %p117 = scmp.ne.s32.totalorder %s112, %s114
      %p118 = scmp.eq.s32.totalorder %s15, 0
      %p119 = por %p117, %p118
      %p120 = scmp.ne.s32.totalorder %s112, %s114
      %p121 = scmp.eq.s32.totalorder %s20, 1
      %p122 = por %p120, %p121
      %p123 = scmp.ne.s32.totalorder %s114, %s115
      %p124 = scmp.eq.s32.totalorder %s20, 0
      %p125 = por %p123, %p124
      %p126 = scmp.ne.s32.totalorder %s114, %s115
      %p127 = scmp.eq.s32.totalorder %s21, 1
      %p128 = por %p126, %p127
      %p130 = scmp.ne.s32.totalorder %s115, %s129
      %p131 = scmp.eq.s32.totalorder %s21, 0
      %p132 = por %p130, %p131
      %s134 = sadd.s32 %s133, 1
      %p137 = scmp.eq.s32.totalorder %s15, 1
      %p138 = scmp.ne.s32.totalorder %s133, %s135
      %p139 = scmp.eq.s32.totalorder %s15, 0
      %p140 = por %p138, %p139
      %p141 = scmp.ne.s32.totalorder %s133, %s135
      %p142 = scmp.eq.s32.totalorder %s20, 1
      %p143 = por %p141, %p142
      %p144 = scmp.ne.s32.totalorder %s135, %s136
      %p145 = scmp.eq.s32.totalorder %s20, 0
      %p146 = por %p144, %p145
      %p147 = scmp.ne.s32.totalorder %s135, %s136
      %p148 = scmp.eq.s32.totalorder %s21, 1
      %p149 = por %p147, %p148
      %p151 = scmp.ne.s32.totalorder %s136, %s150
      %p152 = scmp.eq.s32.totalorder %s21, 0
      %p153 = por %p151, %p152
      %s155 = sadd.s32 %s154, 1
      %p158 = scmp.eq.s32.totalorder %s15, 1
      %p159 = scmp.ne.s32.totalorder %s154, %s156
      %p160 = scmp.eq.s32.totalorder %s15, 0
      %p161 = por %p159, %p160
      %p162 = scmp.ne.s32.totalorder %s154, %s156
      %p163 = scmp.eq.s32.totalorder %s20, 1
      %p164 = por %p162, %p163
      %p165 = scmp.ne.s32.totalorder %s156, %s157
      %p166 = scmp.eq.s32.totalorder %s20, 0
      %p167 = por %p165, %p166
      %p168 = scmp.ne.s32.totalorder %s156, %s157
      %p169 = scmp.eq.s32.totalorder %s21, 1
      %p170 = por %p168, %p169
      %p172 = scmp.ne.s32.totalorder %s157, %s171
      %p173 = scmp.eq.s32.totalorder %s21, 0
      %p174 = por %p172, %p173
      %s175 = ssub.s32 %s15, %s22
      %p176 = scmp.eq.s32.totalorder %s175, 0
      %s178 = sadd.s32 %s177, 1
      %s179 = scalar_select %p176, %s177, %s178
      %p182 = pneg %p176
      %p183 = scmp.eq.s32.totalorder %s15, 1
      %p184 = por %p182, %p183
      %p185 = scmp.ne.s32.totalorder %s177, %s180
      %p186 = scmp.eq.s32.totalorder %s15, 0
      %p187 = por %p185, %p186
      %p188 = scmp.ne.s32.totalorder %s177, %s180
      %p189 = scmp.eq.s32.totalorder %s20, 1
      %p190 = por %p188, %p189
      %p191 = scmp.ne.s32.totalorder %s180, %s181
      %p192 = scmp.eq.s32.totalorder %s20, 0
      %p193 = por %p191, %p192
      %p194 = scmp.ne.s32.totalorder %s180, %s181
      %p195 = scmp.eq.s32.totalorder %s21, 1
      %p196 = por %p194, %p195
      %p198 = scmp.ne.s32.totalorder %s181, %s197
      %p199 = scmp.eq.s32.totalorder %s21, 0
      %p200 = por %p198, %p199
      %p201 = scmp.le.s32.totalorder 1, %s15
      %p202 = scmp.lt.s32.totalorder %s15, 3
      %p203 = pnand %p201, %p202
      %p204 = pneg %p203
      // Predicated region
      $region9: #{feedback_block_forward.14} parent=5 // pred_check
        _
      $region10: #{feedback_block_forward.14} parent=5 // pred_check_branch
        %206 = sbr.rel (%p203) target = $region12
      $region11: #{feedback_block_forward.14} parent=5 // pred_region
        %s207 = ssub.s32 %s15, 1
        // Predicated region
        $region13: #{feedback_block_forward.14} parent=11 // pred_check
          %p208 = pneg %p62
        $region14: #{feedback_block_forward.14} parent=11 // pred_check_branch
          %210 = sbr.rel (%p208) target = $region16
        $region15: #{feedback_block_forward.14} parent=11 // pred_region
          _
        $region16: #{feedback_block_forward.14} parent=11 // pred_fallthru
          _
        // Predicated region
        $region17: #{feedback_block_forward.14} parent=11 // pred_check
          %p211 = pneg %p83
        $region18: #{feedback_block_forward.14} parent=11 // pred_check_branch
          %213 = sbr.rel (%p211) target = $region20
        $region19: #{feedback_block_forward.14} parent=11 // pred_region
          _
        $region20: #{feedback_block_forward.14} parent=11 // pred_fallthru
          _
        // Predicated region
        $region21: #{feedback_block_forward.14} parent=11 // pred_check
          %p214 = pneg %p104
        $region22: #{feedback_block_forward.14} parent=11 // pred_check_branch
          %216 = sbr.rel (%p214) target = $region24
        $region23: #{feedback_block_forward.14} parent=11 // pred_region
          %s218 = ssub.s32 16, 16
          %219 = vsyncadd [#allocation6], %s218
          %s221 = sshll.u32 %s3, 4
          %s222 = int_to_ptr.vmem [resolvable:$true] %s221
          %224 = dma.vmem_to_smem %s222, 16, [#allocation5], [#allocation6]
        $region24: #{feedback_block_forward.14} parent=11 // pred_fallthru
          _
        // Predicated region
        $region25: #{feedback_block_forward.14} parent=11 // pred_check
          %p225 = pneg %p125
        $region26: #{feedback_block_forward.14} parent=11 // pred_check_branch
          %227 = sbr.rel (%p225) target = $region28
        $region27: #{feedback_block_forward.14} parent=11 // pred_region
          _
        $region28: #{feedback_block_forward.14} parent=11 // pred_fallthru
          _
        // Predicated region
        $region29: #{feedback_block_forward.14} parent=11 // pred_check
          %p228 = pneg %p146
        $region30: #{feedback_block_forward.14} parent=11 // pred_check_branch
          %230 = sbr.rel (%p228) target = $region32
        $region31: #{feedback_block_forward.14} parent=11 // pred_region
          _
        $region32: #{feedback_block_forward.14} parent=11 // pred_fallthru
          _
        // Predicated region
        $region33: #{feedback_block_forward.14} parent=11 // pred_check
          %p231 = pneg %p167
        $region34: #{feedback_block_forward.14} parent=11 // pred_check_branch
          %233 = sbr.rel (%p231) target = $region36
        $region35: #{feedback_block_forward.14} parent=11 // pred_region
          _
        $region36: #{feedback_block_forward.14} parent=11 // pred_fallthru
          _
      $region12: #{feedback_block_forward.14} parent=5 // pred_fallthru
        _
      %p234 = scmp.lt.s32.totalorder %s15, 2
      // Predicated region
      $region37: #{feedback_block_forward.14} parent=5 // pred_check
        %p235 = pneg %p234
      $region38: #{feedback_block_forward.14} parent=5 // pred_check_branch
        %237 = sbr.rel (%p235) target = $region40
      $region39: #{feedback_block_forward.14} parent=5 // pred_region
        // Predicated region
        $region41: #{feedback_block_forward.14} parent=39 // pred_check
          %p238 = pneg %p35
        $region42: #{feedback_block_forward.14} parent=39 // pred_check_branch
          %240 = sbr.rel (%p238) target = $region44
        $region43: #{feedback_block_forward.14} parent=39 // pred_region
          %p241 = scmp.lt.s32.totalorder %s15, 1
          %s242 = scalar_select %p241, %s15, 1
          %s243 = smul.addr %s242, 8
          %s244 = smul.addr %s243, 8
          %s245 = scalar_lea.vmem %s0, %s244
        $region44: #{feedback_block_forward.14} parent=39 // pred_fallthru
          _
      $region40: #{feedback_block_forward.14} parent=5 // pred_fallthru
        _
      %p246 = scmp.le.s32.totalorder 1, %s15
      %p247 = scmp.lt.s32.totalorder %s15, 3
      %p248 = pnand %p246, %p247
      %p249 = pneg %p248
      // Predicated region
      $region45: #{feedback_block_forward.14} parent=5 // pred_check
        _
      $region46: #{feedback_block_forward.14} parent=5 // pred_check_branch
        %251 = sbr.rel (%p248) target = $region48
      $region47: #{feedback_block_forward.14} parent=5 // pred_region
        %s252 = ssub.s32 %s15, 1
        // Predicated region
        $region49: #{feedback_block_forward.14} parent=47 // pred_check
          %p253 = pneg %p104
        $region50: #{feedback_block_forward.14} parent=47 // pred_check_branch
          %255 = sbr.rel (%p253) target = $region52
        $region51: #{feedback_block_forward.14} parent=47 // pred_region
          %256 = dma.done [#allocation6], 16
        $region52: #{feedback_block_forward.14} parent=47 // pred_fallthru
          _
        %257 = sfence
        %p258 = scmp.lt.s32.totalorder %s20, 1
        %s259 = scalar_select %p258, %s20, 1
        %s260 = smul.addr %s259, 8
        %s261 = smul.addr %s260, 8
        %s262 = scalar_lea.vmem %s0, %s261
        %p263 = pneg %p41
        %p264 = pneg %p38
        %p265 = pneg %p62
        %p266 = pneg %p59
        %p267 = pneg %p83
        %p268 = pneg %p80
        %p269 = pneg %p104
        %p270 = pneg %p101
        %p271 = pneg %p125
        %p272 = pneg %p122
        %p273 = pneg %p146
        %p274 = pneg %p143
        %p275 = pneg %p167
        %p276 = pneg %p164
        %p277 = pneg %p193
        %p278 = pneg %p190
        %p279 = scmp.lt.s32.totalorder %s20, 1
        %s280 = scalar_select %p279, %s20, 1
        %s281 = smul.addr %s280, 8
        %s282 = smul.addr %s281, 8
        %s283 = scalar_lea.vmem %s7, %s282
        %p284 = scmp.lt.s32.totalorder %s20, 1
        %s285 = scalar_select %p284, %s20, 1
        %s286 = smul.addr %s285, 8
        %s287 = smul.addr %s286, 8
        %s288 = scalar_lea.vmem %s0, %s287
        %p289 = scmp.lt.s32.totalorder %s20, 1
        %s290 = scalar_select %p289, %s20, 1
        %s291 = smul.addr %s290, 8
        %s292 = smul.addr %s291, 8
        %s293 = scalar_lea.vmem %s7, %s292
        %v294 = vld [vmem:[%s288] sm:$0xff]
        %v295 = vld [vmem:[%s288 + $0x8] sm:$0xff]
        %v296 = vld [vmem:[%s288 + $0x10] sm:$0xff]
        %v297 = vld [vmem:[%s288 + $0x18] sm:$0xff]
        %v298 = vld [vmem:[%s288 + $0x20] sm:$0xff]
        %v299 = vld [vmem:[%s288 + $0x28] sm:$0xff]
        %v300 = vld [vmem:[%s288 + $0x30] sm:$0xff]
        %v301 = vld [vmem:[%s288 + $0x38] sm:$0xff]
        %vm302 = vcmask 261120
        %v303 = vsel %vm302, %v294, 0.0
        %v304 = vsel %vm302, %v295, 0.0
        %v305 = vadd.f32 %v303, %v304
        %v306 = vsel %vm302, %v296, 0.0
        %v307 = vadd.f32 %v305, %v306
        %v308 = vsel %vm302, %v297, 0.0
        %v309 = vadd.f32 %v307, %v308
        %v310 = vsel %vm302, %v298, 0.0
        %v311 = vadd.f32 %v309, %v310
        %v312 = vsel %vm302, %v299, 0.0
        %v313 = vadd.f32 %v311, %v312
        %v314 = vsel %vm302, %v300, 0.0
        %v315 = vadd.f32 %v313, %v314
        %v316 = vsel %vm302, %v301, 0.0
        %v317 = vadd.f32 %v315, %v316
        %v318 = vrot.slane %v317, 4
        %v319 = vadd.f32 %v317, %v318
        %v320 = vrot.slane %v319, 2
        %v321 = vadd.f32 %v319, %v320
        %v322 = vrot.slane %v321, 1
        %v323 = vadd.f32 %v321, %v322
        %v324 = vrcp.pop 64.0
        %v325 = vmul.f32 %v323, %v324
        %v326 = vsel %vm302, %v294, -inf
        %v327 = vsel %vm302, %v295, -inf
        %v328 = vsel %vm302, %v296, -inf
        %v329 = vsel %vm302, %v297, -inf
        %v330 = vsel %vm302, %v298, -inf
        %v331 = vmax.f32 %v326, %v330
        %v332 = vsel %vm302, %v299, -inf
        %v333 = vmax.f32 %v327, %v332
        %v334 = vsel %vm302, %v300, -inf
        %v335 = vmax.f32 %v328, %v334
        %v336 = vsel %vm302, %v301, -inf
        %v337 = vmax.f32 %v329, %v336
        %v338 = vmax.f32 %v331, %v333
        %v339 = vmax.f32 %v335, %v337
        %v340 = vmax.f32 %v338, %v339
        %v341 = vrot.slane %v340, 4
        %v342 = vmax.f32 %v340, %v341
        %v343 = vrot.slane %v342, 2
        %v344 = vmax.f32 %v342, %v343
        %v345 = vrot.slane %v344, 1
        %v346 = vmax.f32 %v344, %v345
        %vm347 = vcmask 1040384
        %v348 = vsel %vm347, %v325, %v346
        %v349 = vld [vmem:[%s1] sm:$0xff]
        %v350 = vld [vmem:[%s1 + $0x8] sm:$0xff]
        %v351 = vld [vmem:[%s1 + $0x10] sm:$0xff]
        %v352 = vld [vmem:[%s1 + $0x18] sm:$0xff]
        %v354 = vsel %vm302, %v348, 0
        %356 = vmatprep.subr.mxu0 0.0
        %357 = vmatpush1.msra.mxu0 %v349
        %358 = vmatprep.subr.mxu0 0.0
        %359 = vmatpush1.msra.mxu0 %v350
        %360 = vmatprep.subr.mxu0 0.0
        %361 = vmatpush1.msra.mxu0 %v351
        %362 = vmatprep.subr.mxu0 0.0
        %363 = vmatpush1.msra.mxu0 %v352
        %364 = vmatprep.subr.mxu0 0.0
        %365 = vmatpush1.msra.mxu0 0.0
        %366 = vmatprep.subr.mxu0 0.0
        %367 = vmatpush1.msra.mxu0 0.0
        %368 = vmatprep.subr.mxu0 0.0
        %369 = vmatpush1.msra.mxu0 0.0
        %370 = vmatprep.subr.mxu0 0.0
        %371 = vmatpush1.msra.mxu0 0.0
        %372 = vmatprep.subr.mxu0 0.0
        %373 = vmatpush1.msra.mxu0 0.0
        %374 = vmatprep.subr.mxu0 0.0
        %375 = vmatpush1.msra.mxu0 0.0
        %376 = vmatprep.subr.mxu0 0.0
        %377 = vmatpush1.msra.mxu0 0.0
        %378 = vmatprep.subr.mxu0 0.0
        %379 = vmatpush1.msra.mxu0 0.0
        %380 = vmatprep.subr.mxu0 0.0
        %381 = vmatpush1.msra.mxu0 0.0
        %382 = vmatprep.subr.mxu0 0.0
        %383 = vmatpush1.msra.mxu0 0.0
        %384 = vmatprep.subr.mxu0 0.0
        %385 = vmatpush1.msra.mxu0 0.0
        %386 = vmatprep.subr.mxu0 0.0
        %387 = vmatpush1.msra.mxu0 0.0
        %388 = vmatprep.subr.mxu0 0.0
        %389 = vmatpush1.msra.mxu0 0.0
        %390 = vmatprep.subr.mxu0 0.0
        %391 = vmatpush1.msra.mxu0 0.0
        %392 = vmatprep.subr.mxu0 0.0
        %393 = vmatpush1.msra.mxu0 0.0
        %394 = vmatprep.subr.mxu0 0.0
        %395 = vmatpush1.msra.mxu0 0.0
        %396 = vmatprep.subr.mxu0 0.0
        %397 = vmatpush1.msra.mxu0 0.0
        %398 = vmatprep.subr.mxu0 0.0
        %399 = vmatpush1.msra.mxu0 0.0
        %400 = vmatprep.subr.mxu0 0.0
        %401 = vmatpush1.msra.mxu0 0.0
        %402 = vmatprep.subr.mxu0 0.0
        %403 = vmatpush1.msra.mxu0 0.0
        %404 = vmatprep.subr.mxu0 0.0
        %405 = vmatpush1.msra.mxu0 0.0
        %406 = vmatprep.subr.mxu0 0.0
        %407 = vmatpush1.msra.mxu0 0.0
        %408 = vmatprep.subr.mxu0 0.0
        %409 = vmatpush1.msra.mxu0 0.0
        %410 = vmatprep.subr.mxu0 0.0
        %411 = vmatpush1.msra.mxu0 0.0
        %412 = vmatprep.subr.mxu0 0.0
        %413 = vmatpush1.msra.mxu0 0.0
        %414 = vmatprep.subr.mxu0 0.0
        %415 = vmatpush1.msra.mxu0 0.0
        %416 = vmatprep.subr.mxu0 0.0
        %417 = vmatpush1.msra.mxu0 0.0
        %418 = vmatprep.subr.mxu0 0.0
        %419 = vmatpush1.msra.mxu0 0.0
        %420 = vmatprep.mubr.f32.mxu0 0.0
        %421 = vmatmul.mubr.f32.gmra.mrb[0].mxu0 %v354
        %v422 = vpop.f32.mrb[0].mxu0
        %v423 = vadd.f32 0.0, %v422
        %v424 = vpop.f32.mrb[0].mxu0
        %425 = vdwg.mxu0
        %v426 = vmax.f32 %v423, 0.0
        %v427 = vld [vmem:[%s2] sm:$0x3]
        %vm428 = vcmask 15360
        %v430 = vsel %vm428, %v426, 0
        %vm432 = vcmask 1041408
        %v434 = vsel %vm432, %v427, 0
        %436 = vmatprep.subr.mxu0 0.0
        %437 = vmatpush1.msra.mxu0 %v434
        %438 = vmatprep.subr.mxu0 0.0
        %439 = vmatpush1.msra.mxu0 0.0
        %440 = vmatprep.subr.mxu0 0.0
        %441 = vmatpush1.msra.mxu0 0.0
        %442 = vmatprep.subr.mxu0 0.0
        %443 = vmatpush1.msra.mxu0 0.0
        %444 = vmatprep.subr.mxu0 0.0
        %445 = vmatpush1.msra.mxu0 0.0
        %446 = vmatprep.subr.mxu0 0.0
        %447 = vmatpush1.msra.mxu0 0.0
        %448 = vmatprep.subr.mxu0 0.0
        %449 = vmatpush1.msra.mxu0 0.0
        %450 = vmatprep.subr.mxu0 0.0
        %451 = vmatpush1.msra.mxu0 0.0
        %452 = vmatprep.subr.mxu0 0.0
        %453 = vmatpush1.msra.mxu0 0.0
        %454 = vmatprep.subr.mxu0 0.0
        %455 = vmatpush1.msra.mxu0 0.0
        %456 = vmatprep.subr.mxu0 0.0
        %457 = vmatpush1.msra.mxu0 0.0
        %458 = vmatprep.subr.mxu0 0.0
        %459 = vmatpush1.msra.mxu0 0.0
        %460 = vmatprep.subr.mxu0 0.0
        %461 = vmatpush1.msra.mxu0 0.0
        %462 = vmatprep.subr.mxu0 0.0
        %463 = vmatpush1.msra.mxu0 0.0
        %464 = vmatprep.subr.mxu0 0.0
        %465 = vmatpush1.msra.mxu0 0.0
        %466 = vmatprep.subr.mxu0 0.0
        %467 = vmatpush1.msra.mxu0 0.0
        %468 = vmatprep.subr.mxu0 0.0
        %469 = vmatpush1.msra.mxu0 0.0
        %470 = vmatprep.subr.mxu0 0.0
        %471 = vmatpush1.msra.mxu0 0.0
        %472 = vmatprep.subr.mxu0 0.0
        %473 = vmatpush1.msra.mxu0 0.0
        %474 = vmatprep.subr.mxu0 0.0
        %475 = vmatpush1.msra.mxu0 0.0
        %476 = vmatprep.subr.mxu0 0.0
        %477 = vmatpush1.msra.mxu0 0.0
        %478 = vmatprep.subr.mxu0 0.0
        %479 = vmatpush1.msra.mxu0 0.0
        %480 = vmatprep.subr.mxu0 0.0
        %481 = vmatpush1.msra.mxu0 0.0
        %482 = vmatprep.subr.mxu0 0.0
        %483 = vmatpush1.msra.mxu0 0.0
        %484 = vmatprep.subr.mxu0 0.0
        %485 = vmatpush1.msra.mxu0 0.0
        %486 = vmatprep.subr.mxu0 0.0
        %487 = vmatpush1.msra.mxu0 0.0
        %488 = vmatprep.subr.mxu0 0.0
        %489 = vmatpush1.msra.mxu0 0.0
        %490 = vmatprep.subr.mxu0 0.0
        %491 = vmatpush1.msra.mxu0 0.0
        %492 = vmatprep.subr.mxu0 0.0
        %493 = vmatpush1.msra.mxu0 0.0
        %494 = vmatprep.subr.mxu0 0.0
        %495 = vmatpush1.msra.mxu0 0.0
        %496 = vmatprep.subr.mxu0 0.0
        %497 = vmatpush1.msra.mxu0 0.0
        %498 = vmatprep.subr.mxu0 0.0
        %499 = vmatpush1.msra.mxu0 0.0
        %500 = vmatprep.mubr.f32.mxu0 0.0
        %501 = vmatmul.mubr.f32.gmra.mrb[0].mxu0 %v430
        %v502 = vpop.f32.mrb[0].mxu0
        %v503 = vadd.f32 0.0, %v502
        %v504 = vpop.f32.mrb[0].mxu0
        %505 = vdwg.mxu0
        %v507 = vrot.slane %v503, 1
        %v509 = vadd.f32 %v503, %v507
        %v510 = vsub.f32 0.0, %v509
        %v511 = vmul.f32 %v510, 1.442695
        %v512 = vpow.pop %v511
        %v513 = vadd.f32 %v512, 1.0
        %v514 = vrcp.pop %v513
        %v515 = vmul.f32 1.0, %v514
        %v516 = vlaneseq
        %v517 = vshrl.u32 %v516, 7
        %v518 = vsub.s32 0, %v517
        %v519 = vrot.slane %v515, %v518
        %v520 = vmul.f32 %v294, %v519
        %v521 = vmul.f32 %v295, %v519
        %v522 = vmul.f32 %v296, %v519
        %v523 = vmul.f32 %v297, %v519
        %v524 = vmul.f32 %v298, %v519
        %v525 = vmul.f32 %v299, %v519
        %v526 = vmul.f32 %v300, %v519
        %v527 = vmul.f32 %v301, %v519
        %v528 = vsel %vm302, %v520, 0.0
        %529 = vadd.xlane.f32.xlu0 %v528
        %v530 = vpop.xlane.xlu0 %529
        %v531 = vsel %vm302, %v521, 0.0
        %532 = vadd.xlane.f32.xlu0 %v531
        %v533 = vpop.xlane.xlu0 %532
        %v534 = vsel %vm302, %v522, 0.0
        %535 = vadd.xlane.f32.xlu0 %v534
        %v536 = vpop.xlane.xlu0 %535
        %v537 = vsel %vm302, %v523, 0.0
        %538 = vadd.xlane.f32.xlu0 %v537
        %v539 = vpop.xlane.xlu0 %538
        %v540 = vsel %vm302, %v524, 0.0
        %541 = vadd.xlane.f32.xlu0 %v540
        %v542 = vpop.xlane.xlu0 %541
        %v543 = vsel %vm302, %v525, 0.0
        %544 = vadd.xlane.f32.xlu0 %v543
        %v545 = vpop.xlane.xlu0 %544
        %v546 = vsel %vm302, %v526, 0.0
        %547 = vadd.xlane.f32.xlu0 %v546
        %v548 = vpop.xlane.xlu0 %547
        %v549 = vsel %vm302, %v527, 0.0
        %550 = vadd.xlane.f32.xlu0 %v549
        %v551 = vpop.xlane.xlu0 %550
        %v552 = vrcp.pop 32.0
        %v553 = vmul.f32 %v530, %v552
        %v554 = vmul.f32 %v533, %v552
        %v555 = vmul.f32 %v536, %v552
        %v556 = vmul.f32 %v539, %v552
        %v557 = vmul.f32 %v542, %v552
        %v558 = vmul.f32 %v545, %v552
        %v559 = vmul.f32 %v548, %v552
        %v560 = vmul.f32 %v551, %v552
        %v561 = vsel %vm302, %v520, -inf
        %562 = vmax.xlane.f32.xlu0 %v561
        %v563 = vpop.xlane.xlu0 %562
        %v564 = vsel %vm302, %v521, -inf
        %565 = vmax.xlane.f32.xlu0 %v564
        %v566 = vpop.xlane.xlu0 %565
        %v567 = vsel %vm302, %v522, -inf
        %568 = vmax.xlane.f32.xlu0 %v567
        %v569 = vpop.xlane.xlu0 %568
        %v570 = vsel %vm302, %v523, -inf
        %571 = vmax.xlane.f32.xlu0 %v570
        %v572 = vpop.xlane.xlu0 %571
        %v573 = vsel %vm302, %v524, -inf
        %574 = vmax.xlane.f32.xlu0 %v573
        %v575 = vpop.xlane.xlu0 %574
        %v576 = vsel %vm302, %v525, -inf
        %577 = vmax.xlane.f32.xlu0 %v576
        %v578 = vpop.xlane.xlu0 %577
        %v579 = vsel %vm302, %v526, -inf
        %580 = vmax.xlane.f32.xlu0 %v579
        %v581 = vpop.xlane.xlu0 %580
        %v582 = vsel %vm302, %v527, -inf
        %583 = vmax.xlane.f32.xlu0 %v582
        %v584 = vpop.xlane.xlu0 %583
        %vm585 = vcmask 113664
        %586 = vst.msk [vmem:[#allocation2] sm:$0xff] %vm585, 0.0
        %vm587 = vcmask 111616
        %588 = vst.msk [vmem:[#allocation2 + $0x8] sm:$0x3f] %vm587, 0.0
        %589 = vst.msk [vmem:[#allocation3] sm:$0xff] %vm585, 0.0
        %590 = vst.msk [vmem:[#allocation3 + $0x8] sm:$0x3f] %vm587, 0.0
        %v599 = vlaneseq
        %v600 = vand.u32 %v599, 127
        %v601 = vadd.s32 %v600, 4294967293
        %v602 = vlaneseq
        %v603 = vshrl.u32 %v602, 7
        %v604 = vsub.s32 %v601, %v603
        %v605 = vrot.slane %v553, %v604
        %v606 = vlaneseq
        %v607 = vshrl.u32 %v606, 7
        %v608 = vsub.s32 %v601, %v607
        %v609 = vrot.slane %v554, %v608
        %v610 = vlaneseq
        %v611 = vshrl.u32 %v610, 7
        %v612 = vsub.s32 %v601, %v611
        %v613 = vrot.slane %v555, %v612
        %v614 = vlaneseq
        %v615 = vshrl.u32 %v614, 7
        %v616 = vsub.s32 %v601, %v615
        %v617 = vrot.slane %v556, %v616
        %v618 = vlaneseq
        %v619 = vshrl.u32 %v618, 7
        %v620 = vsub.s32 %v601, %v619
        %v621 = vrot.slane %v557, %v620
        %v622 = vlaneseq
        %v623 = vshrl.u32 %v622, 7
        %v624 = vsub.s32 %v601, %v623
        %v625 = vrot.slane %v558, %v624
        %v626 = vlaneseq
        %v627 = vshrl.u32 %v626, 7
        %v628 = vsub.s32 %v601, %v627
        %v629 = vrot.slane %v559, %v628
        %v630 = vlaneseq
        %v631 = vshrl.u32 %v630, 7
        %v632 = vsub.s32 %v601, %v631
        %v633 = vrot.slane %v560, %v632
        %vm634 = vcmask 1041409
        %v635 = vsel %vm634, %v609, %v605
        %vm636 = vcmask 1042434
        %v637 = vsel %vm636, %v613, %v635
        %vm638 = vcmask 1043459
        %v639 = vsel %vm638, %v617, %v637
        %vm640 = vcmask 1044484
        %v641 = vsel %vm640, %v621, %v639
        %vm642 = vcmask 1045509
        %v643 = vsel %vm642, %v625, %v641
        %vm644 = vcmask 1046534
        %v645 = vsel %vm644, %v629, %v643
        %vm646 = vcmask 1047559
        %v647 = vsel %vm646, %v633, %v645
        %vm649 = vcmask 89112
        %650 = vst.msk [vmem:[#allocation2 + $0x3] sm:$0xff] %vm649, %v647
        %v659 = vlaneseq
        %v660 = vshrl.u32 %v659, 7
        %v661 = vsub.s32 %v601, %v660
        %v662 = vrot.slane %v563, %v661
        %v663 = vlaneseq
        %v664 = vshrl.u32 %v663, 7
        %v665 = vsub.s32 %v601, %v664
        %v666 = vrot.slane %v566, %v665
        %v667 = vlaneseq
        %v668 = vshrl.u32 %v667, 7
        %v669 = vsub.s32 %v601, %v668
        %v670 = vrot.slane %v569, %v669
        %v671 = vlaneseq
        %v672 = vshrl.u32 %v671, 7
        %v673 = vsub.s32 %v601, %v672
        %v674 = vrot.slane %v572, %v673
        %v675 = vlaneseq
        %v676 = vshrl.u32 %v675, 7
        %v677 = vsub.s32 %v601, %v676
        %v678 = vrot.slane %v575, %v677
        %v679 = vlaneseq
        %v680 = vshrl.u32 %v679, 7
        %v681 = vsub.s32 %v601, %v680
        %v682 = vrot.slane %v578, %v681
        %v683 = vlaneseq
        %v684 = vshrl.u32 %v683, 7
        %v685 = vsub.s32 %v601, %v684
        %v686 = vrot.slane %v581, %v685
        %v687 = vlaneseq
        %v688 = vshrl.u32 %v687, 7
        %v689 = vsub.s32 %v601, %v688
        %v690 = vrot.slane %v584, %v689
        %v691 = vsel %vm634, %v666, %v662
        %v692 = vsel %vm636, %v670, %v691
        %v693 = vsel %vm638, %v674, %v692
        %v694 = vsel %vm640, %v678, %v693
        %v695 = vsel %vm642, %v682, %v694
        %v696 = vsel %vm644, %v686, %v695
        %v697 = vsel %vm646, %v690, %v696
        %699 = vst.msk [vmem:[#allocation3 + $0x3] sm:$0xff] %vm649, %v697
        %v700 = vld [vmem:[#allocation2] sm:$0xff]
        %s701 = sld [smem:[#allocation5]]
        %v702 = vstv %s701
        %v703 = vmul.f32 %v700, %v702
        %v704 = vadd.f32 %v703, 0.0
        %v705 = vld [vmem:[#allocation3] sm:$0xff]
        %s706 = sld [smem:[#allocation5 + $0x1]]
        %v707 = vstv %s706
        %v708 = vmul.f32 %v705, %v707
        %v709 = vadd.f32 %v704, %v708
        %s710 = sld [smem:[#allocation5 + $0x2]]
        %v711 = vstv %s710
        %v712 = vmul.f32 %v700, %v711
        %714 = vrot.lane.b32.xlu0 %v712, 127
        %v715 = vpop.permute.xlu0 %714
        %v717 = vadd.f32 %v709, %v715
        %s718 = sld [smem:[#allocation5 + $0x3]]
        %v719 = vstv %s718
        %v720 = vmul.f32 %v705, %v719
        %722 = vrot.lane.b32.xlu0 %v720, 127
        %v723 = vpop.permute.xlu0 %722
        %v725 = vadd.f32 %v717, %v723
        %s726 = sld [smem:[#allocation5 + $0x4]]
        %v727 = vstv %s726
        %v728 = vmul.f32 %v700, %v727
        %730 = vrot.lane.b32.xlu0 %v728, 126
        %v731 = vpop.permute.xlu0 %730
        %v733 = vadd.f32 %v725, %v731
        %s734 = sld [smem:[#allocation5 + $0x5]]
        %v735 = vstv %s734
        %v736 = vmul.f32 %v705, %v735
        %738 = vrot.lane.b32.xlu0 %v736, 126
        %v739 = vpop.permute.xlu0 %738
        %v741 = vadd.f32 %v733, %v739
        %s742 = sld [smem:[#allocation5 + $0x6]]
        %v743 = vstv %s742
        %v744 = vmul.f32 %v700, %v743
        %746 = vrot.lane.b32.xlu0 %v744, 125
        %v747 = vpop.permute.xlu0 %746
        %v749 = vadd.f32 %v741, %v747
        %s750 = sld [smem:[#allocation5 + $0x7]]
        %v751 = vstv %s750
        %v752 = vmul.f32 %v705, %v751
        %754 = vrot.lane.b32.xlu0 %v752, 125
        %v755 = vpop.permute.xlu0 %754
        %v757 = vadd.f32 %v749, %v755
        %s758 = sld [smem:[#allocation5 + $0x8]]
        %v759 = vstv %s758
        %v760 = vmul.f32 %v700, %v759
        %762 = vrot.lane.b32.xlu0 %v760, 124
        %v763 = vpop.permute.xlu0 %762
        %v765 = vadd.f32 %v757, %v763
        %s766 = sld [smem:[#allocation5 + $0x9]]
        %v767 = vstv %s766
        %v768 = vmul.f32 %v705, %v767
        %770 = vrot.lane.b32.xlu0 %v768, 124
        %v771 = vpop.permute.xlu0 %770
        %v773 = vadd.f32 %v765, %v771
        %s774 = sld [smem:[#allocation5 + $0xa]]
        %v775 = vstv %s774
        %v776 = vmul.f32 %v700, %v775
        %778 = vrot.lane.b32.xlu0 %v776, 123
        %v779 = vpop.permute.xlu0 %778
        %v781 = vadd.f32 %v773, %v779
        %s782 = sld [smem:[#allocation5 + $0xb]]
        %v783 = vstv %s782
        %v784 = vmul.f32 %v705, %v783
        %786 = vrot.lane.b32.xlu0 %v784, 123
        %v787 = vpop.permute.xlu0 %786
        %v789 = vadd.f32 %v781, %v787
        %s790 = sld [smem:[#allocation5 + $0xc]]
        %v791 = vstv %s790
        %v792 = vmul.f32 %v700, %v791
        %794 = vrot.lane.b32.xlu0 %v792, 122
        %v795 = vpop.permute.xlu0 %794
        %v797 = vadd.f32 %v789, %v795
        %s798 = sld [smem:[#allocation5 + $0xd]]
        %v799 = vstv %s798
        %v800 = vmul.f32 %v705, %v799
        %802 = vrot.lane.b32.xlu0 %v800, 122
        %v803 = vpop.permute.xlu0 %802
        %v805 = vadd.f32 %v797, %v803
        %v806 = vld [vmem:[#allocation2 + $0x1] sm:$0xff]
        %s807 = sld [smem:[#allocation5 + $0xe]]
        %v808 = vstv %s807
        %v809 = vmul.f32 %v806, %v808
        %v810 = vadd.f32 %v805, %v809
        %v811 = vld [vmem:[#allocation3 + $0x1] sm:$0xff]
        %s812 = sld [smem:[#allocation5 + $0xf]]
        %v813 = vstv %s812
        %v814 = vmul.f32 %v811, %v813
        %v815 = vadd.f32 %v810, %v814
        %s816 = sld [smem:[#allocation5 + $0x10]]
        %v817 = vstv %s816
        %v818 = vmul.f32 %v806, %v817
        %820 = vrot.lane.b32.xlu0 %v818, 127
        %v821 = vpop.permute.xlu0 %820
        %v823 = vadd.f32 %v815, %v821
        %s824 = sld [smem:[#allocation5 + $0x11]]
        %v825 = vstv %s824
        %v826 = vmul.f32 %v811, %v825
        %828 = vrot.lane.b32.xlu0 %v826, 127
        %v829 = vpop.permute.xlu0 %828
        %v831 = vadd.f32 %v823, %v829
        %s832 = sld [smem:[#allocation5 + $0x12]]
        %v833 = vstv %s832
        %v834 = vmul.f32 %v806, %v833
        %836 = vrot.lane.b32.xlu0 %v834, 126
        %v837 = vpop.permute.xlu0 %836
        %v839 = vadd.f32 %v831, %v837
        %s840 = sld [smem:[#allocation5 + $0x13]]
        %v841 = vstv %s840
        %v842 = vmul.f32 %v811, %v841
        %844 = vrot.lane.b32.xlu0 %v842, 126
        %v845 = vpop.permute.xlu0 %844
        %v847 = vadd.f32 %v839, %v845
        %s848 = sld [smem:[#allocation5 + $0x14]]
        %v849 = vstv %s848
        %v850 = vmul.f32 %v806, %v849
        %852 = vrot.lane.b32.xlu0 %v850, 125
        %v853 = vpop.permute.xlu0 %852
        %v855 = vadd.f32 %v847, %v853
        %s856 = sld [smem:[#allocation5 + $0x15]]
        %v857 = vstv %s856
        %v858 = vmul.f32 %v811, %v857
        %860 = vrot.lane.b32.xlu0 %v858, 125
        %v861 = vpop.permute.xlu0 %860
        %v863 = vadd.f32 %v855, %v861
        %s864 = sld [smem:[#allocation5 + $0x16]]
        %v865 = vstv %s864
        %v866 = vmul.f32 %v806, %v865
        %868 = vrot.lane.b32.xlu0 %v866, 124
        %v869 = vpop.permute.xlu0 %868
        %v871 = vadd.f32 %v863, %v869
        %s872 = sld [smem:[#allocation5 + $0x17]]
        %v873 = vstv %s872
        %v874 = vmul.f32 %v811, %v873
        %876 = vrot.lane.b32.xlu0 %v874, 124
        %v877 = vpop.permute.xlu0 %876
        %v879 = vadd.f32 %v871, %v877
        %s880 = sld [smem:[#allocation5 + $0x18]]
        %v881 = vstv %s880
        %v882 = vmul.f32 %v806, %v881
        %884 = vrot.lane.b32.xlu0 %v882, 123
        %v885 = vpop.permute.xlu0 %884
        %v887 = vadd.f32 %v879, %v885
        %s888 = sld [smem:[#allocation5 + $0x19]]
        %v889 = vstv %s888
        %v890 = vmul.f32 %v811, %v889
        %892 = vrot.lane.b32.xlu0 %v890, 123
        %v893 = vpop.permute.xlu0 %892
        %v895 = vadd.f32 %v887, %v893
        %s896 = sld [smem:[#allocation5 + $0x1a]]
        %v897 = vstv %s896
        %v898 = vmul.f32 %v806, %v897
        %900 = vrot.lane.b32.xlu0 %v898, 122
        %v901 = vpop.permute.xlu0 %900
        %v903 = vadd.f32 %v895, %v901
        %s904 = sld [smem:[#allocation5 + $0x1b]]
        %v905 = vstv %s904
        %v906 = vmul.f32 %v811, %v905
        %908 = vrot.lane.b32.xlu0 %v906, 122
        %v909 = vpop.permute.xlu0 %908
        %v911 = vadd.f32 %v903, %v909
        %v912 = vld [vmem:[#allocation2 + $0x2] sm:$0xff]
        %s913 = sld [smem:[#allocation5 + $0x1c]]
        %v914 = vstv %s913
        %v915 = vmul.f32 %v912, %v914
        %v916 = vadd.f32 %v911, %v915
        %v917 = vld [vmem:[#allocation3 + $0x2] sm:$0xff]
        %s918 = sld [smem:[#allocation5 + $0x1d]]
        %v919 = vstv %s918
        %v920 = vmul.f32 %v917, %v919
        %v921 = vadd.f32 %v916, %v920
        %s922 = sld [smem:[#allocation5 + $0x1e]]
        %v923 = vstv %s922
        %v924 = vmul.f32 %v912, %v923
        %926 = vrot.lane.b32.xlu0 %v924, 127
        %v927 = vpop.permute.xlu0 %926
        %v929 = vadd.f32 %v921, %v927
        %s930 = sld [smem:[#allocation5 + $0x1f]]
        %v931 = vstv %s930
        %v932 = vmul.f32 %v917, %v931
        %934 = vrot.lane.b32.xlu0 %v932, 127
        %v935 = vpop.permute.xlu0 %934
        %v937 = vadd.f32 %v929, %v935
        %s938 = sld [smem:[#allocation5 + $0x20]]
        %v939 = vstv %s938
        %v940 = vmul.f32 %v912, %v939
        %942 = vrot.lane.b32.xlu0 %v940, 126
        %v943 = vpop.permute.xlu0 %942
        %v945 = vadd.f32 %v937, %v943
        %s946 = sld [smem:[#allocation5 + $0x21]]
        %v947 = vstv %s946
        %v948 = vmul.f32 %v917, %v947
        %950 = vrot.lane.b32.xlu0 %v948, 126
        %v951 = vpop.permute.xlu0 %950
        %v953 = vadd.f32 %v945, %v951
        %s954 = sld [smem:[#allocation5 + $0x22]]
        %v955 = vstv %s954
        %v956 = vmul.f32 %v912, %v955
        %958 = vrot.lane.b32.xlu0 %v956, 125
        %v959 = vpop.permute.xlu0 %958
        %v961 = vadd.f32 %v953, %v959
        %s962 = sld [smem:[#allocation5 + $0x23]]
        %v963 = vstv %s962
        %v964 = vmul.f32 %v917, %v963
        %966 = vrot.lane.b32.xlu0 %v964, 125
        %v967 = vpop.permute.xlu0 %966
        %v969 = vadd.f32 %v961, %v967
        %s970 = sld [smem:[#allocation5 + $0x24]]
        %v971 = vstv %s970
        %v972 = vmul.f32 %v912, %v971
        %974 = vrot.lane.b32.xlu0 %v972, 124
        %v975 = vpop.permute.xlu0 %974
        %v977 = vadd.f32 %v969, %v975
        %s978 = sld [smem:[#allocation5 + $0x25]]
        %v979 = vstv %s978
        %v980 = vmul.f32 %v917, %v979
        %982 = vrot.lane.b32.xlu0 %v980, 124
        %v983 = vpop.permute.xlu0 %982
        %v985 = vadd.f32 %v977, %v983
        %s986 = sld [smem:[#allocation5 + $0x26]]
        %v987 = vstv %s986
        %v988 = vmul.f32 %v912, %v987
        %990 = vrot.lane.b32.xlu0 %v988, 123
        %v991 = vpop.permute.xlu0 %990
        %v993 = vadd.f32 %v985, %v991
        %s994 = sld [smem:[#allocation5 + $0x27]]
        %v995 = vstv %s994
        %v996 = vmul.f32 %v917, %v995
        %998 = vrot.lane.b32.xlu0 %v996, 123
        %v999 = vpop.permute.xlu0 %998
        %v1001 = vadd.f32 %v993, %v999
        %s1002 = sld [smem:[#allocation5 + $0x28]]
        %v1003 = vstv %s1002
        %v1004 = vmul.f32 %v912, %v1003
        %1006 = vrot.lane.b32.xlu0 %v1004, 122
        %v1007 = vpop.permute.xlu0 %1006
        %v1009 = vadd.f32 %v1001, %v1007
        %s1010 = sld [smem:[#allocation5 + $0x29]]
        %v1011 = vstv %s1010
        %v1012 = vmul.f32 %v917, %v1011
        %1014 = vrot.lane.b32.xlu0 %v1012, 122
        %v1015 = vpop.permute.xlu0 %1014
        %v1017 = vadd.f32 %v1009, %v1015
        %v1018 = vld [vmem:[#allocation2 + $0x3] sm:$0xff]
        %s1019 = sld [smem:[#allocation5 + $0x2a]]
        %v1020 = vstv %s1019
        %v1021 = vmul.f32 %v1018, %v1020
        %v1022 = vadd.f32 %v1017, %v1021
        %v1023 = vld [vmem:[#allocation3 + $0x3] sm:$0xff]
        %s1024 = sld [smem:[#allocation5 + $0x2b]]
        %v1025 = vstv %s1024
        %v1026 = vmul.f32 %v1023, %v1025
        %v1027 = vadd.f32 %v1022, %v1026
        %s1028 = sld [smem:[#allocation5 + $0x2c]]
        %v1029 = vstv %s1028
        %v1030 = vmul.f32 %v1018, %v1029
        %1032 = vrot.lane.b32.xlu0 %v1030, 127
        %v1033 = vpop.permute.xlu0 %1032
        %v1035 = vadd.f32 %v1027, %v1033
        %s1036 = sld [smem:[#allocation5 + $0x2d]]
        %v1037 = vstv %s1036
        %v1038 = vmul.f32 %v1023, %v1037
        %1040 = vrot.lane.b32.xlu0 %v1038, 127
        %v1041 = vpop.permute.xlu0 %1040
        %v1043 = vadd.f32 %v1035, %v1041
        %s1044 = sld [smem:[#allocation5 + $0x2e]]
        %v1045 = vstv %s1044
        %v1046 = vmul.f32 %v1018, %v1045
        %1048 = vrot.lane.b32.xlu0 %v1046, 126
        %v1049 = vpop.permute.xlu0 %1048
        %v1051 = vadd.f32 %v1043, %v1049
        %s1052 = sld [smem:[#allocation5 + $0x2f]]
        %v1053 = vstv %s1052
        %v1054 = vmul.f32 %v1023, %v1053
        %1056 = vrot.lane.b32.xlu0 %v1054, 126
        %v1057 = vpop.permute.xlu0 %1056
        %v1059 = vadd.f32 %v1051, %v1057
        %s1060 = sld [smem:[#allocation5 + $0x30]]
        %v1061 = vstv %s1060
        %v1062 = vmul.f32 %v1018, %v1061
        %1064 = vrot.lane.b32.xlu0 %v1062, 125
        %v1065 = vpop.permute.xlu0 %1064
        %v1067 = vadd.f32 %v1059, %v1065
        %s1068 = sld [smem:[#allocation5 + $0x31]]
        %v1069 = vstv %s1068
        %v1070 = vmul.f32 %v1023, %v1069
        %1072 = vrot.lane.b32.xlu0 %v1070, 125
        %v1073 = vpop.permute.xlu0 %1072
        %v1075 = vadd.f32 %v1067, %v1073
        %s1076 = sld [smem:[#allocation5 + $0x32]]
        %v1077 = vstv %s1076
        %v1078 = vmul.f32 %v1018, %v1077
        %1080 = vrot.lane.b32.xlu0 %v1078, 124
        %v1081 = vpop.permute.xlu0 %1080
        %v1083 = vadd.f32 %v1075, %v1081
        %s1084 = sld [smem:[#allocation5 + $0x33]]
        %v1085 = vstv %s1084
        %v1086 = vmul.f32 %v1023, %v1085
        %1088 = vrot.lane.b32.xlu0 %v1086, 124
        %v1089 = vpop.permute.xlu0 %1088
        %v1091 = vadd.f32 %v1083, %v1089
        %s1092 = sld [smem:[#allocation5 + $0x34]]
        %v1093 = vstv %s1092
        %v1094 = vmul.f32 %v1018, %v1093
        %1096 = vrot.lane.b32.xlu0 %v1094, 123
        %v1097 = vpop.permute.xlu0 %1096
        %v1099 = vadd.f32 %v1091, %v1097
        %s1100 = sld [smem:[#allocation5 + $0x35]]
        %v1101 = vstv %s1100
        %v1102 = vmul.f32 %v1023, %v1101
        %1104 = vrot.lane.b32.xlu0 %v1102, 123
        %v1105 = vpop.permute.xlu0 %1104
        %v1107 = vadd.f32 %v1099, %v1105
        %s1108 = sld [smem:[#allocation5 + $0x36]]
        %v1109 = vstv %s1108
        %v1110 = vmul.f32 %v1018, %v1109
        %1112 = vrot.lane.b32.xlu0 %v1110, 122
        %v1113 = vpop.permute.xlu0 %1112
        %v1115 = vadd.f32 %v1107, %v1113
        %s1116 = sld [smem:[#allocation5 + $0x37]]
        %v1117 = vstv %s1116
        %v1118 = vmul.f32 %v1023, %v1117
        %1120 = vrot.lane.b32.xlu0 %v1118, 122
        %v1121 = vpop.permute.xlu0 %1120
        %v1123 = vadd.f32 %v1115, %v1121
        %v1124 = vld [vmem:[#allocation2 + $0x4] sm:$0xff]
        %s1125 = sld [smem:[#allocation5 + $0x38]]
        %v1126 = vstv %s1125
        %v1127 = vmul.f32 %v1124, %v1126
        %v1128 = vadd.f32 %v1123, %v1127
        %v1129 = vld [vmem:[#allocation3 + $0x4] sm:$0xff]
        %s1130 = sld [smem:[#allocation5 + $0x39]]
        %v1131 = vstv %s1130
        %v1132 = vmul.f32 %v1129, %v1131
        %v1133 = vadd.f32 %v1128, %v1132
        %s1134 = sld [smem:[#allocation5 + $0x3a]]
        %v1135 = vstv %s1134
        %v1136 = vmul.f32 %v1124, %v1135
        %1138 = vrot.lane.b32.xlu0 %v1136, 127
        %v1139 = vpop.permute.xlu0 %1138
        %v1141 = vadd.f32 %v1133, %v1139
        %s1142 = sld [smem:[#allocation5 + $0x3b]]
        %v1143 = vstv %s1142
        %v1144 = vmul.f32 %v1129, %v1143
        %1146 = vrot.lane.b32.xlu0 %v1144, 127
        %v1147 = vpop.permute.xlu0 %1146
        %v1149 = vadd.f32 %v1141, %v1147
        %s1150 = sld [smem:[#allocation5 + $0x3c]]
        %v1151 = vstv %s1150
        %v1152 = vmul.f32 %v1124, %v1151
        %1154 = vrot.lane.b32.xlu0 %v1152, 126
        %v1155 = vpop.permute.xlu0 %1154
        %v1157 = vadd.f32 %v1149, %v1155
        %s1158 = sld [smem:[#allocation5 + $0x3d]]
        %v1159 = vstv %s1158
        %v1160 = vmul.f32 %v1129, %v1159
        %1162 = vrot.lane.b32.xlu0 %v1160, 126
        %v1163 = vpop.permute.xlu0 %1162
        %v1165 = vadd.f32 %v1157, %v1163
        %s1166 = sld [smem:[#allocation5 + $0x3e]]
        %v1167 = vstv %s1166
        %v1168 = vmul.f32 %v1124, %v1167
        %1170 = vrot.lane.b32.xlu0 %v1168, 125
        %v1171 = vpop.permute.xlu0 %1170
        %v1173 = vadd.f32 %v1165, %v1171
        %s1174 = sld [smem:[#allocation5 + $0x3f]]
        %v1175 = vstv %s1174
        %v1176 = vmul.f32 %v1129, %v1175
        %1178 = vrot.lane.b32.xlu0 %v1176, 125
        %v1179 = vpop.permute.xlu0 %1178
        %v1181 = vadd.f32 %v1173, %v1179
        %s1182 = sld [smem:[#allocation5 + $0x40]]
        %v1183 = vstv %s1182
        %v1184 = vmul.f32 %v1124, %v1183
        %1186 = vrot.lane.b32.xlu0 %v1184, 124
        %v1187 = vpop.permute.xlu0 %1186
        %v1189 = vadd.f32 %v1181, %v1187
        %s1190 = sld [smem:[#allocation5 + $0x41]]
        %v1191 = vstv %s1190
        %v1192 = vmul.f32 %v1129, %v1191
        %1194 = vrot.lane.b32.xlu0 %v1192, 124
        %v1195 = vpop.permute.xlu0 %1194
        %v1197 = vadd.f32 %v1189, %v1195
        %s1198 = sld [smem:[#allocation5 + $0x42]]
        %v1199 = vstv %s1198
        %v1200 = vmul.f32 %v1124, %v1199
        %1202 = vrot.lane.b32.xlu0 %v1200, 123
        %v1203 = vpop.permute.xlu0 %1202
        %v1205 = vadd.f32 %v1197, %v1203
        %s1206 = sld [smem:[#allocation5 + $0x43]]
        %v1207 = vstv %s1206
        %v1208 = vmul.f32 %v1129, %v1207
        %1210 = vrot.lane.b32.xlu0 %v1208, 123
        %v1211 = vpop.permute.xlu0 %1210
        %v1213 = vadd.f32 %v1205, %v1211
        %s1214 = sld [smem:[#allocation5 + $0x44]]
        %v1215 = vstv %s1214
        %v1216 = vmul.f32 %v1124, %v1215
        %1218 = vrot.lane.b32.xlu0 %v1216, 122
        %v1219 = vpop.permute.xlu0 %1218
        %v1221 = vadd.f32 %v1213, %v1219
        %s1222 = sld [smem:[#allocation5 + $0x45]]
        %v1223 = vstv %s1222
        %v1224 = vmul.f32 %v1129, %v1223
        %1226 = vrot.lane.b32.xlu0 %v1224, 122
        %v1227 = vpop.permute.xlu0 %1226
        %v1229 = vadd.f32 %v1221, %v1227
        %v1230 = vld [vmem:[#allocation2 + $0x5] sm:$0xff]
        %s1231 = sld [smem:[#allocation5 + $0x46]]
        %v1232 = vstv %s1231
        %v1233 = vmul.f32 %v1230, %v1232
        %v1234 = vadd.f32 %v1229, %v1233
        %v1235 = vld [vmem:[#allocation3 + $0x5] sm:$0xff]
        %s1236 = sld [smem:[#allocation5 + $0x47]]
        %v1237 = vstv %s1236
        %v1238 = vmul.f32 %v1235, %v1237
        %v1239 = vadd.f32 %v1234, %v1238
        %s1240 = sld [smem:[#allocation5 + $0x48]]
        %v1241 = vstv %s1240
        %v1242 = vmul.f32 %v1230, %v1241
        %1244 = vrot.lane.b32.xlu0 %v1242, 127
        %v1245 = vpop.permute.xlu0 %1244
        %v1247 = vadd.f32 %v1239, %v1245
        %s1248 = sld [smem:[#allocation5 + $0x49]]
        %v1249 = vstv %s1248
        %v1250 = vmul.f32 %v1235, %v1249
        %1252 = vrot.lane.b32.xlu0 %v1250, 127
        %v1253 = vpop.permute.xlu0 %1252
        %v1255 = vadd.f32 %v1247, %v1253
        %s1256 = sld [smem:[#allocation5 + $0x4a]]
        %v1257 = vstv %s1256
        %v1258 = vmul.f32 %v1230, %v1257
        %1260 = vrot.lane.b32.xlu0 %v1258, 126
        %v1261 = vpop.permute.xlu0 %1260
        %v1263 = vadd.f32 %v1255, %v1261
        %s1264 = sld [smem:[#allocation5 + $0x4b]]
        %v1265 = vstv %s1264
        %v1266 = vmul.f32 %v1235, %v1265
        %1268 = vrot.lane.b32.xlu0 %v1266, 126
        %v1269 = vpop.permute.xlu0 %1268
        %v1271 = vadd.f32 %v1263, %v1269
        %s1272 = sld [smem:[#allocation5 + $0x4c]]
        %v1273 = vstv %s1272
        %v1274 = vmul.f32 %v1230, %v1273
        %1276 = vrot.lane.b32.xlu0 %v1274, 125
        %v1277 = vpop.permute.xlu0 %1276
        %v1279 = vadd.f32 %v1271, %v1277
        %s1280 = sld [smem:[#allocation5 + $0x4d]]
        %v1281 = vstv %s1280
        %v1282 = vmul.f32 %v1235, %v1281
        %1284 = vrot.lane.b32.xlu0 %v1282, 125
        %v1285 = vpop.permute.xlu0 %1284
        %v1287 = vadd.f32 %v1279, %v1285
        %s1288 = sld [smem:[#allocation5 + $0x4e]]
        %v1289 = vstv %s1288
        %v1290 = vmul.f32 %v1230, %v1289
        %1292 = vrot.lane.b32.xlu0 %v1290, 124
        %v1293 = vpop.permute.xlu0 %1292
        %v1295 = vadd.f32 %v1287, %v1293
        %s1296 = sld [smem:[#allocation5 + $0x4f]]
        %v1297 = vstv %s1296
        %v1298 = vmul.f32 %v1235, %v1297
        %1300 = vrot.lane.b32.xlu0 %v1298, 124
        %v1301 = vpop.permute.xlu0 %1300
        %v1303 = vadd.f32 %v1295, %v1301
        %s1304 = sld [smem:[#allocation5 + $0x50]]
        %v1305 = vstv %s1304
        %v1306 = vmul.f32 %v1230, %v1305
        %1308 = vrot.lane.b32.xlu0 %v1306, 123
        %v1309 = vpop.permute.xlu0 %1308
        %v1311 = vadd.f32 %v1303, %v1309
        %s1312 = sld [smem:[#allocation5 + $0x51]]
        %v1313 = vstv %s1312
        %v1314 = vmul.f32 %v1235, %v1313
        %1316 = vrot.lane.b32.xlu0 %v1314, 123
        %v1317 = vpop.permute.xlu0 %1316
        %v1319 = vadd.f32 %v1311, %v1317
        %s1320 = sld [smem:[#allocation5 + $0x52]]
        %v1321 = vstv %s1320
        %v1322 = vmul.f32 %v1230, %v1321
        %1324 = vrot.lane.b32.xlu0 %v1322, 122
        %v1325 = vpop.permute.xlu0 %1324
        %v1327 = vadd.f32 %v1319, %v1325
        %s1328 = sld [smem:[#allocation5 + $0x53]]
        %v1329 = vstv %s1328
        %v1330 = vmul.f32 %v1235, %v1329
        %1332 = vrot.lane.b32.xlu0 %v1330, 122
        %v1333 = vpop.permute.xlu0 %1332
        %v1335 = vadd.f32 %v1327, %v1333
        %v1336 = vld [vmem:[#allocation2 + $0x6] sm:$0xff]
        %s1337 = sld [smem:[#allocation5 + $0x54]]
        %v1338 = vstv %s1337
        %v1339 = vmul.f32 %v1336, %v1338
        %v1340 = vadd.f32 %v1335, %v1339
        %v1341 = vld [vmem:[#allocation3 + $0x6] sm:$0xff]
        %s1342 = sld [smem:[#allocation5 + $0x55]]
        %v1343 = vstv %s1342
        %v1344 = vmul.f32 %v1341, %v1343
        %v1345 = vadd.f32 %v1340, %v1344
        %s1346 = sld [smem:[#allocation5 + $0x56]]
        %v1347 = vstv %s1346
        %v1348 = vmul.f32 %v1336, %v1347
        %1350 = vrot.lane.b32.xlu0 %v1348, 127
        %v1351 = vpop.permute.xlu0 %1350
        %v1353 = vadd.f32 %v1345, %v1351
        %s1354 = sld [smem:[#allocation5 + $0x57]]
        %v1355 = vstv %s1354
        %v1356 = vmul.f32 %v1341, %v1355
        %1358 = vrot.lane.b32.xlu0 %v1356, 127
        %v1359 = vpop.permute.xlu0 %1358
        %v1361 = vadd.f32 %v1353, %v1359
        %s1362 = sld [smem:[#allocation5 + $0x58]]
        %v1363 = vstv %s1362
        %v1364 = vmul.f32 %v1336, %v1363
        %1366 = vrot.lane.b32.xlu0 %v1364, 126
        %v1367 = vpop.permute.xlu0 %1366
        %v1369 = vadd.f32 %v1361, %v1367
        %s1370 = sld [smem:[#allocation5 + $0x59]]
        %v1371 = vstv %s1370
        %v1372 = vmul.f32 %v1341, %v1371
        %1374 = vrot.lane.b32.xlu0 %v1372, 126
        %v1375 = vpop.permute.xlu0 %1374
        %v1377 = vadd.f32 %v1369, %v1375
        %s1378 = sld [smem:[#allocation5 + $0x5a]]
        %v1379 = vstv %s1378
        %v1380 = vmul.f32 %v1336, %v1379
        %1382 = vrot.lane.b32.xlu0 %v1380, 125
        %v1383 = vpop.permute.xlu0 %1382
        %v1385 = vadd.f32 %v1377, %v1383
        %s1386 = sld [smem:[#allocation5 + $0x5b]]
        %v1387 = vstv %s1386
        %v1388 = vmul.f32 %v1341, %v1387
        %1390 = vrot.lane.b32.xlu0 %v1388, 125
        %v1391 = vpop.permute.xlu0 %1390
        %v1393 = vadd.f32 %v1385, %v1391
        %s1394 = sld [smem:[#allocation5 + $0x5c]]
        %v1395 = vstv %s1394
        %v1396 = vmul.f32 %v1336, %v1395
        %1398 = vrot.lane.b32.xlu0 %v1396, 124
        %v1399 = vpop.permute.xlu0 %1398
        %v1401 = vadd.f32 %v1393, %v1399
        %s1402 = sld [smem:[#allocation5 + $0x5d]]
        %v1403 = vstv %s1402
        %v1404 = vmul.f32 %v1341, %v1403
        %1406 = vrot.lane.b32.xlu0 %v1404, 124
        %v1407 = vpop.permute.xlu0 %1406
        %v1409 = vadd.f32 %v1401, %v1407
        %s1410 = sld [smem:[#allocation5 + $0x5e]]
        %v1411 = vstv %s1410
        %v1412 = vmul.f32 %v1336, %v1411
        %1414 = vrot.lane.b32.xlu0 %v1412, 123
        %v1415 = vpop.permute.xlu0 %1414
        %v1417 = vadd.f32 %v1409, %v1415
        %s1418 = sld [smem:[#allocation5 + $0x5f]]
        %v1419 = vstv %s1418
        %v1420 = vmul.f32 %v1341, %v1419
        %1422 = vrot.lane.b32.xlu0 %v1420, 123
        %v1423 = vpop.permute.xlu0 %1422
        %v1425 = vadd.f32 %v1417, %v1423
        %s1426 = sld [smem:[#allocation5 + $0x60]]
        %v1427 = vstv %s1426
        %v1428 = vmul.f32 %v1336, %v1427
        %1430 = vrot.lane.b32.xlu0 %v1428, 122
        %v1431 = vpop.permute.xlu0 %1430
        %v1433 = vadd.f32 %v1425, %v1431
        %s1434 = sld [smem:[#allocation5 + $0x61]]
        %v1435 = vstv %s1434
        %v1436 = vmul.f32 %v1341, %v1435
        %1438 = vrot.lane.b32.xlu0 %v1436, 122
        %v1439 = vpop.permute.xlu0 %1438
        %v1441 = vadd.f32 %v1433, %v1439
        %v1442 = vsub.f32 0.0, %v1441
        %v1443 = vmul.f32 %v1442, 1.442695
        %v1444 = vpow.pop %v1443
        %v1445 = vadd.f32 %v1444, 1.0
        %v1446 = vrcp.pop %v1445
        %v1447 = vmul.f32 1.0, %v1446
        %v1448 = vlaneseq
        %v1449 = vshrl.u32 %v1448, 7
        %v1450 = vsub.s32 0, %v1449
        %v1451 = vrot.slane %v1447, %v1450
        %1453 = vbcast.lane.b32.xlu0 %v1451, 256
        %v1454 = vpop.permute.xlu0 %1453
        %v1455 = vlaneseq
        %v1456 = vshrl.u32 %v1455, 7
        %v1457 = vsub.s32 1, %v1456
        %v1458 = vrot.slane %v1447, %v1457
        %1460 = vbcast.lane.b32.xlu0 %v1458, 256
        %v1461 = vpop.permute.xlu0 %1460
        %v1462 = vlaneseq
        %v1463 = vshrl.u32 %v1462, 7
        %v1464 = vsub.s32 2, %v1463
        %v1465 = vrot.slane %v1447, %v1464
        %1467 = vbcast.lane.b32.xlu0 %v1465, 256
        %v1468 = vpop.permute.xlu0 %1467
        %v1469 = vlaneseq
        %v1470 = vshrl.u32 %v1469, 7
        %v1471 = vsub.s32 3, %v1470
        %v1472 = vrot.slane %v1447, %v1471
        %1474 = vbcast.lane.b32.xlu0 %v1472, 256
        %v1475 = vpop.permute.xlu0 %1474
        %v1476 = vlaneseq
        %v1477 = vshrl.u32 %v1476, 7
        %v1478 = vsub.s32 4, %v1477
        %v1479 = vrot.slane %v1447, %v1478
        %1481 = vbcast.lane.b32.xlu0 %v1479, 256
        %v1482 = vpop.permute.xlu0 %1481
        %v1483 = vlaneseq
        %v1484 = vshrl.u32 %v1483, 7
        %v1485 = vsub.s32 5, %v1484
        %v1486 = vrot.slane %v1447, %v1485
        %1488 = vbcast.lane.b32.xlu0 %v1486, 256
        %v1489 = vpop.permute.xlu0 %1488
        %v1490 = vlaneseq
        %v1491 = vshrl.u32 %v1490, 7
        %v1492 = vsub.s32 6, %v1491
        %v1493 = vrot.slane %v1447, %v1492
        %1495 = vbcast.lane.b32.xlu0 %v1493, 256
        %v1496 = vpop.permute.xlu0 %1495
        %v1497 = vlaneseq
        %v1498 = vshrl.u32 %v1497, 7
        %v1499 = vsub.s32 7, %v1498
        %v1500 = vrot.slane %v1447, %v1499
        %1502 = vbcast.lane.b32.xlu0 %v1500, 256
        %v1503 = vpop.permute.xlu0 %1502
        %v1504 = vmul.f32 %v520, %v1454
        %v1505 = vmul.f32 %v521, %v1461
        %v1506 = vmul.f32 %v522, %v1468
        %v1507 = vmul.f32 %v523, %v1475
        %v1508 = vmul.f32 %v524, %v1482
        %v1509 = vmul.f32 %v525, %v1489
        %v1510 = vmul.f32 %v526, %v1496
        %v1511 = vmul.f32 %v527, %v1503
        %v1512 = vld [vmem:[%s4] sm:$0xff]
        %v1513 = vld [vmem:[%s4 + $0x8] sm:$0xff]
        %v1514 = vld [vmem:[%s4 + $0x10] sm:$0xff]
        %v1515 = vld [vmem:[%s4 + $0x18] sm:$0xff]
        %v1516 = vld [vmem:[%s5] sm:$0x1]
        %v1518 = vlaneseq
        %v1519 = vshrl.u32 %v1518, 7
        %v1520 = vsub.s32 0, %v1519
        %v1521 = vrot.slane %v1516, %v1520
        %v1524 = vsel %vm302, %v1504, 0
        %v1527 = vsel %vm302, %v1505, 0
        %v1530 = vsel %vm302, %v1506, 0
        %v1533 = vsel %vm302, %v1507, 0
        %v1536 = vsel %vm302, %v1508, 0
        %v1539 = vsel %vm302, %v1509, 0
        %v1542 = vsel %vm302, %v1510, 0
        %v1545 = vsel %vm302, %v1511, 0
        %1547 = vmatprep.subr.mxu0 0.0
        %1548 = vmatpush1.msra.mxu0 %v1512
        %1549 = vmatprep.subr.mxu0 0.0
        %1550 = vmatpush1.msra.mxu0 %v1513
        %1551 = vmatprep.subr.mxu0 0.0
        %1552 = vmatpush1.msra.mxu0 %v1514
        %1553 = vmatprep.subr.mxu0 0.0
        %1554 = vmatpush1.msra.mxu0 %v1515
        %1555 = vmatprep.subr.mxu0 0.0
        %1556 = vmatpush1.msra.mxu0 0.0
        %1557 = vmatprep.subr.mxu0 0.0
        %1558 = vmatpush1.msra.mxu0 0.0
        %1559 = vmatprep.subr.mxu0 0.0
        %1560 = vmatpush1.msra.mxu0 0.0
        %1561 = vmatprep.subr.mxu0 0.0
        %1562 = vmatpush1.msra.mxu0 0.0
        %1563 = vmatprep.subr.mxu0 0.0
        %1564 = vmatpush1.msra.mxu0 0.0
        %1565 = vmatprep.subr.mxu0 0.0
        %1566 = vmatpush1.msra.mxu0 0.0
        %1567 = vmatprep.subr.mxu0 0.0
        %1568 = vmatpush1.msra.mxu0 0.0
        %1569 = vmatprep.subr.mxu0 0.0
        %1570 = vmatpush1.msra.mxu0 0.0
        %1571 = vmatprep.subr.mxu0 0.0
        %1572 = vmatpush1.msra.mxu0 0.0
        %1573 = vmatprep.subr.mxu0 0.0
        %1574 = vmatpush1.msra.mxu0 0.0
        %1575 = vmatprep.subr.mxu0 0.0
        %1576 = vmatpush1.msra.mxu0 0.0
        %1577 = vmatprep.subr.mxu0 0.0
        %1578 = vmatpush1.msra.mxu0 0.0
        %1579 = vmatprep.subr.mxu0 0.0
        %1580 = vmatpush1.msra.mxu0 0.0
        %1581 = vmatprep.subr.mxu0 0.0
        %1582 = vmatpush1.msra.mxu0 0.0
        %1583 = vmatprep.subr.mxu0 0.0
        %1584 = vmatpush1.msra.mxu0 0.0
        %1585 = vmatprep.subr.mxu0 0.0
        %1586 = vmatpush1.msra.mxu0 0.0
        %1587 = vmatprep.subr.mxu0 0.0
        %1588 = vmatpush1.msra.mxu0 0.0
        %1589 = vmatprep.subr.mxu0 0.0
        %1590 = vmatpush1.msra.mxu0 0.0
        %1591 = vmatprep.subr.mxu0 0.0
        %1592 = vmatpush1.msra.mxu0 0.0
        %1593 = vmatprep.subr.mxu0 0.0
        %1594 = vmatpush1.msra.mxu0 0.0
        %1595 = vmatprep.subr.mxu0 0.0
        %1596 = vmatpush1.msra.mxu0 0.0
        %1597 = vmatprep.subr.mxu0 0.0
        %1598 = vmatpush1.msra.mxu0 0.0
        %1599 = vmatprep.subr.mxu0 0.0
        %1600 = vmatpush1.msra.mxu0 0.0
        %1601 = vmatprep.subr.mxu0 0.0
        %1602 = vmatpush1.msra.mxu0 0.0
        %1603 = vmatprep.subr.mxu0 0.0
        %1604 = vmatpush1.msra.mxu0 0.0
        %1605 = vmatprep.subr.mxu0 0.0
        %1606 = vmatpush1.msra.mxu0 0.0
        %1607 = vmatprep.subr.mxu0 0.0
        %1608 = vmatpush1.msra.mxu0 0.0
        %1609 = vmatprep.subr.mxu0 0.0
        %1610 = vmatpush1.msra.mxu0 0.0
        %1611 = vmatprep.mubr.f32.mxu0 0.0
        %1612 = vmatmul.mubr.f32.gmra.mrb[0].mxu0 %v1524
        %v1613 = vpop.f32.mrb[0].mxu0
        %v1614 = vadd.f32 %v1521, %v1613
        %v1615 = vpop.f32.mrb[0].mxu0
        %1616 = vmatprep.mubr.f32.mxu0 0.0
        %1617 = vmatmul.mubr.f32.gmra.mrb[0].mxu0 %v1527
        %v1618 = vpop.f32.mrb[0].mxu0
        %v1619 = vadd.f32 %v1521, %v1618
        %v1620 = vpop.f32.mrb[0].mxu0
        %1621 = vmatprep.mubr.f32.mxu0 0.0
        %1622 = vmatmul.mubr.f32.gmra.mrb[0].mxu0 %v1530
        %v1623 = vpop.f32.mrb[0].mxu0
        %v1624 = vadd.f32 %v1521, %v1623
        %v1625 = vpop.f32.mrb[0].mxu0
        %1626 = vmatprep.mubr.f32.mxu0 0.0
        %1627 = vmatmul.mubr.f32.gmra.mrb[0].mxu0 %v1533
        %v1628 = vpop.f32.mrb[0].mxu0
        %v1629 = vadd.f32 %v1521, %v1628
        %v1630 = vpop.f32.mrb[0].mxu0
        %1631 = vmatprep.mubr.f32.mxu0 0.0
        %1632 = vmatmul.mubr.f32.gmra.mrb[0].mxu0 %v1536
        %v1633 = vpop.f32.mrb[0].mxu0
        %v1634 = vadd.f32 %v1521, %v1633
        %v1635 = vpop.f32.mrb[0].mxu0
        %1636 = vmatprep.mubr.f32.mxu0 0.0
        %1637 = vmatmul.mubr.f32.gmra.mrb[0].mxu0 %v1539
        %v1638 = vpop.f32.mrb[0].mxu0
        %v1639 = vadd.f32 %v1521, %v1638
        %v1640 = vpop.f32.mrb[0].mxu0
        %1641 = vmatprep.mubr.f32.mxu0 0.0
        %1642 = vmatmul.mubr.f32.gmra.mrb[0].mxu0 %v1542
        %v1643 = vpop.f32.mrb[0].mxu0
        %v1644 = vadd.f32 %v1521, %v1643
        %v1645 = vpop.f32.mrb[0].mxu0
        %1646 = vmatprep.mubr.f32.mxu0 0.0
        %1647 = vmatmul.mubr.f32.gmra.mrb[0].mxu0 %v1545
        %v1648 = vpop.f32.mrb[0].mxu0
        %v1649 = vadd.f32 %v1521, %v1648
        %v1650 = vpop.f32.mrb[0].mxu0
        %1651 = vdwg.mxu0
        %s1652 = sld [smem:[#allocation4]]
        %vm1653 = vcmp.ge.f32.partialorder %v1614, 0.0
        %vm1654 = vcmp.ge.f32.partialorder %v1619, 0.0
        %vm1655 = vcmp.ge.f32.partialorder %v1624, 0.0
        %vm1656 = vcmp.ge.f32.partialorder %v1629, 0.0
        %vm1657 = vcmp.ge.f32.partialorder %v1634, 0.0
        %vm1658 = vcmp.ge.f32.partialorder %v1639, 0.0
        %vm1659 = vcmp.ge.f32.partialorder %v1644, 0.0
        %vm1660 = vcmp.ge.f32.partialorder %v1649, 0.0
        %v1661 = vstv %s1652
        %v1662 = vmul.f32 %v1661, %v1614
        %v1663 = vmul.f32 %v1661, %v1619
        %v1664 = vmul.f32 %v1661, %v1624
        %v1665 = vmul.f32 %v1661, %v1629
        %v1666 = vmul.f32 %v1661, %v1634
        %v1667 = vmul.f32 %v1661, %v1639
        %v1668 = vmul.f32 %v1661, %v1644
        %v1669 = vmul.f32 %v1661, %v1649
        %v1670 = vsel %vm1653, %v1614, %v1662
        %v1671 = vsel %vm1654, %v1619, %v1663
        %v1672 = vsel %vm1655, %v1624, %v1664
        %v1673 = vsel %vm1656, %v1629, %v1665
        %v1674 = vsel %vm1657, %v1634, %v1666
        %v1675 = vsel %vm1658, %v1639, %v1667
        %v1676 = vsel %vm1659, %v1644, %v1668
        %v1677 = vsel %vm1660, %v1649, %v1669
        %1678 = vst.msk [vmem:[%s293] sm:$0xff] %vm302, %v1670
        %1679 = vst.msk [vmem:[%s293 + $0x8] sm:$0xff] %vm302, %v1671
        %1680 = vst.msk [vmem:[%s293 + $0x10] sm:$0xff] %vm302, %v1672
        %1681 = vst.msk [vmem:[%s293 + $0x18] sm:$0xff] %vm302, %v1673
        %1682 = vst.msk [vmem:[%s293 + $0x20] sm:$0xff] %vm302, %v1674
        %1683 = vst.msk [vmem:[%s293 + $0x28] sm:$0xff] %vm302, %v1675
        %1684 = vst.msk [vmem:[%s293 + $0x30] sm:$0xff] %vm302, %v1676
        %1685 = vst.msk [vmem:[%s293 + $0x38] sm:$0xff] %vm302, %v1677
        %p1686 = scmp.lt.s32.totalorder %s20, 1
        %s1687 = scalar_select %p1686, %s20, 1
        %s1688 = smul.addr %s1687, 8
        %s1689 = smul.addr %s1688, 8
        %s1690 = scalar_lea.vmem %s7, %s1689
        // Predicated region
        $region53: #{feedback_block_forward.14} parent=47 // pred_check
          %p1691 = pneg %p190
        $region54: #{feedback_block_forward.14} parent=47 // pred_check_branch
          %1693 = sbr.rel (%p1691) target = $region56
        $region55: #{feedback_block_forward.14} parent=47 // pred_region
          _
        $region56: #{feedback_block_forward.14} parent=47 // pred_fallthru
          _
      $region48: #{feedback_block_forward.14} parent=5 // pred_fallthru
        _
      %p1694 = scmp.le.s32.totalorder 2, %s15
      // Predicated region
      $region57: #{feedback_block_forward.14} parent=5 // pred_check
        %p1695 = pneg %p1694
      $region58: #{feedback_block_forward.14} parent=5 // pred_check_branch
        %1697 = sbr.rel (%p1695) target = $region60
      $region59: #{feedback_block_forward.14} parent=5 // pred_region
        %s1698 = ssub.s32 %s15, 2
        // Predicated region
        $region61: #{feedback_block_forward.14} parent=59 // pred_check
          %p1699 = pneg %p196
        $region62: #{feedback_block_forward.14} parent=59 // pred_check_branch
          %1701 = sbr.rel (%p1699) target = $region64
        $region63: #{feedback_block_forward.14} parent=59 // pred_region
          %p1702 = scmp.lt.s32.totalorder %s21, 1
          %s1703 = scalar_select %p1702, %s21, 1
          %s1704 = smul.addr %s1703, 8
          %s1705 = smul.addr %s1704, 8
          %s1706 = scalar_lea.vmem %s7, %s1705
        $region64: #{feedback_block_forward.14} parent=59 // pred_fallthru
          _
      $region60: #{feedback_block_forward.14} parent=5 // pred_fallthru
        _
    $region6: #{feedback_block_forward.14} parent=1 // loop_footer
      %s19 = sadd.s32 1, %s15
    $region7: #{feedback_block_forward.14} parent=1 // loop_footer_branch
      %14 = sbr.rel target = $region3
    $region8: #{feedback_block_forward.14} parent=1 // loop_exit
      _
    %1707 = vsyncpa [#allocation6], 1
    %s1708 = scalar_lea.sflag [#allocation6], 1
    %1709 = vsyncpa %s1708, 1

// kernel: feedback_block_forward.19
$region0: #{feedback_block_forward.19}
  #allocation0 [shape = 'u32[]', space=smem, size = 0x4, offset = 0x4, fixed_abs, tag = 'smem constant byte address 0x4 - core index']
  #allocation1 [shape = 'u32[144,128]{1,0:T(1,128)}', space=vmem, size = 0x12000, scoped, tag = 'internal scratch']
  #allocation2 [shape = 'f32[32,128]{1,0:T(8,128)}', space=vmem, size = 0x4000, scoped, tag = 'scratch operand']
  #allocation3 [shape = 'f32[1]{0:T(128)S(6)}', space=smem, size = 0x200, scoped, tag = 'scoped memory for feedback_block_forward.19']
  %s0 = inlined_call_operand.vmem [shape: bf16[32,1152], index: 0, kind: input, shape index: {}]
  %s1 = inlined_call_operand.vmem [shape: bf16[1152,128], index: 1, kind: input, shape index: {}]
  %s2 = inlined_call_operand.vmem [shape: f32[32,1], index: 2, kind: input, shape index: {}]
  %s3 = inlined_call_operand.<no memory space> [shape: f32[1], index: 3, kind: input, shape index: {}]
  %s4 = inlined_call_operand.vmem [shape: f32[32,128], index: 4, kind: output, shape index: {}]
  %s5 = sld [smem:[#allocation0]]
  $region83: #{feedback_block_forward.19} parent=0
    _
  %s7 = ssub.s32 1, %s5
  %s8 = scalar_select 0, %s7, %s5
  %9 = sst [smem:[#allocation3]] %s3
  $region1: #{feedback_block_forward.19} parent=0
    #allocation4 [shape = 'u8[49152]{0}', space=vmem, size = 0xc000, scoped, tag = 'input window, operand 0']
    loop: start=0, step=1, limit=5
    $region2: #{feedback_block_forward.19} parent=1 // loop_pre_header
      _
    $region3: #{feedback_block_forward.19} parent=1 // loop_header
      %s11 = sphi 0, %s15
      %p12 = scmp.ge.s32.totalorder %s11, 5
      %s18 = sphi 0, %s30
      %s19 = sphi 0, %s26
      %s20 = sphi 0, %s18
      %s21 = sphi 0, %s19
      %s22 = sphi 0, %s20
      %s23 = sphi 0, %s21
      %s33 = sphi 0, %s35
      %s36 = sphi 0, %s33
      %s37 = sphi 0, %s36
      %s53 = sphi 0, %s37
      %s61 = sphi 0, %s63
      %s64 = sphi 0, %s61
      %s65 = sphi 0, %s64
      %s81 = sphi 0, %s65
      %s85 = sphi 0, %s85
      %s87 = sphi 0, %s85
      %s88 = sphi 0, %s87
      %s102 = sphi 0, %s88
      %s106 = sphi 0, %s106
      %s108 = sphi 0, %s106
      %s109 = sphi 0, %s108
      %s123 = sphi 0, %s109
      %s129 = sphi 0, %s131
      %s132 = sphi 0, %s129
      %s133 = sphi 0, %s132
      %s149 = sphi 0, %s133
    $region4: #{feedback_block_forward.19} parent=1 // loop_header_branch
      %14 = sbr.rel (%p12) target = $region8
    $region5: #{feedback_block_forward.19} parent=1 // loop_body
      %s16 = ssub.s32 %s11, 1
      %s17 = ssub.s32 %s11, 2
      %s24 = sadd.s32 1, %s19
      %p25 = scmp.ge.s32.totalorder %s24, 3
      %s26 = scalar_select %p25, 0, %s24
      %s27 = sadd.s32 1, %s18
      %s28 = scalar_select %p25, %s27, %s18
      %p29 = scmp.ge.s32.totalorder %s28, 1
      %s30 = scalar_select %p29, 0, %s28
      %s31 = ssub.s32 %s19, %s26
      %p32 = scmp.eq.s32.totalorder %s31, 0
      %s34 = sadd.s32 %s33, 1
      %s35 = scalar_select %p32, %s33, %s34
      %p38 = pneg %p32
      %p39 = scmp.eq.s32.totalorder %s11, 2
      %p40 = por %p38, %p39
      %p41 = scmp.ne.s32.totalorder %s33, %s36
      %p42 = scmp.eq.s32.totalorder %s11, 0
      %p43 = por %p41, %p42
      %p44 = scmp.ne.s32.totalorder %s33, %s36
      %p45 = scmp.eq.s32.totalorder %s16, 2
      %p46 = por %p44, %p45
      %p47 = scmp.ne.s32.totalorder %s36, %s37
      %p48 = scmp.eq.s32.totalorder %s16, 0
      %p49 = por %p47, %p48
      %p50 = scmp.ne.s32.totalorder %s36, %s37
      %p51 = scmp.eq.s32.totalorder %s17, 2
      %p52 = por %p50, %p51
      %p54 = scmp.ne.s32.totalorder %s37, %s53
      %p55 = scmp.eq.s32.totalorder %s17, 0
      %p56 = por %p54, %p55
      %s57 = ssub.s32 %s19, %s26
      %s58 = ssub.s32 %s18, %s30
      %s59 = sor.u32 %s57, %s58
      %p60 = scmp.eq.s32.totalorder %s59, 0
      %s62 = sadd.s32 %s61, 1
      %s63 = scalar_select %p60, %s61, %s62
      %p66 = pneg %p60
      %p67 = scmp.eq.s32.totalorder %s11, 2
      %p68 = por %p66, %p67
      %p69 = scmp.ne.s32.totalorder %s61, %s64
      %p70 = scmp.eq.s32.totalorder %s11, 0
      %p71 = por %p69, %p70
      %p72 = scmp.ne.s32.totalorder %s61, %s64
      %p73 = scmp.eq.s32.totalorder %s16, 2
      %p74 = por %p72, %p73
      %p75 = scmp.ne.s32.totalorder %s64, %s65
      %p76 = scmp.eq.s32.totalorder %s16, 0
      %p77 = por %p75, %p76
      %p78 = scmp.ne.s32.totalorder %s64, %s65
      %p79 = scmp.eq.s32.totalorder %s17, 2
      %p80 = por %p78, %p79
      %p82 = scmp.ne.s32.totalorder %s65, %s81
      %p83 = scmp.eq.s32.totalorder %s17, 0
      %p84 = por %p82, %p83
      %s86 = sadd.s32 %s85, 1
      %p89 = scmp.eq.s32.totalorder %s11, 2
      %p90 = scmp.ne.s32.totalorder %s85, %s87
      %p91 = scmp.eq.s32.totalorder %s11, 0
      %p92 = por %p90, %p91
      %p93 = scmp.ne.s32.totalorder %s85, %s87
      %p94 = scmp.eq.s32.totalorder %s16, 2
      %p95 = por %p93, %p94
      %p96 = scmp.ne.s32.totalorder %s87, %s88
      %p97 = scmp.eq.s32.totalorder %s16, 0
      %p98 = por %p96, %p97
      %p99 = scmp.ne.s32.totalorder %s87, %s88
      %p100 = scmp.eq.s32.totalorder %s17, 2
      %p101 = por %p99, %p100
      %p103 = scmp.ne.s32.totalorder %s88, %s102
      %p104 = scmp.eq.s32.totalorder %s17, 0
      %p105 = por %p103, %p104
      %s107 = sadd.s32 %s106, 1
      %p110 = scmp.eq.s32.totalorder %s11, 2
      %p111 = scmp.ne.s32.totalorder %s106, %s108
      %p112 = scmp.eq.s32.totalorder %s11, 0
      %p113 = por %p111, %p112
      %p114 = scmp.ne.s32.totalorder %s106, %s108
      %p115 = scmp.eq.s32.totalorder %s16, 2
      %p116 = por %p114, %p115
      %p117 = scmp.ne.s32.totalorder %s108, %s109
      %p118 = scmp.eq.s32.totalorder %s16, 0
      %p119 = por %p117, %p118
      %p120 = scmp.ne.s32.totalorder %s108, %s109
      %p121 = scmp.eq.s32.totalorder %s17, 2
      %p122 = por %p120, %p121
      %p124 = scmp.ne.s32.totalorder %s109, %s123
      %p125 = scmp.eq.s32.totalorder %s17, 0
      %p126 = por %p124, %p125
      %s127 = ssub.s32 %s18, %s30
      %p128 = scmp.eq.s32.totalorder %s127, 0
      %s130 = sadd.s32 %s129, 1
      %s131 = scalar_select %p128, %s129, %s130
      %p134 = pneg %p128
      %p135 = scmp.eq.s32.totalorder %s11, 2
      %p136 = por %p134, %p135
      %p137 = scmp.ne.s32.totalorder %s129, %s132
      %p138 = scmp.eq.s32.totalorder %s11, 0
      %p139 = por %p137, %p138
      %p140 = scmp.ne.s32.totalorder %s129, %s132
      %p141 = scmp.eq.s32.totalorder %s16, 2
      %p142 = por %p140, %p141
      %p143 = scmp.ne.s32.totalorder %s132, %s133
      %p144 = scmp.eq.s32.totalorder %s16, 0
      %p145 = por %p143, %p144
      %p146 = scmp.ne.s32.totalorder %s132, %s133
      %p147 = scmp.eq.s32.totalorder %s17, 2
      %p148 = por %p146, %p147
      %p150 = scmp.ne.s32.totalorder %s133, %s149
      %p151 = scmp.eq.s32.totalorder %s17, 0
      %p152 = por %p150, %p151
      %p153 = scmp.le.s32.totalorder 1, %s11
      %p154 = scmp.lt.s32.totalorder %s11, 4
      %p155 = pnand %p153, %p154
      %p156 = pneg %p155
      // Predicated region
      $region9: #{feedback_block_forward.19} parent=5 // pred_check
        _
      $region10: #{feedback_block_forward.19} parent=5 // pred_check_branch
        %158 = sbr.rel (%p155) target = $region12
      $region11: #{feedback_block_forward.19} parent=5 // pred_region
        %s159 = ssub.s32 %s11, 1
        // Predicated region
        $region13: #{feedback_block_forward.19} parent=11 // pred_check
          %p160 = pneg %p98
        $region14: #{feedback_block_forward.19} parent=11 // pred_check_branch
          %162 = sbr.rel (%p160) target = $region16
        $region15: #{feedback_block_forward.19} parent=11 // pred_region
          _
        $region16: #{feedback_block_forward.19} parent=11 // pred_fallthru
          _
        // Predicated region
        $region17: #{feedback_block_forward.19} parent=11 // pred_check
          %p163 = pneg %p119
        $region18: #{feedback_block_forward.19} parent=11 // pred_check_branch
          %165 = sbr.rel (%p163) target = $region20
        $region19: #{feedback_block_forward.19} parent=11 // pred_region
          _
        $region20: #{feedback_block_forward.19} parent=11 // pred_fallthru
          _
      $region12: #{feedback_block_forward.19} parent=5 // pred_fallthru
        _
      %p166 = scmp.lt.s32.totalorder %s11, 3
      // Predicated region
      $region21: #{feedback_block_forward.19} parent=5 // pred_check
        %p167 = pneg %p166
      $region22: #{feedback_block_forward.19} parent=5 // pred_check_branch
        %169 = sbr.rel (%p167) target = $region24
      $region23: #{feedback_block_forward.19} parent=5 // pred_region
        // Predicated region
        $region25: #{feedback_block_forward.19} parent=23 // pred_check
          %p170 = pneg %p43
        $region26: #{feedback_block_forward.19} parent=23 // pred_check_branch
          %172 = sbr.rel (%p170) target = $region28
        $region27: #{feedback_block_forward.19} parent=23 // pred_region
          %s173 = sand.u32 %s33, 1
          %s174 = sand.u32 %s33, 1
          %s175 = smul.addr %s174, 48
          %s176 = scalar_lea.vmem [#allocation4], %s175
          %s177 = smul.u32 3, %s19
          %s178 = smul.addr %s177, 4
          %s179 = scalar_lea.vmem %s0, %s178
          // Predicated region
          $region29: #{feedback_block_forward.19} parent=27 // pred_check
            _
          $region30: #{feedback_block_forward.19} parent=27 // pred_check_branch
            %181 = sbr.rel (0) target = $region32
          $region31: #{feedback_block_forward.19} parent=27 // pred_region
            // Predicated region
            $region33: #{feedback_block_forward.19} parent=31 // pred_check
              _
            $region34: #{feedback_block_forward.19} parent=31 // pred_check_branch
              %183 = sbr.rel (0) target = $region36
            $region35: #{feedback_block_forward.19} parent=31 // pred_region
              %s184 = scalar_lea.vmem %s179, 8
              %s185 = scalar_lea.vmem %s176, 8 [#allocation4]
              loop: start=0, step=1, limit=1
              $region37: #{feedback_block_forward.19} parent=35 // loop_pre_header
                _
              $region38: #{feedback_block_forward.19} parent=35 // loop_header
                %s187 = sphi 0, %s191
                %p188 = scmp.ge.s32.totalorder %s187, 1
                %s192 = sphi %s179, %s179
                %s193 = sphi %s176, %s176
              $region39: #{feedback_block_forward.19} parent=35 // loop_header_branch
                %190 = sbr.rel (%p188) target = $region43
              $region40: #{feedback_block_forward.19} parent=35 // loop_body
                %v194 = vld [vmem:[%s192] sm:$0xff]
                %195 = vst [vmem:[%s193] sm:$0xff] %v194
                %v196 = vld [vmem:[%s192 + $0x24] sm:$0xff]
                %197 = vst [vmem:[%s193 + $0xc] sm:$0xff] %v196
                %v198 = vld [vmem:[%s192 + $0x48] sm:$0xff]
                %199 = vst [vmem:[%s193 + $0x18] sm:$0xff] %v198
                %v200 = vld [vmem:[%s192 + $0x6c] sm:$0xff]
                %201 = vst [vmem:[%s193 + $0x24] sm:$0xff] %v200
              $region41: #{feedback_block_forward.19} parent=35 // loop_footer
                %s191 = sadd.s32 1, %s187
              $region42: #{feedback_block_forward.19} parent=35 // loop_footer_branch
                %186 = sbr.rel target = $region38
              $region43: #{feedback_block_forward.19} parent=35 // loop_exit
                _
              loop: start=0, step=1, limit=1
              $region44: #{feedback_block_forward.19} parent=35 // loop_pre_header
                _
              $region45: #{feedback_block_forward.19} parent=35 // loop_header
                %s204 = sphi 0, %s208
                %p205 = scmp.ge.s32.totalorder %s204, 1
                %s209 = sphi %s184, %s184
                %s210 = sphi %s185, %s185
              $region46: #{feedback_block_forward.19} parent=35 // loop_header_branch
                %207 = sbr.rel (%p205) target = $region50
              $region47: #{feedback_block_forward.19} parent=35 // loop_body
                %v211 = vld [vmem:[%s209] sm:$0xf]
                %212 = vst [vmem:[%s210] sm:$0xf] %v211
                %v213 = vld [vmem:[%s209 + $0x24] sm:$0xf]
                %214 = vst [vmem:[%s210 + $0xc] sm:$0xf] %v213
                %v215 = vld [vmem:[%s209 + $0x48] sm:$0xf]
                %216 = vst [vmem:[%s210 + $0x18] sm:$0xf] %v215
                %v217 = vld [vmem:[%s209 + $0x6c] sm:$0xf]
                %218 = vst [vmem:[%s210 + $0x24] sm:$0xf] %v217
              $region48: #{feedback_block_forward.19} parent=35 // loop_footer
                %s208 = sadd.s32 1, %s204
              $region49: #{feedback_block_forward.19} parent=35 // loop_footer_branch
                %203 = sbr.rel target = $region45
              $region50: #{feedback_block_forward.19} parent=35 // loop_exit
                _
            $region36: #{feedback_block_forward.19} parent=31 // pred_fallthru
              _
          $region32: #{feedback_block_forward.19} parent=27 // pred_fallthru
            _
          %219 = vnop
        $region28: #{feedback_block_forward.19} parent=23 // pred_fallthru
          _
        // Predicated region
        $region51: #{feedback_block_forward.19} parent=23 // pred_check
          %p220 = pneg %p71
        $region52: #{feedback_block_forward.19} parent=23 // pred_check_branch
          %222 = sbr.rel (%p220) target = $region54
        $region53: #{feedback_block_forward.19} parent=23 // pred_region
          %s223 = smul.u32 48, %s19
          %p224 = scmp.lt.s32.totalorder %s223, 143
          %s225 = scalar_select %p224, %s223, 143
          %p226 = scmp.lt.s32.totalorder %s18, 0
          %s227 = scalar_select %p226, %s18, 0
          %s228 = sadd.s32 %s227, %s225
          %s229 = smul.addr %s228, 4
          %s230 = scalar_lea.vmem %s1, %s229
          %s231 = smul.u32 48, %s19
        $region54: #{feedback_block_forward.19} parent=23 // pred_fallthru
          _
      $region24: #{feedback_block_forward.19} parent=5 // pred_fallthru
        _
      %p232 = scmp.le.s32.totalorder 1, %s11
      %p233 = scmp.lt.s32.totalorder %s11, 4
      %p234 = pnand %p232, %p233
      %p235 = pneg %p234
      // Predicated region
      $region55: #{feedback_block_forward.19} parent=5 // pred_check
        _
      $region56: #{feedback_block_forward.19} parent=5 // pred_check_branch
        %237 = sbr.rel (%p234) target = $region58
      $region57: #{feedback_block_forward.19} parent=5 // pred_region
        %s238 = ssub.s32 %s11, 1
        %s239 = sand.u32 %s36, 1
        %s240 = sand.u32 %s36, 1
        %s241 = smul.addr %s240, 48
        %s242 = scalar_lea.vmem [#allocation4], %s241
        // Predicated region
        $region59: #{feedback_block_forward.19} parent=57 // pred_check
          %p243 = pneg %p49
        $region60: #{feedback_block_forward.19} parent=57 // pred_check_branch
          %245 = sbr.rel (%p243) target = $region62
        $region61: #{feedback_block_forward.19} parent=57 // pred_region
          _
        $region62: #{feedback_block_forward.19} parent=57 // pred_fallthru
          _
        %s246 = sand.u32 %s36, 1
        %s247 = sand.u32 %s36, 1
        %s248 = smul.addr %s247, 48
        %s249 = scalar_lea.vmem [#allocation4], %s248
        %p250 = pneg %p49
        %p251 = pneg %p46
        %s252 = smul.u32 48, %s21
        %p253 = scmp.lt.s32.totalorder %s252, 143
        %s254 = scalar_select %p253, %s252, 143
        %p255 = scmp.lt.s32.totalorder %s20, 0
        %s256 = scalar_select %p255, %s20, 0
        %s257 = sadd.s32 %s256, %s254
        %s258 = smul.addr %s257, 4
        %s259 = scalar_lea.vmem %s1, %s258
        %p260 = pneg %p77
        %p261 = pneg %p74
        %p262 = pneg %p98
        %p263 = pneg %p95
        %p264 = pneg %p119
        %p265 = pneg %p116
        %p266 = pneg %p145
        %p267 = pneg %p142
        %p268 = scmp.lt.s32.totalorder %s20, 0
        %s269 = scalar_select %p268, %s20, 0
        %s270 = smul.addr %s269, 8
        %s271 = scalar_lea.vmem %s4, %s270
        %s272 = smul.u32 3, %s21
        %s273 = smul.u32 48, %s21
        %p274 = scmp.lt.s32.totalorder %s273, 143
        %s275 = scalar_select %p274, %s273, 143
        %p276 = scmp.lt.s32.totalorder %s20, 0
        %s277 = scalar_select %p276, %s20, 0
        %s278 = sadd.s32 %s277, %s275
        %s279 = smul.addr %s278, 4
        %s280 = scalar_lea.vmem %s1, %s279
        %s281 = smul.u32 48, %s21
        %p282 = scmp.lt.s32.totalorder %s20, 0
        %s283 = scalar_select %p282, %s20, 0
        %s284 = smul.addr %s283, 8
        %s285 = scalar_lea.vmem %s4, %s284
        %p287 = scmp.eq.s32.totalorder %s21, 0
        // Predicated region
        $region63: #{feedback_block_forward.19} parent=57 // pred_check
          %p288 = pneg %p287
        $region64: #{feedback_block_forward.19} parent=57 // pred_check_branch
          %290 = sbr.rel (%p288) target = $region66
        $region65: #{feedback_block_forward.19} parent=57 // pred_region
          %291 = vst [vmem:[#allocation2] sm:$0xff] 0.0
          %292 = vst [vmem:[#allocation2 + $0x8] sm:$0xff] 0.0
          %293 = vst [vmem:[#allocation2 + $0x10] sm:$0xff] 0.0
          %294 = vst [vmem:[#allocation2 + $0x18] sm:$0xff] 0.0
        $region66: #{feedback_block_forward.19} parent=57 // pred_fallthru
          _
        %v295 = vld [vmem:[#allocation2] sm:$0xff]
        %v296 = vld [vmem:[#allocation2 + $0x8] sm:$0xff]
        %v297 = vld [vmem:[#allocation2 + $0x10] sm:$0xff]
        %v298 = vld [vmem:[#allocation2 + $0x18] sm:$0xff]
        %v299 = vld [vmem:[%s242] sm:$0xff]
        %v300 = vld [vmem:[%s242 + $0x8] sm:$0xf]
        %v301 = vld [vmem:[%s242 + $0xc] sm:$0xff]
        %v302 = vld [vmem:[%s242 + $0x14] sm:$0xf]
        %v303 = vld [vmem:[%s242 + $0x18] sm:$0xff]
        %v304 = vld [vmem:[%s242 + $0x20] sm:$0xf]
        %v305 = vld [vmem:[%s242 + $0x24] sm:$0xff]
        %v306 = vld [vmem:[%s242 + $0x2c] sm:$0xf]
        %v307 = vld [vmem:[%s280] sm:$0xf]
        %v308 = vld [vmem:[%s280 + $0x4] sm:$0xf]
        %v309 = vld [vmem:[%s280 + $0x8] sm:$0xf]
        %v310 = vld [vmem:[%s280 + $0xc] sm:$0xf]
        %v311 = vld [vmem:[%s280 + $0x10] sm:$0xf]
        %v312 = vld [vmem:[%s280 + $0x14] sm:$0xf]
        %v313 = vld [vmem:[%s280 + $0x18] sm:$0xf]
        %v314 = vld [vmem:[%s280 + $0x1c] sm:$0xf]
        %v315 = vld [vmem:[%s280 + $0x20] sm:$0xf]
        %v316 = vld [vmem:[%s280 + $0x24] sm:$0xf]
        %v317 = vld [vmem:[%s280 + $0x28] sm:$0xf]
        %v318 = vld [vmem:[%s280 + $0x2c] sm:$0xf]
        %v319 = vld [vmem:[%s280 + $0x30] sm:$0xf]
        %v320 = vld [vmem:[%s280 + $0x34] sm:$0xf]
        %v321 = vld [vmem:[%s280 + $0x38] sm:$0xf]
        %v322 = vld [vmem:[%s280 + $0x3c] sm:$0xf]
        %v323 = vld [vmem:[%s280 + $0x40] sm:$0xf]
        %v324 = vld [vmem:[%s280 + $0x44] sm:$0xf]
        %v325 = vld [vmem:[%s280 + $0x48] sm:$0xf]
        %v326 = vld [vmem:[%s280 + $0x4c] sm:$0xf]
        %v327 = vld [vmem:[%s280 + $0x50] sm:$0xf]
        %v328 = vld [vmem:[%s280 + $0x54] sm:$0xf]
        %v329 = vld [vmem:[%s280 + $0x58] sm:$0xf]
        %v330 = vld [vmem:[%s280 + $0x5c] sm:$0xf]
        %v331 = vld [vmem:[%s280 + $0x60] sm:$0xf]
        %v332 = vld [vmem:[%s280 + $0x64] sm:$0xf]
        %v333 = vld [vmem:[%s280 + $0x68] sm:$0xf]
        %v334 = vld [vmem:[%s280 + $0x6c] sm:$0xf]
        %v335 = vld [vmem:[%s280 + $0x70] sm:$0xf]
        %v336 = vld [vmem:[%s280 + $0x74] sm:$0xf]
        %v337 = vld [vmem:[%s280 + $0x78] sm:$0xf]
        %v338 = vld [vmem:[%s280 + $0x7c] sm:$0xf]
        %v339 = vld [vmem:[%s280 + $0x80] sm:$0xf]
        %v340 = vld [vmem:[%s280 + $0x84] sm:$0xf]
        %v341 = vld [vmem:[%s280 + $0x88] sm:$0xf]
        %v342 = vld [vmem:[%s280 + $0x8c] sm:$0xf]
        %v343 = vld [vmem:[%s280 + $0x90] sm:$0xf]
        %v344 = vld [vmem:[%s280 + $0x94] sm:$0xf]
        %v345 = vld [vmem:[%s280 + $0x98] sm:$0xf]
        %v346 = vld [vmem:[%s280 + $0x9c] sm:$0xf]
        %v347 = vld [vmem:[%s280 + $0xa0] sm:$0xf]
        %v348 = vld [vmem:[%s280 + $0xa4] sm:$0xf]
        %v349 = vld [vmem:[%s280 + $0xa8] sm:$0xf]
        %v350 = vld [vmem:[%s280 + $0xac] sm:$0xf]
        %v351 = vld [vmem:[%s280 + $0xb0] sm:$0xf]
        %v352 = vld [vmem:[%s280 + $0xb4] sm:$0xf]
        %v353 = vld [vmem:[%s280 + $0xb8] sm:$0xf]
        %v354 = vld [vmem:[%s280 + $0xbc] sm:$0xf]
        %v363 = vunpack.c.l.b16 %v299
        %v364 = vunpack.c.h.b16 %v299
        %v365 = vunpack.c.l.b16 %v300
        %v366 = vunpack.c.l.b16 %v301
        %v367 = vunpack.c.h.b16 %v301
        %v368 = vunpack.c.l.b16 %v302
        %v369 = vunpack.c.l.b16 %v303
        %v370 = vunpack.c.h.b16 %v303
        %v371 = vunpack.c.l.b16 %v304
        %v372 = vunpack.c.l.b16 %v305
        %v373 = vunpack.c.h.b16 %v305
        %v374 = vunpack.c.l.b16 %v306
        %v375 = vpack.c.b16 %v366, %v363
        %v376 = vpack.c.b16 %v367, %v364
        %v377 = vpack.c.b16 %v368, %v365
        %v378 = vpack.c.b16 %v372, %v369
        %v379 = vpack.c.b16 %v373, %v370
        %v380 = vpack.c.b16 %v374, %v371
        %v435 = vunpack.c.l.b16 %v307
        %v436 = vunpack.c.l.b16 %v308
        %v437 = vunpack.c.l.b16 %v309
        %v438 = vunpack.c.l.b16 %v310
        %v439 = vunpack.c.l.b16 %v311
        %v440 = vunpack.c.l.b16 %v312
        %v441 = vunpack.c.l.b16 %v313
        %v442 = vunpack.c.l.b16 %v314
        %v443 = vunpack.c.l.b16 %v315
        %v444 = vunpack.c.l.b16 %v316
        %v445 = vunpack.c.l.b16 %v317
        %v446 = vunpack.c.l.b16 %v318
        %v447 = vunpack.c.l.b16 %v319
        %v448 = vunpack.c.l.b16 %v320
        %v449 = vunpack.c.l.b16 %v321
        %v450 = vunpack.c.l.b16 %v322
        %v451 = vunpack.c.l.b16 %v323
        %v452 = vunpack.c.l.b16 %v324
        %v453 = vunpack.c.l.b16 %v325
        %v454 = vunpack.c.l.b16 %v326
        %v455 = vunpack.c.l.b16 %v327
        %v456 = vunpack.c.l.b16 %v328
        %v457 = vunpack.c.l.b16 %v329
        %v458 = vunpack.c.l.b16 %v330
        %v459 = vunpack.c.l.b16 %v331
        %v460 = vunpack.c.l.b16 %v332
        %v461 = vunpack.c.l.b16 %v333
        %v462 = vunpack.c.l.b16 %v334
        %v463 = vunpack.c.l.b16 %v335
        %v464 = vunpack.c.l.b16 %v336
        %v465 = vunpack.c.l.b16 %v337
        %v466 = vunpack.c.l.b16 %v338
        %v467 = vunpack.c.l.b16 %v339
        %v468 = vunpack.c.l.b16 %v340
        %v469 = vunpack.c.l.b16 %v341
        %v470 = vunpack.c.l.b16 %v342
        %v471 = vunpack.c.l.b16 %v343
        %v472 = vunpack.c.l.b16 %v344
        %v473 = vunpack.c.l.b16 %v345
        %v474 = vunpack.c.l.b16 %v346
        %v475 = vunpack.c.l.b16 %v347
        %v476 = vunpack.c.l.b16 %v348
        %v477 = vunpack.c.l.b16 %v349
        %v478 = vunpack.c.l.b16 %v350
        %v479 = vunpack.c.l.b16 %v351
        %v480 = vunpack.c.l.b16 %v352
        %v481 = vunpack.c.l.b16 %v353
        %v482 = vunpack.c.l.b16 %v354
        %v483 = vpack.c.b16 %v436, %v435
        %v484 = vpack.c.b16 %v438, %v437
        %v485 = vpack.c.b16 %v440, %v439
        %v486 = vpack.c.b16 %v442, %v441
        %v487 = vpack.c.b16 %v444, %v443
        %v488 = vpack.c.b16 %v446, %v445
        %v489 = vpack.c.b16 %v448, %v447
        %v490 = vpack.c.b16 %v450, %v449
        %v491 = vpack.c.b16 %v452, %v451
        %v492 = vpack.c.b16 %v454, %v453
        %v493 = vpack.c.b16 %v456, %v455
        %v494 = vpack.c.b16 %v458, %v457
        %v495 = vpack.c.b16 %v460, %v459
        %v496 = vpack.c.b16 %v462, %v461
        %v497 = vpack.c.b16 %v464, %v463
        %v498 = vpack.c.b16 %v466, %v465
        %v499 = vpack.c.b16 %v468, %v467
        %v500 = vpack.c.b16 %v470, %v469
        %v501 = vpack.c.b16 %v472, %v471
        %v502 = vpack.c.b16 %v474, %v473
        %v503 = vpack.c.b16 %v476, %v475
        %v504 = vpack.c.b16 %v478, %v477
        %v505 = vpack.c.b16 %v480, %v479
        %v506 = vpack.c.b16 %v482, %v481
        %531 = vmatprep.subr.bf16.mxu0 0
        %532 = vmatpush1.bf16.msra.mxu0 %v483
        %533 = vmatprep.subr.bf16.mxu0 0
        %534 = vmatpush1.bf16.msra.mxu0 %v484
        %535 = vmatprep.subr.bf16.mxu0 0
        %536 = vmatpush1.bf16.msra.mxu0 %v485
        %537 = vmatprep.subr.bf16.mxu0 0
        %538 = vmatpush1.bf16.msra.mxu0 %v486
        %539 = vmatprep.subr.bf16.mxu0 0
        %540 = vmatpush1.bf16.msra.mxu0 %v487
        %541 = vmatprep.subr.bf16.mxu0 0
        %542 = vmatpush1.bf16.msra.mxu0 %v488
        %543 = vmatprep.subr.bf16.mxu0 0
        %544 = vmatpush1.bf16.msra.mxu0 %v489
        %545 = vmatprep.subr.bf16.mxu0 0
        %546 = vmatpush1.bf16.msra.mxu0 %v490
        %547 = vmatprep.subr.bf16.mxu0 0
        %548 = vmatpush1.bf16.msra.mxu0 %v491
        %549 = vmatprep.subr.bf16.mxu0 0
        %550 = vmatpush1.bf16.msra.mxu0 %v492
        %551 = vmatprep.subr.bf16.mxu0 0
        %552 = vmatpush1.bf16.msra.mxu0 %v493
        %553 = vmatprep.subr.bf16.mxu0 0
        %554 = vmatpush1.bf16.msra.mxu0 %v494
        %555 = vmatprep.subr.bf16.mxu0 0
        %556 = vmatpush1.bf16.msra.mxu0 %v495
        %557 = vmatprep.subr.bf16.mxu0 0
        %558 = vmatpush1.bf16.msra.mxu0 %v496
        %559 = vmatprep.subr.bf16.mxu0 0
        %560 = vmatpush1.bf16.msra.mxu0 %v497
        %561 = vmatprep.subr.bf16.mxu0 0
        %562 = vmatpush1.bf16.msra.mxu0 %v498
        %563 = vmatprep.mubr.bf16.mxu0 %v376
        %564 = vmatmul.mubr.bf16.gmra.mrb[0].mxu0 %v375
        %v565 = vpop.f32.mrb[0].mxu0
        %v566 = vadd.f32 0.0, %v565
        %v567 = vpop.f32.mrb[0].mxu0
        %v568 = vpop.f32.mrb[0].mxu0
        %v569 = vadd.f32 0.0, %v568
        %v570 = vpop.f32.mrb[0].mxu0
        %571 = vmatprep.mubr.bf16.mxu0 %v379
        %572 = vmatmul.mubr.bf16.gmra.mrb[0].mxu0 %v378
        %v573 = vpop.f32.mrb[0].mxu0
        %v574 = vadd.f32 0.0, %v573
        %v575 = vpop.f32.mrb[0].mxu0
        %v576 = vpop.f32.mrb[0].mxu0
        %v577 = vadd.f32 0.0, %v576
        %v578 = vpop.f32.mrb[0].mxu0
        %579 = vdwg.mxu0
        %580 = vmatprep.subr.bf16.mxu0 0
        %581 = vmatpush1.bf16.msra.mxu0 %v499
        %582 = vmatprep.subr.bf16.mxu0 0
        %583 = vmatpush1.bf16.msra.mxu0 %v500
        %584 = vmatprep.subr.bf16.mxu0 0
        %585 = vmatpush1.bf16.msra.mxu0 %v501
        %586 = vmatprep.subr.bf16.mxu0 0
        %587 = vmatpush1.bf16.msra.mxu0 %v502
        %588 = vmatprep.subr.bf16.mxu0 0
        %589 = vmatpush1.bf16.msra.mxu0 %v503
        %590 = vmatprep.subr.bf16.mxu0 0
        %591 = vmatpush1.bf16.msra.mxu0 %v504
        %592 = vmatprep.subr.bf16.mxu0 0
        %593 = vmatpush1.bf16.msra.mxu0 %v505
        %594 = vmatprep.subr.bf16.mxu0 0
        %595 = vmatpush1.bf16.msra.mxu0 %v506
        %596 = vmatprep.subr.bf16.mxu0 0
        %597 = vmatpush1.bf16.msra.mxu0 0
        %598 = vmatprep.subr.bf16.mxu0 0
        %599 = vmatpush1.bf16.msra.mxu0 0
        %600 = vmatprep.subr.bf16.mxu0 0
        %601 = vmatpush1.bf16.msra.mxu0 0
        %602 = vmatprep.subr.bf16.mxu0 0
        %603 = vmatpush1.bf16.msra.mxu0 0
        %604 = vmatprep.subr.bf16.mxu0 0
        %605 = vmatpush1.bf16.msra.mxu0 0
        %606 = vmatprep.subr.bf16.mxu0 0
        %607 = vmatpush1.bf16.msra.mxu0 0
        %608 = vmatprep.subr.bf16.mxu0 0
        %609 = vmatpush1.bf16.msra.mxu0 0
        %610 = vmatprep.subr.bf16.mxu0 0
        %611 = vmatpush1.bf16.msra.mxu0 0
        %612 = vmatprep.mubr.bf16.mxu0 0
        %613 = vmatmul.mubr.bf16.gmra.mrb[0].mxu0 %v377
        %v614 = vpop.f32.mrb[0].mxu0
        %v615 = vadd.f32 %v566, %v614
        %v616 = vpop.f32.mrb[0].mxu0
        %v617 = vpop.f32.mrb[0].mxu0
        %v618 = vadd.f32 %v569, %v617
        %v619 = vpop.f32.mrb[0].mxu0
        %620 = vmatprep.mubr.bf16.mxu0 0
        %621 = vmatmul.mubr.bf16.gmra.mrb[0].mxu0 %v380
        %v622 = vpop.f32.mrb[0].mxu0
        %v623 = vadd.f32 %v574, %v622
        %v624 = vpop.f32.mrb[0].mxu0
        %v625 = vpop.f32.mrb[0].mxu0
        %v626 = vadd.f32 %v577, %v625
        %v627 = vpop.f32.mrb[0].mxu0
        %628 = vdwg.mxu0
        %v629 = vadd.f32 %v295, %v615
        %v630 = vadd.f32 %v296, %v618
        %v631 = vadd.f32 %v297, %v623
        %v632 = vadd.f32 %v298, %v626
        %633 = vst [vmem:[#allocation2] sm:$0xff] %v629
        %634 = vst [vmem:[#allocation2 + $0x8] sm:$0xff] %v630
        %635 = vst [vmem:[#allocation2 + $0x10] sm:$0xff] %v631
        %636 = vst [vmem:[#allocation2 + $0x18] sm:$0xff] %v632
        %p637 = scmp.eq.s32.totalorder %s21, 2
        // Predicated region
        $region67: #{feedback_block_forward.19} parent=57 // pred_check
          %p638 = pneg %p637
        $region68: #{feedback_block_forward.19} parent=57 // pred_check_branch
          %640 = sbr.rel (%p638) target = $region70
        $region69: #{feedback_block_forward.19} parent=57 // pred_region
          %v641 = vld [vmem:[#allocation2] sm:$0xff]
          %v642 = vld [vmem:[#allocation2 + $0x8] sm:$0xff]
          %v643 = vld [vmem:[#allocation2 + $0x10] sm:$0xff]
          %v644 = vld [vmem:[#allocation2 + $0x18] sm:$0xff]
          %v645 = vld [vmem:[%s2] sm:$0xff]
          %v646 = vld [vmem:[%s2 + $0x8] sm:$0xff]
          %v647 = vld [vmem:[%s2 + $0x10] sm:$0xff]
          %v648 = vld [vmem:[%s2 + $0x18] sm:$0xff]
          %650 = vset.pattern.permute.xlu0 0
          %651 = vperm.xlu0 %650, %v645
          %v652 = vpop.permute.xlu0 %651
          %655 = vset.pattern.permute.xlu0 0
          %656 = vperm.xlu0 %655, %v646
          %v657 = vpop.permute.xlu0 %656
          %660 = vset.pattern.permute.xlu0 0
          %661 = vperm.xlu0 %660, %v647
          %v662 = vpop.permute.xlu0 %661
          %665 = vset.pattern.permute.xlu0 0
          %666 = vperm.xlu0 %665, %v648
          %v667 = vpop.permute.xlu0 %666
          %v669 = vadd.f32 %v641, %v652
          %v670 = vadd.f32 %v642, %v657
          %v671 = vadd.f32 %v643, %v662
          %v672 = vadd.f32 %v644, %v667
          %s673 = sld [smem:[#allocation3]]
          %vm674 = vcmp.ge.f32.partialorder %v669, 0.0
          %vm675 = vcmp.ge.f32.partialorder %v670, 0.0
          %vm676 = vcmp.ge.f32.partialorder %v671, 0.0
          %vm677 = vcmp.ge.f32.partialorder %v672, 0.0
          %v678 = vstv %s673
          %v679 = vmul.f32 %v678, %v669
          %v680 = vmul.f32 %v678, %v670
          %v681 = vmul.f32 %v678, %v671
          %v682 = vmul.f32 %v678, %v672
          %v683 = vsel %vm674, %v669, %v679
          %v684 = vsel %vm675, %v670, %v680
          %v685 = vsel %vm676, %v671, %v681
          %v686 = vsel %vm677, %v672, %v682
          %687 = vst [vmem:[%s285] sm:$0xff] %v683
          %688 = vst [vmem:[%s285 + $0x8] sm:$0xff] %v684
          %689 = vst [vmem:[%s285 + $0x10] sm:$0xff] %v685
          %690 = vst [vmem:[%s285 + $0x18] sm:$0xff] %v686
        $region70: #{feedback_block_forward.19} parent=57 // pred_fallthru
          _
        %p691 = scmp.lt.s32.totalorder %s20, 0
        %s692 = scalar_select %p691, %s20, 0
        %s693 = smul.addr %s692, 8
        %s694 = scalar_lea.vmem %s4, %s693
        // Predicated region
        $region71: #{feedback_block_forward.19} parent=57 // pred_check
          %p695 = pneg %p142
        $region72: #{feedback_block_forward.19} parent=57 // pred_check_branch
          %697 = sbr.rel (%p695) target = $region74
        $region73: #{feedback_block_forward.19} parent=57 // pred_region
          _
        $region74: #{feedback_block_forward.19} parent=57 // pred_fallthru
          _
        // Predicated region
        $region75: #{feedback_block_forward.19} parent=57 // pred_check
          %p698 = pneg %p142
        $region76: #{feedback_block_forward.19} parent=57 // pred_check_branch
          %700 = sbr.rel (%p698) target = $region78
        $region77: #{feedback_block_forward.19} parent=57 // pred_region
          %p701 = scmp.lt.s32.totalorder %s20, 0
          %s702 = scalar_select %p701, %s20, 0
          %s703 = smul.addr %s702, 8
          %s704 = scalar_lea.vmem %s4, %s703
        $region78: #{feedback_block_forward.19} parent=57 // pred_fallthru
          _
      $region58: #{feedback_block_forward.19} parent=5 // pred_fallthru
        _
      %p705 = scmp.le.s32.totalorder 2, %s11
      // Predicated region
      $region79: #{feedback_block_forward.19} parent=5 // pred_check
        %p706 = pneg %p705
      $region80: #{feedback_block_forward.19} parent=5 // pred_check_branch
        %708 = sbr.rel (%p706) target = $region82
      $region81: #{feedback_block_forward.19} parent=5 // pred_region
        %s709 = ssub.s32 %s11, 2
      $region82: #{feedback_block_forward.19} parent=5 // pred_fallthru
        _
    $region6: #{feedback_block_forward.19} parent=1 // loop_footer
      %s15 = sadd.s32 1, %s11
    $region7: #{feedback_block_forward.19} parent=1 // loop_footer_branch
      %10 = sbr.rel target = $region3
    $region8: #{feedback_block_forward.19} parent=1 // loop_exit
      _

// kernel: feedback_block_forward.20
$region0: #{feedback_block_forward.20}
  #allocation0 [shape = 'u32[]', space=smem, size = 0x4, offset = 0x4, fixed_abs, tag = 'smem constant byte address 0x4 - core index']
  #allocation1 [shape = 'u32[144,128]{1,0:T(1,128)}', space=vmem, size = 0x12000, scoped, tag = 'internal scratch']
  #allocation2 [shape = 'f32[32,128]{1,0:T(8,128)}', space=vmem, size = 0x4000, scoped, tag = 'scratch operand']
  #allocation3 [shape = 'f32[1]{0:T(128)S(6)}', space=smem, size = 0x200, scoped, tag = 'scoped memory for feedback_block_forward.20']
  %s0 = inlined_call_operand.vmem [shape: bf16[32,128], index: 0, kind: input, shape index: {}]
  %s1 = inlined_call_operand.vmem [shape: bf16[128,128], index: 1, kind: input, shape index: {}]
  %s2 = inlined_call_operand.vmem [shape: f32[32,1], index: 2, kind: input, shape index: {}]
  %s3 = inlined_call_operand.<no memory space> [shape: f32[1], index: 3, kind: input, shape index: {}]
  %s4 = inlined_call_operand.vmem [shape: f32[32,128], index: 4, kind: output, shape index: {}]
  %s5 = sld [smem:[#allocation0]]
  $region34: #{feedback_block_forward.20} parent=0
    _
  %s7 = ssub.s32 1, %s5
  %s8 = scalar_select 0, %s7, %s5
  %9 = sst [smem:[#allocation3]] %s3
  // Predicated region
  $region2: #{feedback_block_forward.20} parent=0 // pred_check
    _
  $region3: #{feedback_block_forward.20} parent=0 // pred_check_branch
    %11 = sbr.rel (0) target = $region5
  $region4: #{feedback_block_forward.20} parent=0 // pred_region
    _
  $region5: #{feedback_block_forward.20} parent=0 // pred_fallthru
    _
  // Predicated region
  $region6: #{feedback_block_forward.20} parent=0 // pred_check
    _
  $region7: #{feedback_block_forward.20} parent=0 // pred_check_branch
    %13 = sbr.rel (0) target = $region9
  $region8: #{feedback_block_forward.20} parent=0 // pred_region
    _
  $region9: #{feedback_block_forward.20} parent=0 // pred_fallthru
    _
  // Predicated region
  $region10: #{feedback_block_forward.20} parent=0 // pred_check
    _
  $region11: #{feedback_block_forward.20} parent=0 // pred_check_branch
    %15 = sbr.rel (0) target = $region13
  $region12: #{feedback_block_forward.20} parent=0 // pred_region
    _
  $region13: #{feedback_block_forward.20} parent=0 // pred_fallthru
    _
  // Predicated region
  $region14: #{feedback_block_forward.20} parent=0 // pred_check
    _
  $region15: #{feedback_block_forward.20} parent=0 // pred_check_branch
    %17 = sbr.rel (0) target = $region17
  $region16: #{feedback_block_forward.20} parent=0 // pred_region
    _
  $region17: #{feedback_block_forward.20} parent=0 // pred_fallthru
    _
  %p19 = scmp.eq.s32.totalorder 0, 0
  // Predicated region
  $region18: #{feedback_block_forward.20} parent=0 // pred_check
    %p20 = pneg %p19
  $region19: #{feedback_block_forward.20} parent=0 // pred_check_branch
    %22 = sbr.rel (%p20) target = $region21
  $region20: #{feedback_block_forward.20} parent=0 // pred_region
    %23 = vst [vmem:[#allocation2] sm:$0xff] 0.0
    %24 = vst [vmem:[#allocation2 + $0x8] sm:$0xff] 0.0
    %25 = vst [vmem:[#allocation2 + $0x10] sm:$0xff] 0.0
    %26 = vst [vmem:[#allocation2 + $0x18] sm:$0xff] 0.0
  $region21: #{feedback_block_forward.20} parent=0 // pred_fallthru
    _
  %v27 = vld [vmem:[#allocation2] sm:$0xff]
  %v28 = vld [vmem:[#allocation2 + $0x8] sm:$0xff]
  %v29 = vld [vmem:[#allocation2 + $0x10] sm:$0xff]
  %v30 = vld [vmem:[#allocation2 + $0x18] sm:$0xff]
  %v31 = vld [vmem:[%s0] sm:$0xf]
  %v32 = vld [vmem:[%s0 + $0x4] sm:$0xf]
  %v33 = vld [vmem:[%s0 + $0x8] sm:$0xf]
  %v34 = vld [vmem:[%s0 + $0xc] sm:$0xf]
  %v35 = vld [vmem:[%s1] sm:$0xf]
  %v36 = vld [vmem:[%s1 + $0x4] sm:$0xf]
  %v37 = vld [vmem:[%s1 + $0x8] sm:$0xf]
  %v38 = vld [vmem:[%s1 + $0xc] sm:$0xf]
  %v39 = vld [vmem:[%s1 + $0x10] sm:$0xf]
  %v40 = vld [vmem:[%s1 + $0x14] sm:$0xf]
  %v41 = vld [vmem:[%s1 + $0x18] sm:$0xf]
  %v42 = vld [vmem:[%s1 + $0x1c] sm:$0xf]
  %v43 = vld [vmem:[%s1 + $0x20] sm:$0xf]
  %v44 = vld [vmem:[%s1 + $0x24] sm:$0xf]
  %v45 = vld [vmem:[%s1 + $0x28] sm:$0xf]
  %v46 = vld [vmem:[%s1 + $0x2c] sm:$0xf]
  %v47 = vld [vmem:[%s1 + $0x30] sm:$0xf]
  %v48 = vld [vmem:[%s1 + $0x34] sm:$0xf]
  %v49 = vld [vmem:[%s1 + $0x38] sm:$0xf]
  %v50 = vld [vmem:[%s1 + $0x3c] sm:$0xf]
  %v55 = vunpack.c.l.b16 %v31
  %v56 = vunpack.c.l.b16 %v32
  %v57 = vunpack.c.l.b16 %v33
  %v58 = vunpack.c.l.b16 %v34
  %v59 = vpack.c.b16 %v56, %v55
  %v60 = vpack.c.b16 %v58, %v57
  %v79 = vunpack.c.l.b16 %v35
  %v80 = vunpack.c.l.b16 %v36
  %v81 = vunpack.c.l.b16 %v37
  %v82 = vunpack.c.l.b16 %v38
  %v83 = vunpack.c.l.b16 %v39
  %v84 = vunpack.c.l.b16 %v40
  %v85 = vunpack.c.l.b16 %v41
  %v86 = vunpack.c.l.b16 %v42
  %v87 = vunpack.c.l.b16 %v43
  %v88 = vunpack.c.l.b16 %v44
  %v89 = vunpack.c.l.b16 %v45
  %v90 = vunpack.c.l.b16 %v46
  %v91 = vunpack.c.l.b16 %v47
  %v92 = vunpack.c.l.b16 %v48
  %v93 = vunpack.c.l.b16 %v49
  %v94 = vunpack.c.l.b16 %v50
  %v95 = vpack.c.b16 %v80, %v79
  %v96 = vpack.c.b16 %v82, %v81
  %v97 = vpack.c.b16 %v84, %v83
  %v98 = vpack.c.b16 %v86, %v85
  %v99 = vpack.c.b16 %v88, %v87
  %v100 = vpack.c.b16 %v90, %v89
  %v101 = vpack.c.b16 %v92, %v91
  %v102 = vpack.c.b16 %v94, %v93
  %111 = vmatprep.subr.bf16.mxu0 0
  %112 = vmatpush1.bf16.msra.mxu0 %v95
  %113 = vmatprep.subr.bf16.mxu0 0
  %114 = vmatpush1.bf16.msra.mxu0 %v96
  %115 = vmatprep.subr.bf16.mxu0 0
  %116 = vmatpush1.bf16.msra.mxu0 %v97
  %117 = vmatprep.subr.bf16.mxu0 0
  %118 = vmatpush1.bf16.msra.mxu0 %v98
  %119 = vmatprep.subr.bf16.mxu0 0
  %120 = vmatpush1.bf16.msra.mxu0 %v99
  %121 = vmatprep.subr.bf16.mxu0 0
  %122 = vmatpush1.bf16.msra.mxu0 %v100
  %123 = vmatprep.subr.bf16.mxu0 0
  %124 = vmatpush1.bf16.msra.mxu0 %v101
  %125 = vmatprep.subr.bf16.mxu0 0
  %126 = vmatpush1.bf16.msra.mxu0 %v102
  %127 = vmatprep.subr.bf16.mxu0 0
  %128 = vmatpush1.bf16.msra.mxu0 0
  %129 = vmatprep.subr.bf16.mxu0 0
  %130 = vmatpush1.bf16.msra.mxu0 0
  %131 = vmatprep.subr.bf16.mxu0 0
  %132 = vmatpush1.bf16.msra.mxu0 0
  %133 = vmatprep.subr.bf16.mxu0 0
  %134 = vmatpush1.bf16.msra.mxu0 0
  %135 = vmatprep.subr.bf16.mxu0 0
  %136 = vmatpush1.bf16.msra.mxu0 0
  %137 = vmatprep.subr.bf16.mxu0 0
  %138 = vmatpush1.bf16.msra.mxu0 0
  %139 = vmatprep.subr.bf16.mxu0 0
  %140 = vmatpush1.bf16.msra.mxu0 0
  %141 = vmatprep.subr.bf16.mxu0 0
  %142 = vmatpush1.bf16.msra.mxu0 0
  %143 = vmatprep.mubr.bf16.mxu0 0
  %144 = vmatmul.mubr.bf16.gmra.mrb[0].mxu0 %v59
  %v145 = vpop.f32.mrb[0].mxu0
  %v146 = vadd.f32 0.0, %v145
  %v147 = vpop.f32.mrb[0].mxu0
  %v148 = vpop.f32.mrb[0].mxu0
  %v149 = vadd.f32 0.0, %v148
  %v150 = vpop.f32.mrb[0].mxu0
  %151 = vmatprep.mubr.bf16.mxu0 0
  %152 = vmatmul.mubr.bf16.gmra.mrb[0].mxu0 %v60
  %v153 = vpop.f32.mrb[0].mxu0
  %v154 = vadd.f32 0.0, %v153
  %v155 = vpop.f32.mrb[0].mxu0
  %v156 = vpop.f32.mrb[0].mxu0
  %v157 = vadd.f32 0.0, %v156
  %v158 = vpop.f32.mrb[0].mxu0
  %159 = vdwg.mxu0
  %v160 = vadd.f32 %v27, %v146
  %v161 = vadd.f32 %v28, %v149
  %v162 = vadd.f32 %v29, %v154
  %v163 = vadd.f32 %v30, %v157
  %164 = vst [vmem:[#allocation2] sm:$0xff] %v160
  %165 = vst [vmem:[#allocation2 + $0x8] sm:$0xff] %v161
  %166 = vst [vmem:[#allocation2 + $0x10] sm:$0xff] %v162
  %167 = vst [vmem:[#allocation2 + $0x18] sm:$0xff] %v163
  // Predicated region
  $region22: #{feedback_block_forward.20} parent=0 // pred_check
    %p168 = pneg %p19
  $region23: #{feedback_block_forward.20} parent=0 // pred_check_branch
    %170 = sbr.rel (%p168) target = $region25
  $region24: #{feedback_block_forward.20} parent=0 // pred_region
    %v171 = vld [vmem:[#allocation2] sm:$0xff]
    %v172 = vld [vmem:[#allocation2 + $0x8] sm:$0xff]
    %v173 = vld [vmem:[#allocation2 + $0x10] sm:$0xff]
    %v174 = vld [vmem:[#allocation2 + $0x18] sm:$0xff]
    %v175 = vld [vmem:[%s2] sm:$0xff]
    %v176 = vld [vmem:[%s2 + $0x8] sm:$0xff]
    %v177 = vld [vmem:[%s2 + $0x10] sm:$0xff]
    %v178 = vld [vmem:[%s2 + $0x18] sm:$0xff]
    %180 = vset.pattern.permute.xlu0 0
    %181 = vperm.xlu0 %180, %v175
    %v182 = vpop.permute.xlu0 %181
    %185 = vset.pattern.permute.xlu0 0
    %186 = vperm.xlu0 %185, %v176
    %v187 = vpop.permute.xlu0 %186
    %190 = vset.pattern.permute.xlu0 0
    %191 = vperm.xlu0 %190, %v177
    %v192 = vpop.permute.xlu0 %191
    %195 = vset.pattern.permute.xlu0 0
    %196 = vperm.xlu0 %195, %v178
    %v197 = vpop.permute.xlu0 %196
    %v199 = vadd.f32 %v171, %v182
    %v200 = vadd.f32 %v172, %v187
    %v201 = vadd.f32 %v173, %v192
    %v202 = vadd.f32 %v174, %v197
    %s203 = sld [smem:[#allocation3]]
    %vm204 = vcmp.ge.f32.partialorder %v199, 0.0
    %vm205 = vcmp.ge.f32.partialorder %v200, 0.0
    %vm206 = vcmp.ge.f32.partialorder %v201, 0.0
    %vm207 = vcmp.ge.f32.partialorder %v202, 0.0
    %v208 = vstv %s203
    %v209 = vmul.f32 %v208, %v199
    %v210 = vmul.f32 %v208, %v200
    %v211 = vmul.f32 %v208, %v201
    %v212 = vmul.f32 %v208, %v202
    %v213 = vsel %vm204, %v199, %v209
    %v214 = vsel %vm205, %v200, %v210
    %v215 = vsel %vm206, %v201, %v211
    %v216 = vsel %vm207, %v202, %v212
    %217 = vst [vmem:[%s4] sm:$0xff] %v213
    %218 = vst [vmem:[%s4 + $0x8] sm:$0xff] %v214
    %219 = vst [vmem:[%s4 + $0x10] sm:$0xff] %v215
    %220 = vst [vmem:[%s4 + $0x18] sm:$0xff] %v216
  $region25: #{feedback_block_forward.20} parent=0 // pred_fallthru
    _
  // Predicated region
  $region26: #{feedback_block_forward.20} parent=0 // pred_check
    _
  $region27: #{feedback_block_forward.20} parent=0 // pred_check_branch
    %222 = sbr.rel (0) target = $region29
  $region28: #{feedback_block_forward.20} parent=0 // pred_region
    _
  $region29: #{feedback_block_forward.20} parent=0 // pred_fallthru
    _
  // Predicated region
  $region30: #{feedback_block_forward.20} parent=0 // pred_check
    _
  $region31: #{feedback_block_forward.20} parent=0 // pred_check_branch
    %224 = sbr.rel (0) target = $region33
  $region32: #{feedback_block_forward.20} parent=0 // pred_region
    _
  $region33: #{feedback_block_forward.20} parent=0 // pred_fallthru
    _

// kernel: feedback_block_forward.25
$region0: #{feedback_block_forward.25}
  #allocation0 [shape = 'u32[]', space=smem, size = 0x4, offset = 0x4, fixed_abs, tag = 'smem constant byte address 0x4 - core index']
  #allocation1 [shape = 'u32[144,128]{1,0:T(1,128)}', space=vmem, size = 0x12000, scoped, tag = 'internal scratch']
  #allocation2 [shape = 'f32[32,512]{1,0:T(8,128)}', space=vmem, size = 0x10000, scoped, tag = 'scratch operand']
  #allocation3 [shape = 'f32[1]{0:T(128)S(6)}', space=smem, size = 0x200, scoped, tag = 'scoped memory for feedback_block_forward.25']
  %s0 = inlined_call_operand.vmem [shape: bf16[32,128], index: 0, kind: input, shape index: {}]
  %s1 = inlined_call_operand.vmem [shape: bf16[128,512], index: 1, kind: input, shape index: {}]
  %s2 = inlined_call_operand.vmem [shape: f32[32,1], index: 2, kind: input, shape index: {}]
  %s3 = inlined_call_operand.<no memory space> [shape: f32[1], index: 3, kind: input, shape index: {}]
  %s4 = inlined_call_operand.vmem [shape: f32[32,512], index: 4, kind: output, shape index: {}]
  %s5 = sld [smem:[#allocation0]]
  $region34: #{feedback_block_forward.25} parent=0
    _
  %s7 = ssub.s32 1, %s5
  %s8 = scalar_select 0, %s7, %s5
  %9 = sst [smem:[#allocation3]] %s3
  // Predicated region
  $region2: #{feedback_block_forward.25} parent=0 // pred_check
    _
  $region3: #{feedback_block_forward.25} parent=0 // pred_check_branch
    %11 = sbr.rel (0) target = $region5
  $region4: #{feedback_block_forward.25} parent=0 // pred_region
    _
  $region5: #{feedback_block_forward.25} parent=0 // pred_fallthru
    _
  // Predicated region
  $region6: #{feedback_block_forward.25} parent=0 // pred_check
    _
  $region7: #{feedback_block_forward.25} parent=0 // pred_check_branch
    %13 = sbr.rel (0) target = $region9
  $region8: #{feedback_block_forward.25} parent=0 // pred_region
    _
  $region9: #{feedback_block_forward.25} parent=0 // pred_fallthru
    _
  // Predicated region
  $region10: #{feedback_block_forward.25} parent=0 // pred_check
    _
  $region11: #{feedback_block_forward.25} parent=0 // pred_check_branch
    %15 = sbr.rel (0) target = $region13
  $region12: #{feedback_block_forward.25} parent=0 // pred_region
    _
  $region13: #{feedback_block_forward.25} parent=0 // pred_fallthru
    _
  // Predicated region
  $region14: #{feedback_block_forward.25} parent=0 // pred_check
    _
  $region15: #{feedback_block_forward.25} parent=0 // pred_check_branch
    %17 = sbr.rel (0) target = $region17
  $region16: #{feedback_block_forward.25} parent=0 // pred_region
    _
  $region17: #{feedback_block_forward.25} parent=0 // pred_fallthru
    _
  %p19 = scmp.eq.s32.totalorder 0, 0
  // Predicated region
  $region18: #{feedback_block_forward.25} parent=0 // pred_check
    %p20 = pneg %p19
  $region19: #{feedback_block_forward.25} parent=0 // pred_check_branch
    %22 = sbr.rel (%p20) target = $region21
  $region20: #{feedback_block_forward.25} parent=0 // pred_region
    %23 = vst [vmem:[#allocation2] sm:$0xff] 0.0
    %24 = vst [vmem:[#allocation2 + $0x8] sm:$0xff] 0.0
    %25 = vst [vmem:[#allocation2 + $0x10] sm:$0xff] 0.0
    %26 = vst [vmem:[#allocation2 + $0x18] sm:$0xff] 0.0
    %27 = vst [vmem:[#allocation2 + $0x20] sm:$0xff] 0.0
    %28 = vst [vmem:[#allocation2 + $0x28] sm:$0xff] 0.0
    %29 = vst [vmem:[#allocation2 + $0x30] sm:$0xff] 0.0
    %30 = vst [vmem:[#allocation2 + $0x38] sm:$0xff] 0.0
    %31 = vst [vmem:[#allocation2 + $0x40] sm:$0xff] 0.0
    %32 = vst [vmem:[#allocation2 + $0x48] sm:$0xff] 0.0
    %33 = vst [vmem:[#allocation2 + $0x50] sm:$0xff] 0.0
    %34 = vst [vmem:[#allocation2 + $0x58] sm:$0xff] 0.0
    %35 = vst [vmem:[#allocation2 + $0x60] sm:$0xff] 0.0
    %36 = vst [vmem:[#allocation2 + $0x68] sm:$0xff] 0.0
    %37 = vst [vmem:[#allocation2 + $0x70] sm:$0xff] 0.0
    %38 = vst [vmem:[#allocation2 + $0x78] sm:$0xff] 0.0
  $region21: #{feedback_block_forward.25} parent=0 // pred_fallthru
    _
  %v39 = vld [vmem:[#allocation2] sm:$0xff]
  %v40 = vld [vmem:[#allocation2 + $0x8] sm:$0xff]
  %v41 = vld [vmem:[#allocation2 + $0x10] sm:$0xff]
  %v42 = vld [vmem:[#allocation2 + $0x18] sm:$0xff]
  %v43 = vld [vmem:[#allocation2 + $0x20] sm:$0xff]
  %v44 = vld [vmem:[#allocation2 + $0x28] sm:$0xff]
  %v45 = vld [vmem:[#allocation2 + $0x30] sm:$0xff]
  %v46 = vld [vmem:[#allocation2 + $0x38] sm:$0xff]
  %v47 = vld [vmem:[#allocation2 + $0x40] sm:$0xff]
  %v48 = vld [vmem:[#allocation2 + $0x48] sm:$0xff]
  %v49 = vld [vmem:[#allocation2 + $0x50] sm:$0xff]
  %v50 = vld [vmem:[#allocation2 + $0x58] sm:$0xff]
  %v51 = vld [vmem:[#allocation2 + $0x60] sm:$0xff]
  %v52 = vld [vmem:[#allocation2 + $0x68] sm:$0xff]
  %v53 = vld [vmem:[#allocation2 + $0x70] sm:$0xff]
  %v54 = vld [vmem:[#allocation2 + $0x78] sm:$0xff]
  %v55 = vld [vmem:[%s0] sm:$0xf]
  %v56 = vld [vmem:[%s0 + $0x4] sm:$0xf]
  %v57 = vld [vmem:[%s0 + $0x8] sm:$0xf]
  %v58 = vld [vmem:[%s0 + $0xc] sm:$0xf]
  %v59 = vld [vmem:[%s1] sm:$0xff]
  %v60 = vld [vmem:[%s1 + $0x8] sm:$0xff]
  %v61 = vld [vmem:[%s1 + $0x10] sm:$0xff]
  %v62 = vld [vmem:[%s1 + $0x18] sm:$0xff]
  %v63 = vld [vmem:[%s1 + $0x20] sm:$0xff]
  %v64 = vld [vmem:[%s1 + $0x28] sm:$0xff]
  %v65 = vld [vmem:[%s1 + $0x30] sm:$0xff]
  %v66 = vld [vmem:[%s1 + $0x38] sm:$0xff]
  %v67 = vld [vmem:[%s1 + $0x40] sm:$0xff]
  %v68 = vld [vmem:[%s1 + $0x48] sm:$0xff]
  %v69 = vld [vmem:[%s1 + $0x50] sm:$0xff]
  %v70 = vld [vmem:[%s1 + $0x58] sm:$0xff]
  %v71 = vld [vmem:[%s1 + $0x60] sm:$0xff]
  %v72 = vld [vmem:[%s1 + $0x68] sm:$0xff]
  %v73 = vld [vmem:[%s1 + $0x70] sm:$0xff]
  %v74 = vld [vmem:[%s1 + $0x78] sm:$0xff]
  %v75 = vld [vmem:[%s1 + $0x80] sm:$0xff]
  %v76 = vld [vmem:[%s1 + $0x88] sm:$0xff]
  %v77 = vld [vmem:[%s1 + $0x90] sm:$0xff]
  %v78 = vld [vmem:[%s1 + $0x98] sm:$0xff]
  %v79 = vld [vmem:[%s1 + $0xa0] sm:$0xff]
  %v80 = vld [vmem:[%s1 + $0xa8] sm:$0xff]
  %v81 = vld [vmem:[%s1 + $0xb0] sm:$0xff]
  %v82 = vld [vmem:[%s1 + $0xb8] sm:$0xff]
  %v83 = vld [vmem:[%s1 + $0xc0] sm:$0xff]
  %v84 = vld [vmem:[%s1 + $0xc8] sm:$0xff]
  %v85 = vld [vmem:[%s1 + $0xd0] sm:$0xff]
  %v86 = vld [vmem:[%s1 + $0xd8] sm:$0xff]
  %v87 = vld [vmem:[%s1 + $0xe0] sm:$0xff]
  %v88 = vld [vmem:[%s1 + $0xe8] sm:$0xff]
  %v89 = vld [vmem:[%s1 + $0xf0] sm:$0xff]
  %v90 = vld [vmem:[%s1 + $0xf8] sm:$0xff]
  %v95 = vunpack.c.l.b16 %v55
  %v96 = vunpack.c.l.b16 %v56
  %v97 = vunpack.c.l.b16 %v57
  %v98 = vunpack.c.l.b16 %v58
  %v99 = vpack.c.b16 %v96, %v95
  %v100 = vpack.c.b16 %v98, %v97
  %v135 = vunpack.c.l.b16 %v59
  %v136 = vunpack.c.h.b16 %v59
  %v137 = vunpack.c.l.b16 %v60
  %v138 = vunpack.c.h.b16 %v60
  %v139 = vunpack.c.l.b16 %v61
  %v140 = vunpack.c.h.b16 %v61
  %v141 = vunpack.c.l.b16 %v62
  %v142 = vunpack.c.h.b16 %v62
  %v143 = vunpack.c.l.b16 %v63
  %v144 = vunpack.c.h.b16 %v63
  %v145 = vunpack.c.l.b16 %v64
  %v146 = vunpack.c.h.b16 %v64
  %v147 = vunpack.c.l.b16 %v65
  %v148 = vunpack.c.h.b16 %v65
  %v149 = vunpack.c.l.b16 %v66
  %v150 = vunpack.c.h.b16 %v66
  %v151 = vunpack.c.l.b16 %v67
  %v152 = vunpack.c.h.b16 %v67
  %v153 = vunpack.c.l.b16 %v68
  %v154 = vunpack.c.h.b16 %v68
  %v155 = vunpack.c.l.b16 %v69
  %v156 = vunpack.c.h.b16 %v69
  %v157 = vunpack.c.l.b16 %v70
  %v158 = vunpack.c.h.b16 %v70
  %v159 = vunpack.c.l.b16 %v71
  %v160 = vunpack.c.h.b16 %v71
  %v161 = vunpack.c.l.b16 %v72
  %v162 = vunpack.c.h.b16 %v72
  %v163 = vunpack.c.l.b16 %v73
  %v164 = vunpack.c.h.b16 %v73
  %v165 = vunpack.c.l.b16 %v74
  %v166 = vunpack.c.h.b16 %v74
  %v167 = vunpack.c.l.b16 %v75
  %v168 = vunpack.c.h.b16 %v75
  %v169 = vunpack.c.l.b16 %v76
  %v170 = vunpack.c.h.b16 %v76
  %v171 = vunpack.c.l.b16 %v77
  %v172 = vunpack.c.h.b16 %v77
  %v173 = vunpack.c.l.b16 %v78
  %v174 = vunpack.c.h.b16 %v78
  %v175 = vunpack.c.l.b16 %v79
  %v176 = vunpack.c.h.b16 %v79
  %v177 = vunpack.c.l.b16 %v80
  %v178 = vunpack.c.h.b16 %v80
  %v179 = vunpack.c.l.b16 %v81
  %v180 = vunpack.c.h.b16 %v81
  %v181 = vunpack.c.l.b16 %v82
  %v182 = vunpack.c.h.b16 %v82
  %v183 = vunpack.c.l.b16 %v83
  %v184 = vunpack.c.h.b16 %v83
  %v185 = vunpack.c.l.b16 %v84
  %v186 = vunpack.c.h.b16 %v84
  %v187 = vunpack.c.l.b16 %v85
  %v188 = vunpack.c.h.b16 %v85
  %v189 = vunpack.c.l.b16 %v86
  %v190 = vunpack.c.h.b16 %v86
  %v191 = vunpack.c.l.b16 %v87
  %v192 = vunpack.c.h.b16 %v87
  %v193 = vunpack.c.l.b16 %v88
  %v194 = vunpack.c.h.b16 %v88
  %v195 = vunpack.c.l.b16 %v89
  %v196 = vunpack.c.h.b16 %v89
  %v197 = vunpack.c.l.b16 %v90
  %v198 = vunpack.c.h.b16 %v90
  %v199 = vpack.c.b16 %v139, %v135
  %v200 = vpack.c.b16 %v140, %v136
  %v201 = vpack.c.b16 %v141, %v137
  %v202 = vpack.c.b16 %v142, %v138
  %v203 = vpack.c.b16 %v147, %v143
  %v204 = vpack.c.b16 %v148, %v144
  %v205 = vpack.c.b16 %v149, %v145
  %v206 = vpack.c.b16 %v150, %v146
  %v207 = vpack.c.b16 %v155, %v151
  %v208 = vpack.c.b16 %v156, %v152
  %v209 = vpack.c.b16 %v157, %v153
  %v210 = vpack.c.b16 %v158, %v154
  %v211 = vpack.c.b16 %v163, %v159
  %v212 = vpack.c.b16 %v164, %v160
  %v213 = vpack.c.b16 %v165, %v161
  %v214 = vpack.c.b16 %v166, %v162
  %v215 = vpack.c.b16 %v171, %v167
  %v216 = vpack.c.b16 %v172, %v168
  %v217 = vpack.c.b16 %v173, %v169
  %v218 = vpack.c.b16 %v174, %v170
  %v219 = vpack.c.b16 %v179, %v175
  %v220 = vpack.c.b16 %v180, %v176
  %v221 = vpack.c.b16 %v181, %v177
  %v222 = vpack.c.b16 %v182, %v178
  %v223 = vpack.c.b16 %v187, %v183
  %v224 = vpack.c.b16 %v188, %v184
  %v225 = vpack.c.b16 %v189, %v185
  %v226 = vpack.c.b16 %v190, %v186
  %v227 = vpack.c.b16 %v195, %v191
  %v228 = vpack.c.b16 %v196, %v192
  %v229 = vpack.c.b16 %v197, %v193
  %v230 = vpack.c.b16 %v198, %v194
  %263 = vmatprep.subr.bf16.mxu0 %v200
  %264 = vmatpush1.bf16.msra.mxu0 %v199
  %265 = vmatprep.subr.bf16.mxu0 %v204
  %266 = vmatpush1.bf16.msra.mxu0 %v203
  %267 = vmatprep.subr.bf16.mxu0 %v208
  %268 = vmatpush1.bf16.msra.mxu0 %v207
  %269 = vmatprep.subr.bf16.mxu0 %v212
  %270 = vmatpush1.bf16.msra.mxu0 %v211
  %271 = vmatprep.subr.bf16.mxu0 %v216
  %272 = vmatpush1.bf16.msra.mxu0 %v215
  %273 = vmatprep.subr.bf16.mxu0 %v220
  %274 = vmatpush1.bf16.msra.mxu0 %v219
  %275 = vmatprep.subr.bf16.mxu0 %v224
  %276 = vmatpush1.bf16.msra.mxu0 %v223
  %277 = vmatprep.subr.bf16.mxu0 %v228
  %278 = vmatpush1.bf16.msra.mxu0 %v227
  %279 = vmatprep.subr.bf16.mxu0 0
  %280 = vmatpush1.bf16.msra.mxu0 0
  %281 = vmatprep.subr.bf16.mxu0 0
  %282 = vmatpush1.bf16.msra.mxu0 0
  %283 = vmatprep.subr.bf16.mxu0 0
  %284 = vmatpush1.bf16.msra.mxu0 0
  %285 = vmatprep.subr.bf16.mxu0 0
  %286 = vmatpush1.bf16.msra.mxu0 0
  %287 = vmatprep.subr.bf16.mxu0 0
  %288 = vmatpush1.bf16.msra.mxu0 0
  %289 = vmatprep.subr.bf16.mxu0 0
  %290 = vmatpush1.bf16.msra.mxu0 0
  %291 = vmatprep.subr.bf16.mxu0 0
  %292 = vmatpush1.bf16.msra.mxu0 0
  %293 = vmatprep.subr.bf16.mxu0 0
  %294 = vmatpush1.bf16.msra.mxu0 0
  %295 = vmatprep.mubr.bf16.mxu0 0
  %296 = vmatmul.mubr.bf16.gmra.mrb[0].mxu0 %v99
  %v297 = vpop.f32.mrb[0].mxu0
  %v298 = vadd.f32 0.0, %v297
  %v299 = vpop.f32.mrb[0].mxu0
  %v300 = vadd.f32 0.0, %v299
  %v301 = vpop.f32.mrb[0].mxu0
  %v302 = vadd.f32 0.0, %v301
  %v303 = vpop.f32.mrb[0].mxu0
  %v304 = vadd.f32 0.0, %v303
  %305 = vmatprep.mubr.bf16.mxu0 0
  %306 = vmatmul.mubr.bf16.gmra.mrb[0].mxu0 %v100
  %v307 = vpop.f32.mrb[0].mxu0
  %v308 = vadd.f32 0.0, %v307
  %v309 = vpop.f32.mrb[0].mxu0
  %v310 = vadd.f32 0.0, %v309
  %v311 = vpop.f32.mrb[0].mxu0
  %v312 = vadd.f32 0.0, %v311
  %v313 = vpop.f32.mrb[0].mxu0
  %v314 = vadd.f32 0.0, %v313
  %315 = vdwg.mxu0
  %316 = vmatprep.subr.bf16.mxu0 %v202
  %317 = vmatpush1.bf16.msra.mxu0 %v201
  %318 = vmatprep.subr.bf16.mxu0 %v206
  %319 = vmatpush1.bf16.msra.mxu0 %v205
  %320 = vmatprep.subr.bf16.mxu0 %v210
  %321 = vmatpush1.bf16.msra.mxu0 %v209
  %322 = vmatprep.subr.bf16.mxu0 %v214
  %323 = vmatpush1.bf16.msra.mxu0 %v213
  %324 = vmatprep.subr.bf16.mxu0 %v218
  %325 = vmatpush1.bf16.msra.mxu0 %v217
  %326 = vmatprep.subr.bf16.mxu0 %v222
  %327 = vmatpush1.bf16.msra.mxu0 %v221
  %328 = vmatprep.subr.bf16.mxu0 %v226
  %329 = vmatpush1.bf16.msra.mxu0 %v225
  %330 = vmatprep.subr.bf16.mxu0 %v230
  %331 = vmatpush1.bf16.msra.mxu0 %v229
  %332 = vmatprep.subr.bf16.mxu0 0
  %333 = vmatpush1.bf16.msra.mxu0 0
  %334 = vmatprep.subr.bf16.mxu0 0
  %335 = vmatpush1.bf16.msra.mxu0 0
  %336 = vmatprep.subr.bf16.mxu0 0
  %337 = vmatpush1.bf16.msra.mxu0 0
  %338 = vmatprep.subr.bf16.mxu0 0
  %339 = vmatpush1.bf16.msra.mxu0 0
  %340 = vmatprep.subr.bf16.mxu0 0
  %341 = vmatpush1.bf16.msra.mxu0 0
  %342 = vmatprep.subr.bf16.mxu0 0
  %343 = vmatpush1.bf16.msra.mxu0 0
  %344 = vmatprep.subr.bf16.mxu0 0
  %345 = vmatpush1.bf16.msra.mxu0 0
  %346 = vmatprep.subr.bf16.mxu0 0
  %347 = vmatpush1.bf16.msra.mxu0 0
  %348 = vmatprep.mubr.bf16.mxu0 0
  %349 = vmatmul.mubr.bf16.gmra.mrb[0].mxu0 %v99
  %v350 = vpop.f32.mrb[0].mxu0
  %v351 = vadd.f32 0.0, %v350
  %v352 = vpop.f32.mrb[0].mxu0
  %v353 = vadd.f32 0.0, %v352
  %v354 = vpop.f32.mrb[0].mxu0
  %v355 = vadd.f32 0.0, %v354
  %v356 = vpop.f32.mrb[0].mxu0
  %v357 = vadd.f32 0.0, %v356
  %358 = vmatprep.mubr.bf16.mxu0 0
  %359 = vmatmul.mubr.bf16.gmra.mrb[0].mxu0 %v100
  %v360 = vpop.f32.mrb[0].mxu0
  %v361 = vadd.f32 0.0, %v360
  %v362 = vpop.f32.mrb[0].mxu0
  %v363 = vadd.f32 0.0, %v362
  %v364 = vpop.f32.mrb[0].mxu0
  %v365 = vadd.f32 0.0, %v364
  %v366 = vpop.f32.mrb[0].mxu0
  %v367 = vadd.f32 0.0, %v366
  %368 = vdwg.mxu0
  %v369 = vadd.f32 %v39, %v298
  %v370 = vadd.f32 %v40, %v300
  %v371 = vadd.f32 %v41, %v351
  %v372 = vadd.f32 %v42, %v353
  %v373 = vadd.f32 %v43, %v302
  %v374 = vadd.f32 %v44, %v304
  %v375 = vadd.f32 %v45, %v355
  %v376 = vadd.f32 %v46, %v357
  %v377 = vadd.f32 %v47, %v308
  %v378 = vadd.f32 %v48, %v310
  %v379 = vadd.f32 %v49, %v361
  %v380 = vadd.f32 %v50, %v363
  %v381 = vadd.f32 %v51, %v312
  %v382 = vadd.f32 %v52, %v314
  %v383 = vadd.f32 %v53, %v365
  %v384 = vadd.f32 %v54, %v367
  %385 = vst [vmem:[#allocation2] sm:$0xff] %v369
  %386 = vst [vmem:[#allocation2 + $0x8] sm:$0xff] %v370
  %387 = vst [vmem:[#allocation2 + $0x10] sm:$0xff] %v371
  %388 = vst [vmem:[#allocation2 + $0x18] sm:$0xff] %v372
  %389 = vst [vmem:[#allocation2 + $0x20] sm:$0xff] %v373
  %390 = vst [vmem:[#allocation2 + $0x28] sm:$0xff] %v374
  %391 = vst [vmem:[#allocation2 + $0x30] sm:$0xff] %v375
  %392 = vst [vmem:[#allocation2 + $0x38] sm:$0xff] %v376
  %393 = vst [vmem:[#allocation2 + $0x40] sm:$0xff] %v377
  %394 = vst [vmem:[#allocation2 + $0x48] sm:$0xff] %v378
  %395 = vst [vmem:[#allocation2 + $0x50] sm:$0xff] %v379
  %396 = vst [vmem:[#allocation2 + $0x58] sm:$0xff] %v380
  %397 = vst [vmem:[#allocation2 + $0x60] sm:$0xff] %v381
  %398 = vst [vmem:[#allocation2 + $0x68] sm:$0xff] %v382
  %399 = vst [vmem:[#allocation2 + $0x70] sm:$0xff] %v383
  %400 = vst [vmem:[#allocation2 + $0x78] sm:$0xff] %v384
  // Predicated region
  $region22: #{feedback_block_forward.25} parent=0 // pred_check
    %p401 = pneg %p19
  $region23: #{feedback_block_forward.25} parent=0 // pred_check_branch
    %403 = sbr.rel (%p401) target = $region25
  $region24: #{feedback_block_forward.25} parent=0 // pred_region
    %v404 = vld [vmem:[#allocation2] sm:$0xff]
    %v405 = vld [vmem:[#allocation2 + $0x8] sm:$0xff]
    %v406 = vld [vmem:[#allocation2 + $0x10] sm:$0xff]
    %v407 = vld [vmem:[#allocation2 + $0x18] sm:$0xff]
    %v408 = vld [vmem:[#allocation2 + $0x20] sm:$0xff]
    %v409 = vld [vmem:[#allocation2 + $0x28] sm:$0xff]
    %v410 = vld [vmem:[#allocation2 + $0x30] sm:$0xff]
    %v411 = vld [vmem:[#allocation2 + $0x38] sm:$0xff]
    %v412 = vld [vmem:[#allocation2 + $0x40] sm:$0xff]
    %v413 = vld [vmem:[#allocation2 + $0x48] sm:$0xff]
    %v414 = vld [vmem:[#allocation2 + $0x50] sm:$0xff]
    %v415 = vld [vmem:[#allocation2 + $0x58] sm:$0xff]
    %v416 = vld [vmem:[#allocation2 + $0x60] sm:$0xff]
    %v417 = vld [vmem:[#allocation2 + $0x68] sm:$0xff]
    %v418 = vld [vmem:[#allocation2 + $0x70] sm:$0xff]
    %v419 = vld [vmem:[#allocation2 + $0x78] sm:$0xff]
    %v420 = vld [vmem:[%s2] sm:$0xff]
    %v421 = vld [vmem:[%s2 + $0x8] sm:$0xff]
    %v422 = vld [vmem:[%s2 + $0x10] sm:$0xff]
    %v423 = vld [vmem:[%s2 + $0x18] sm:$0xff]
    %425 = vset.pattern.permute.xlu0 0
    %426 = vperm.xlu0 %425, %v420
    %v427 = vpop.permute.xlu0 %426
    %430 = vset.pattern.permute.xlu0 0
    %431 = vperm.xlu0 %430, %v421
    %v432 = vpop.permute.xlu0 %431
    %435 = vset.pattern.permute.xlu0 0
    %436 = vperm.xlu0 %435, %v422
    %v437 = vpop.permute.xlu0 %436
    %440 = vset.pattern.permute.xlu0 0
    %441 = vperm.xlu0 %440, %v423
    %v442 = vpop.permute.xlu0 %441
    %v444 = vadd.f32 %v404, %v427
    %v445 = vadd.f32 %v405, %v427
    %v446 = vadd.f32 %v406, %v427
    %v447 = vadd.f32 %v407, %v427
    %v448 = vadd.f32 %v408, %v432
    %v449 = vadd.f32 %v409, %v432
    %v450 = vadd.f32 %v410, %v432
    %v451 = vadd.f32 %v411, %v432
    %v452 = vadd.f32 %v412, %v437
    %v453 = vadd.f32 %v413, %v437
    %v454 = vadd.f32 %v414, %v437
    %v455 = vadd.f32 %v415, %v437
    %v456 = vadd.f32 %v416, %v442
    %v457 = vadd.f32 %v417, %v442
    %v458 = vadd.f32 %v418, %v442
    %v459 = vadd.f32 %v419, %v442
    %s460 = sld [smem:[#allocation3]]
    %vm461 = vcmp.ge.f32.partialorder %v444, 0.0
    %vm462 = vcmp.ge.f32.partialorder %v445, 0.0
    %vm463 = vcmp.ge.f32.partialorder %v446, 0.0
    %vm464 = vcmp.ge.f32.partialorder %v447, 0.0
    %vm465 = vcmp.ge.f32.partialorder %v448, 0.0
    %vm466 = vcmp.ge.f32.partialorder %v449, 0.0
    %vm467 = vcmp.ge.f32.partialorder %v450, 0.0
    %vm468 = vcmp.ge.f32.partialorder %v451, 0.0
    %vm469 = vcmp.ge.f32.partialorder %v452, 0.0
    %vm470 = vcmp.ge.f32.partialorder %v453, 0.0
    %vm471 = vcmp.ge.f32.partialorder %v454, 0.0
    %vm472 = vcmp.ge.f32.partialorder %v455, 0.0
    %vm473 = vcmp.ge.f32.partialorder %v456, 0.0
    %vm474 = vcmp.ge.f32.partialorder %v457, 0.0
    %vm475 = vcmp.ge.f32.partialorder %v458, 0.0
    %vm476 = vcmp.ge.f32.partialorder %v459, 0.0
    %v477 = vstv %s460
    %v478 = vmul.f32 %v477, %v444
    %v479 = vmul.f32 %v477, %v445
    %v480 = vmul.f32 %v477, %v446
    %v481 = vmul.f32 %v477, %v447
    %v482 = vmul.f32 %v477, %v448
    %v483 = vmul.f32 %v477, %v449
    %v484 = vmul.f32 %v477, %v450
    %v485 = vmul.f32 %v477, %v451
    %v486 = vmul.f32 %v477, %v452
    %v487 = vmul.f32 %v477, %v453
    %v488 = vmul.f32 %v477, %v454
    %v489 = vmul.f32 %v477, %v455
    %v490 = vmul.f32 %v477, %v456
    %v491 = vmul.f32 %v477, %v457
    %v492 = vmul.f32 %v477, %v458
    %v493 = vmul.f32 %v477, %v459
    %v494 = vsel %vm461, %v444, %v478
    %v495 = vsel %vm462, %v445, %v479
    %v496 = vsel %vm463, %v446, %v480
    %v497 = vsel %vm464, %v447, %v481
    %v498 = vsel %vm465, %v448, %v482
    %v499 = vsel %vm466, %v449, %v483
    %v500 = vsel %vm467, %v450, %v484
    %v501 = vsel %vm468, %v451, %v485
    %v502 = vsel %vm469, %v452, %v486
    %v503 = vsel %vm470, %v453, %v487
    %v504 = vsel %vm471, %v454, %v488
    %v505 = vsel %vm472, %v455, %v489
    %v506 = vsel %vm473, %v456, %v490
    %v507 = vsel %vm474, %v457, %v491
    %v508 = vsel %vm475, %v458, %v492
    %v509 = vsel %vm476, %v459, %v493
    %510 = vst [vmem:[%s4] sm:$0xff] %v494
    %511 = vst [vmem:[%s4 + $0x8] sm:$0xff] %v495
    %512 = vst [vmem:[%s4 + $0x10] sm:$0xff] %v496
    %513 = vst [vmem:[%s4 + $0x18] sm:$0xff] %v497
    %514 = vst [vmem:[%s4 + $0x20] sm:$0xff] %v498
    %515 = vst [vmem:[%s4 + $0x28] sm:$0xff] %v499
    %516 = vst [vmem:[%s4 + $0x30] sm:$0xff] %v500
    %517 = vst [vmem:[%s4 + $0x38] sm:$0xff] %v501
    %518 = vst [vmem:[%s4 + $0x40] sm:$0xff] %v502
    %519 = vst [vmem:[%s4 + $0x48] sm:$0xff] %v503
    %520 = vst [vmem:[%s4 + $0x50] sm:$0xff] %v504
    %521 = vst [vmem:[%s4 + $0x58] sm:$0xff] %v505
    %522 = vst [vmem:[%s4 + $0x60] sm:$0xff] %v506
    %523 = vst [vmem:[%s4 + $0x68] sm:$0xff] %v507
    %524 = vst [vmem:[%s4 + $0x70] sm:$0xff] %v508
    %525 = vst [vmem:[%s4 + $0x78] sm:$0xff] %v509
  $region25: #{feedback_block_forward.25} parent=0 // pred_fallthru
    _
  // Predicated region
  $region26: #{feedback_block_forward.25} parent=0 // pred_check
    _
  $region27: #{feedback_block_forward.25} parent=0 // pred_check_branch
    %527 = sbr.rel (0) target = $region29
  $region28: #{feedback_block_forward.25} parent=0 // pred_region
    _
  $region29: #{feedback_block_forward.25} parent=0 // pred_fallthru
    _
  // Predicated region
  $region30: #{feedback_block_forward.25} parent=0 // pred_check
    _
  $region31: #{feedback_block_forward.25} parent=0 // pred_check_branch
    %529 = sbr.rel (0) target = $region33
  $region32: #{feedback_block_forward.25} parent=0 // pred_region
    _
  $region33: #{feedback_block_forward.25} parent=0 // pred_fallthru
    _

</llo_original>
